<compile_context>
chip_gen: v7x
topology: tpu7x:2x2x1
jax: 0.10.0
libtpu: 0.0.40
codegen_flags: <defaults>
</compile_context>

<pallas_src>
import functools
import math

import jax
import jax.numpy as jnp
from jax.experimental import pallas as pl
from jax.experimental.pallas import tpu as pltpu


def _layer_norm(x, gamma, beta, eps=1e-12):
    """BERT-style LayerNorm over the last (lane) axis, f32 math."""
    mu = jnp.mean(x, axis=-1, keepdims=True)
    var = jnp.mean(jnp.square(x - mu), axis=-1, keepdims=True)
    return (x - mu) * jax.lax.rsqrt(var + eps) * gamma + beta


def _encoder_kernel(num_heads, head_dim,
                    emb_ref, bias_ref, eg_ref, eb_ref,
                    wqkv_ref, bqkv_ref, wo_ref, bo_ref, g1_ref, b1_ref,
                    wf1_ref, bf1_ref, wf2_ref, bf2_ref, g2_ref, b2_ref,
                    out_ref, mean_ref,
                    x_scr, ctx_scr):
    """One grid step = one (batch example, encoder layer) pair.

    Grid = (B, L).  For a fixed batch example the layer axis runs sequentially
    ("arbitrary"); the running hidden state (S, H) lives in x_scr (f32).
    """
    H = num_heads * head_dim
    layer = pl.program_id(1)
    n_layers = pl.num_programs(1)

    # First layer: embedding LayerNorm (fused into the same kernel).
    @pl.when(layer == 0)
    def _():
        x_scr[...] = _layer_norm(emb_ref[0], eg_ref[...], eb_ref[...])

    x = x_scr[...]                                      # (S, H) f32

    # ---- multi-head self-attention -------------------------------------
    xb = x.astype(jnp.bfloat16)
    qkv = jnp.dot(xb, wqkv_ref[0],
                  preferred_element_type=jnp.float32) + bqkv_ref[0]   # (S, 3H) f32
    qkv_b = qkv.astype(jnp.bfloat16)                    # bf16 MXU operands
    q = qkv_b[:, 0 * H:1 * H]
    k = qkv_b[:, 1 * H:2 * H]
    v = qkv_b[:, 2 * H:3 * H]

    bias = bias_ref[0]                                  # (1, S) additive key mask
    scale = 1.0 / math.sqrt(head_dim)

    for h in range(num_heads):                          # static unroll over heads
        sl = slice(h * head_dim, (h + 1) * head_dim)    # 128-aligned lane slices
        qh = q[:, sl]
        kh = k[:, sl]
        vh = v[:, sl]
        scores = jnp.dot(qh, kh.T,
                         preferred_element_type=jnp.float32) * scale + bias
        # f32 softmax; EUP reciprocal for the denominator.
        m = jnp.max(scores, axis=-1, keepdims=True)
        e = jnp.exp(scores - m)
        denom = jnp.sum(e, axis=-1, keepdims=True)
        probs = e * pl.reciprocal(denom, approx=True)
        ctx_scr[:, sl] = jnp.dot(probs.astype(jnp.bfloat16), vh,
                                 preferred_element_type=jnp.float32
                                 ).astype(jnp.bfloat16)

    attn = jnp.dot(ctx_scr[...], wo_ref[0],
                   preferred_element_type=jnp.float32) + bo_ref[0]
    x = _layer_norm(x + attn, g1_ref[0], b1_ref[0])     # residual + LN (f32)

    # ---- feed-forward ----------------------------------------------------
    ff = jnp.dot(x.astype(jnp.bfloat16), wf1_ref[0],
                 preferred_element_type=jnp.float32) + bf1_ref[0]
    ff = jax.nn.gelu(ff, approximate=True)              # f32 GELU (tanh on EUP)
    ffo = jnp.dot(ff.astype(jnp.bfloat16), wf2_ref[0],
                  preferred_element_type=jnp.float32) + bf2_ref[0]
    x = _layer_norm(x + ffo, g2_ref[0], b2_ref[0])      # residual + LN (f32)

    x_scr[...] = x

    # Last layer: emit the hidden states and the fused sequence mean
    # (problem_output) in one lane-dense write each.
    @pl.when(layer == n_layers - 1)
    def _():
        out_ref[0] = x.astype(out_ref.dtype)
        mean_ref[0] = jnp.mean(x, axis=0, keepdims=True).astype(mean_ref.dtype)


def init_params(key, vocab_size, max_position, hidden_size,
                intermediate_size, n_layers):
    """Deterministic random BERT-encoder parameters (matmul weights in bf16)."""
    H, F, L = hidden_size, intermediate_size, n_layers
    std = 0.02
    p = {}

    key, k0, k1, k2 = jax.random.split(key, 4)
    word_emb = std * jax.random.normal(k0, (vocab_size, H), jnp.float32)
    p["word_emb"] = word_emb.at[0].set(0.0)             # pad token id 0
    p["pos_emb"] = std * jax.random.normal(k1, (max_position, H), jnp.float32)
    p["type_emb"] = std * jax.random.normal(k2, (2, H), jnp.float32)
    p["emb_ln_g"] = jnp.ones((1, H), jnp.float32)
    p["emb_ln_b"] = jnp.zeros((1, H), jnp.float32)

    w_qkv, b_qkv, w_o, b_o = [], [], [], []
    w_f1, b_f1, w_f2, b_f2 = [], [], [], []
    g1, be1, g2, be2 = [], [], [], []
    for _ in range(L):
        key, ka, kb, kc, kd, ke, kf, kg, kh = jax.random.split(key, 9)
        w_qkv.append(std * jax.random.normal(ka, (H, 3 * H), jnp.float32))
        b_qkv.append(std * jax.random.normal(kb, (1, 3 * H), jnp.float32))
        w_o.append(std * jax.random.normal(kc, (H, H), jnp.float32))
        b_o.append(std * jax.random.normal(kd, (1, H), jnp.float32))
        w_f1.append(std * jax.random.normal(ke, (H, F), jnp.float32))
        b_f1.append(std * jax.random.normal(kf, (1, F), jnp.float32))
        w_f2.append(std * jax.random.normal(kg, (F, H), jnp.float32))
        b_f2.append(std * jax.random.normal(kh, (1, H), jnp.float32))
        g1.append(jnp.ones((1, H), jnp.float32))
        be1.append(jnp.zeros((1, H), jnp.float32))
        g2.append(jnp.ones((1, H), jnp.float32))
        be2.append(jnp.zeros((1, H), jnp.float32))

    # Stack per-layer params with a leading layer axis; MXU operands in bf16.
    p["w_qkv"] = jnp.stack(w_qkv).astype(jnp.bfloat16)   # (L, H, 3H)
    p["b_qkv"] = jnp.stack(b_qkv)                        # (L, 1, 3H) f32
    p["w_o"] = jnp.stack(w_o).astype(jnp.bfloat16)       # (L, H, H)
    p["b_o"] = jnp.stack(b_o)                            # (L, 1, H)
    p["ln1_g"] = jnp.stack(g1)
    p["ln1_b"] = jnp.stack(be1)
    p["w_ff1"] = jnp.stack(w_f1).astype(jnp.bfloat16)    # (L, H, F)
    p["b_ff1"] = jnp.stack(b_f1)                         # (L, 1, F)
    p["w_ff2"] = jnp.stack(w_f2).astype(jnp.bfloat16)    # (L, F, H)
    p["b_ff2"] = jnp.stack(b_f2)                         # (L, 1, H)
    p["ln2_g"] = jnp.stack(g2)
    p["ln2_b"] = jnp.stack(be2)
    return p


@functools.partial(jax.jit, static_argnames=("num_heads",))
def bert_encoder_seq_forward(params, input_ids, attention_mask, *, num_heads):
    """input_ids / attention_mask: (B, S) int32 (already padded, like the
    stacked bert_encoding in the reference forward).

    Returns (bert_output (S, B, H), problem_output (B, H)) matching
    Bert_EncoderSeq.forward (input_seqs / input_lengths are unused there)."""
    B, S = input_ids.shape
    H = params["word_emb"].shape[1]
    F = params["w_ff1"].shape[2]
    L = params["w_qkv"].shape[0]
    head_dim = H // num_heads

    # --- plain-JAX glue: embedding gather + additive attention-mask bias ----
    emb = (jnp.take(params["word_emb"], input_ids, axis=0)
           + params["pos_emb"][None, :S, :]
           + params["type_emb"][0][None, None, :])               # (B, S, H) f32
    mask_bias = ((1.0 - attention_mask.astype(jnp.float32))
                 * jnp.float32(-1e9))[:, None, :]                # (B, 1, S)

    kernel = functools.partial(_encoder_kernel, num_heads, head_dim)

    batch3 = lambda b, l: (b, 0, 0)
    layer3 = lambda b, l: (l, 0, 0)
    const2 = lambda b, l: (0, 0)

    out_hidden, out_mean = pl.pallas_call(
        kernel,
        out_shape=(jax.ShapeDtypeStruct((B, S, H), jnp.float32),
                   jax.ShapeDtypeStruct((B, 1, H), jnp.float32)),
        grid_spec=pltpu.PrefetchScalarGridSpec(
            num_scalar_prefetch=0,
            grid=(B, L),
            in_specs=[
                pl.BlockSpec((1, S, H), batch3),          # embeddings
                pl.BlockSpec((1, 1, S), batch3),          # attention-mask bias
                pl.BlockSpec((1, H), const2),             # emb LN gamma
                pl.BlockSpec((1, H), const2),             # emb LN beta
                pl.BlockSpec((1, H, 3 * H), layer3),      # W_qkv (bf16)
                pl.BlockSpec((1, 1, 3 * H), layer3),      # b_qkv
                pl.BlockSpec((1, H, H), layer3),          # W_o (bf16)
                pl.BlockSpec((1, 1, H), layer3),          # b_o
                pl.BlockSpec((1, 1, H), layer3),          # LN1 gamma
                pl.BlockSpec((1, 1, H), layer3),          # LN1 beta
                pl.BlockSpec((1, H, F), layer3),          # W_ff1 (bf16)
                pl.BlockSpec((1, 1, F), layer3),          # b_ff1
                pl.BlockSpec((1, F, H), layer3),          # W_ff2 (bf16)
                pl.BlockSpec((1, 1, H), layer3),          # b_ff2
                pl.BlockSpec((1, 1, H), layer3),          # LN2 gamma
                pl.BlockSpec((1, 1, H), layer3),          # LN2 beta
            ],
            out_specs=[
                pl.BlockSpec((1, S, H), batch3),          # last hidden states
                pl.BlockSpec((1, 1, H), batch3),          # fused mean over S
            ],
            scratch_shapes=[
                pltpu.VMEM((S, H), jnp.float32),          # running hidden state
                pltpu.VMEM((S, H), jnp.bfloat16),         # attention context
            ]),
        compiler_params=pltpu.CompilerParams(
            dimension_semantics=("parallel", "arbitrary")),  # batch || , layers seq
    )(emb, mask_bias, params["emb_ln_g"], params["emb_ln_b"],
      params["w_qkv"], params["b_qkv"], params["w_o"], params["b_o"],
      params["ln1_g"], params["ln1_b"],
      params["w_ff1"], params["b_ff1"], params["w_ff2"], params["b_ff2"],
      params["ln2_g"], params["ln2_b"])

    bert_output = jnp.transpose(out_hidden, (1, 0, 2))    # (S, B, H) time-major
    problem_output = out_mean[:, 0, :]                    # (B, H) mean over S
    return bert_output, problem_output


if __name__ == "__main__":
    vocab_size = 64
    max_position = 32
    hidden_size = 256          # lane-dense: multiple of 128
    intermediate_size = 512    # lane-dense: multiple of 128
    n_layers = 2
    num_heads = 2              # head_dim = 128 (128-aligned head slices)
    S, B = 8, 2

    key = jax.random.PRNGKey(0)
    k_params, k_tok = jax.random.split(key)
    params = init_params(k_params, vocab_size, max_position, hidden_size,
                         intermediate_size, n_layers)

    # Deterministic padded batch (like the stacked bert_encoding).
    lengths = jnp.array([8, 5], dtype=jnp.int32)
    tokens = jax.random.randint(k_tok, (B, S), 1, vocab_size, dtype=jnp.int32)
    valid = jnp.arange(S, dtype=jnp.int32)[None, :] < lengths[:, None]
    input_ids = jnp.where(valid, tokens, 0)               # pad token id 0
    attention_mask = valid.astype(jnp.int32)

    bert_output, problem_output = bert_encoder_seq_forward(
        params, input_ids, attention_mask, num_heads=num_heads)
    jax.block_until_ready((bert_output, problem_output))

    assert bert_output.shape == (S, B, hidden_size)
    assert problem_output.shape == (B, hidden_size)
    assert bool(jnp.all(jnp.isfinite(bert_output)))
    assert bool(jnp.all(jnp.isfinite(problem_output)))
    print("KERNEL_OK")
</pallas_src>

<mosaic_0001>
module attributes {stable_mosaic.version = 11 : i64} {
  func.func @_encoder_kernel(%arg0: i32, %arg1: i32, %arg2: memref<1x8x256xf32, #tpu.memory_space<vmem>>, %arg3: memref<1x1x8xf32, #tpu.memory_space<vmem>>, %arg4: memref<1x256xf32, #tpu.memory_space<vmem>>, %arg5: memref<1x256xf32, #tpu.memory_space<vmem>>, %arg6: memref<1x256x768xbf16, #tpu.memory_space<vmem>>, %arg7: memref<1x1x768xf32, #tpu.memory_space<vmem>>, %arg8: memref<1x256x256xbf16, #tpu.memory_space<vmem>>, %arg9: memref<1x1x256xf32, #tpu.memory_space<vmem>>, %arg10: memref<1x1x256xf32, #tpu.memory_space<vmem>>, %arg11: memref<1x1x256xf32, #tpu.memory_space<vmem>>, %arg12: memref<1x256x512xbf16, #tpu.memory_space<vmem>>, %arg13: memref<1x1x512xf32, #tpu.memory_space<vmem>>, %arg14: memref<1x512x256xbf16, #tpu.memory_space<vmem>>, %arg15: memref<1x1x256xf32, #tpu.memory_space<vmem>>, %arg16: memref<1x1x256xf32, #tpu.memory_space<vmem>>, %arg17: memref<1x1x256xf32, #tpu.memory_space<vmem>>, %arg18: memref<1x8x256xf32, #tpu.memory_space<vmem>>, %arg19: memref<1x1x256xf32, #tpu.memory_space<vmem>>, %arg20: memref<8x256xf32, #tpu.memory_space<vmem>>, %arg21: memref<8x256xbf16, #tpu.memory_space<vmem>>) attributes {dimension_semantics = [#tpu.dimension_semantics<parallel>, #tpu.dimension_semantics<arbitrary>], iteration_bounds = array<i64: 2, 2>, scalar_prefetch = 0 : i64, scratch_operands = 2 : i64, tpu.core_type = #tpu.core_type<tc>, window_params = [{transform_indices = @transform_0, window_bounds = array<i64: 1, 8, 256>}, {transform_indices = @transform_1, window_bounds = array<i64: 1, 1, 8>}, {pipeline_mode = #tpu.pipeline_mode<synchronous>, transform_indices = @transform_2, window_bounds = array<i64: 1, 256>}, {pipeline_mode = #tpu.pipeline_mode<synchronous>, transform_indices = @transform_3, window_bounds = array<i64: 1, 256>}, {transform_indices = @transform_4, window_bounds = array<i64: 1, 256, 768>}, {transform_indices = @transform_5, window_bounds = array<i64: 1, 1, 768>}, {transform_indices = @transform_6, window_bounds = array<i64: 1, 256, 256>}, {transform_indices = @transform_7, window_bounds = array<i64: 1, 1, 256>}, {transform_indices = @transform_8, window_bounds = array<i64: 1, 1, 256>}, {transform_indices = @transform_9, window_bounds = array<i64: 1, 1, 256>}, {transform_indices = @transform_10, window_bounds = array<i64: 1, 256, 512>}, {transform_indices = @transform_11, window_bounds = array<i64: 1, 1, 512>}, {transform_indices = @transform_12, window_bounds = array<i64: 1, 512, 256>}, {transform_indices = @transform_13, window_bounds = array<i64: 1, 1, 256>}, {transform_indices = @transform_14, window_bounds = array<i64: 1, 1, 256>}, {transform_indices = @transform_15, window_bounds = array<i64: 1, 1, 256>}, {transform_indices = @transform_16, window_bounds = array<i64: 1, 8, 256>}, {transform_indices = @transform_17, window_bounds = array<i64: 1, 1, 256>}]} {
    %c0_i32 = arith.constant 0 : i32
    %0 = arith.cmpi eq, %arg1, %c0_i32 : i32
    %1 = arith.extui %0 : i1 to i32
    %c0_i32_0 = arith.constant 0 : i32
    %2 = arith.cmpi ne, %1, %c0_i32_0 : i32
    scf.if %2 {
      %c0_76 = arith.constant 0 : index
      %c0_77 = arith.constant 0 : index
      %c0_78 = arith.constant 0 : index
      %159 = vector.load %arg2[%c0_76, %c0_77, %c0_78] : memref<1x8x256xf32, #tpu.memory_space<vmem>>, vector<1x8x256xf32>
      %160 = vector.shape_cast %159 : vector<1x8x256xf32> to vector<8x256xf32>
      %c0_79 = arith.constant 0 : index
      %c0_80 = arith.constant 0 : index
      %161 = vector.load %arg4[%c0_79, %c0_80] : memref<1x256xf32, #tpu.memory_space<vmem>>, vector<1x256xf32>
      %c0_81 = arith.constant 0 : index
      %c0_82 = arith.constant 0 : index
      %162 = vector.load %arg5[%c0_81, %c0_82] : memref<1x256xf32, #tpu.memory_space<vmem>>, vector<1x256xf32>
      %cst_83 = arith.constant dense<0.000000e+00> : vector<8xf32>
      %163 = vector.multi_reduction <add>, %160, %cst_83 [1] : vector<8x256xf32> to vector<8xf32>
      %164 = vector.shape_cast %163 : vector<8xf32> to vector<8x1xf32>
      %cst_84 = arith.constant 2.560000e+02 : f32
      %165 = vector.broadcast %cst_84 : f32 to vector<8x1xf32>
      %166 = arith.divf %164, %165 : vector<8x1xf32>
      %167 = vector.broadcast %166 : vector<8x1xf32> to vector<8x256xf32>
      %168 = arith.subf %160, %167 : vector<8x256xf32>
      %169 = arith.mulf %168, %168 : vector<8x256xf32>
      %cst_85 = arith.constant dense<0.000000e+00> : vector<8xf32>
      %170 = vector.multi_reduction <add>, %169, %cst_85 [1] : vector<8x256xf32> to vector<8xf32>
      %171 = vector.shape_cast %170 : vector<8xf32> to vector<8x1xf32>
      %cst_86 = arith.constant 2.560000e+02 : f32
      %172 = vector.broadcast %cst_86 : f32 to vector<8x1xf32>
      %173 = arith.divf %171, %172 : vector<8x1xf32>
      %174 = vector.broadcast %166 : vector<8x1xf32> to vector<8x256xf32>
      %175 = arith.subf %160, %174 : vector<8x256xf32>
      %cst_87 = arith.constant 9.99999996E-13 : f32
      %176 = vector.broadcast %cst_87 : f32 to vector<8x1xf32>
      %177 = arith.addf %173, %176 : vector<8x1xf32>
      %178 = math.rsqrt %177 : vector<8x1xf32>
      %179 = vector.broadcast %178 : vector<8x1xf32> to vector<8x256xf32>
      %180 = arith.mulf %175, %179 : vector<8x256xf32>
      %181 = vector.broadcast %161 : vector<1x256xf32> to vector<8x256xf32>
      %182 = arith.mulf %180, %181 : vector<8x256xf32>
      %183 = vector.broadcast %162 : vector<1x256xf32> to vector<8x256xf32>
      %184 = arith.addf %182, %183 : vector<8x256xf32>
      %c0_88 = arith.constant 0 : index
      %c0_89 = arith.constant 0 : index
      %185 = vector.load %arg20[%c0_88, %c0_89] : memref<8x256xf32, #tpu.memory_space<vmem>>, vector<8x256xf32>
      tpu.vector_store %arg20[%c0_88, %c0_89], %184 {strides = array<i32>} : memref<8x256xf32, #tpu.memory_space<vmem>>, vector<8x256xf32>,
    } else {
    }
    %c0 = arith.constant 0 : index
    %c0_1 = arith.constant 0 : index
    %3 = vector.load %arg20[%c0, %c0_1] : memref<8x256xf32, #tpu.memory_space<vmem>>, vector<8x256xf32>
    %4 = arith.truncf %3 : vector<8x256xf32> to vector<8x256xbf16>
    %c0_2 = arith.constant 0 : index
    %c0_3 = arith.constant 0 : index
    %c0_4 = arith.constant 0 : index
    %5 = vector.load %arg6[%c0_2, %c0_3, %c0_4] : memref<1x256x768xbf16, #tpu.memory_space<vmem>>, vector<1x256x768xbf16>
    %6 = vector.shape_cast %5 : vector<1x256x768xbf16> to vector<256x768xbf16>
    %cst = arith.constant dense<0.000000e+00> : vector<8x768xf32>
    %7 = tpu.matmul %4, %6, %cst {dimension_numbers = #tpu.dot_dimension_numbers<[1], [0], [0], [1], [0, 0, 1, 1], [], []>} : vector<8x256xbf16>, vector<256x768xbf16>, vector<8x768xf32> -> vector<8x768xf32>
    %c0_5 = arith.constant 0 : index
    %c0_6 = arith.constant 0 : index
    %c0_7 = arith.constant 0 : index
    %8 = vector.load %arg7[%c0_5, %c0_6, %c0_7] : memref<1x1x768xf32, #tpu.memory_space<vmem>>, vector<1x1x768xf32>
    %9 = vector.shape_cast %8 : vector<1x1x768xf32> to vector<1x768xf32>
    %10 = vector.broadcast %9 : vector<1x768xf32> to vector<8x768xf32>
    %11 = arith.addf %7, %10 : vector<8x768xf32>
    %12 = arith.truncf %11 : vector<8x768xf32> to vector<8x768xbf16>
    %13 = vector.extract_strided_slice %12 {offsets = [0, 0], sizes = [8, 256], strides = [1, 1]} : vector<8x768xbf16> to vector<8x256xbf16>
    %14 = vector.extract_strided_slice %12 {offsets = [0, 256], sizes = [8, 256], strides = [1, 1]} : vector<8x768xbf16> to vector<8x256xbf16>
    %15 = vector.extract_strided_slice %12 {offsets = [0, 512], sizes = [8, 256], strides = [1, 1]} : vector<8x768xbf16> to vector<8x256xbf16>
    %c0_8 = arith.constant 0 : index
    %c0_9 = arith.constant 0 : index
    %c0_10 = arith.constant 0 : index
    %16 = vector.load %arg3[%c0_8, %c0_9, %c0_10] : memref<1x1x8xf32, #tpu.memory_space<vmem>>, vector<1x1x8xf32>
    %17 = vector.shape_cast %16 : vector<1x1x8xf32> to vector<1x8xf32>
    %18 = vector.extract_strided_slice %13 {offsets = [0, 0], sizes = [8, 128], strides = [1, 1]} : vector<8x256xbf16> to vector<8x128xbf16>
    %19 = vector.extract_strided_slice %14 {offsets = [0, 0], sizes = [8, 128], strides = [1, 1]} : vector<8x256xbf16> to vector<8x128xbf16>
    %20 = vector.extract_strided_slice %15 {offsets = [0, 0], sizes = [8, 128], strides = [1, 1]} : vector<8x256xbf16> to vector<8x128xbf16>
    %21 = tpu.transpose %19, [1, 0] : vector<8x128xbf16> -> vector<128x8xbf16>
    %cst_11 = arith.constant dense<0.000000e+00> : vector<8x8xf32>
    %22 = tpu.matmul %18, %21, %cst_11 {dimension_numbers = #tpu.dot_dimension_numbers<[1], [0], [0], [1], [0, 0, 1, 1], [], []>} : vector<8x128xbf16>, vector<128x8xbf16>, vector<8x8xf32> -> vector<8x8xf32>
    %cst_12 = arith.constant 0.0883883461 : f32
    %23 = vector.broadcast %cst_12 : f32 to vector<8x8xf32>
    %24 = arith.mulf %22, %23 : vector<8x8xf32>
    %25 = vector.broadcast %17 : vector<1x8xf32> to vector<8x8xf32>
    %26 = arith.addf %24, %25 : vector<8x8xf32>
    %cst_13 = arith.constant dense<0xFF800000> : vector<8xf32>
    %27 = vector.multi_reduction <maximumf>, %26, %cst_13 [1] : vector<8x8xf32> to vector<8xf32>
    %28 = vector.shape_cast %27 : vector<8xf32> to vector<8x1xf32>
    %29 = vector.broadcast %28 : vector<8x1xf32> to vector<8x8xf32>
    %30 = arith.subf %26, %29 : vector<8x8xf32>
    %31 = math.exp %30 : vector<8x8xf32>
    %cst_14 = arith.constant dense<0.000000e+00> : vector<8xf32>
    %32 = vector.multi_reduction <add>, %31, %cst_14 [1] : vector<8x8xf32> to vector<8xf32>
    %33 = vector.shape_cast %32 : vector<8xf32> to vector<8x1xf32>
    %34 = tpu.reciprocal %33 {approx = true} : vector<8x1xf32> -> vector<8x1xf32>
    %35 = vector.broadcast %34 : vector<8x1xf32> to vector<8x8xf32>
    %36 = arith.mulf %31, %35 : vector<8x8xf32>
    %37 = arith.truncf %36 : vector<8x8xf32> to vector<8x8xbf16>
    %cst_15 = arith.constant dense<0.000000e+00> : vector<8x128xf32>
    %38 = tpu.matmul %37, %20, %cst_15 {dimension_numbers = #tpu.dot_dimension_numbers<[1], [0], [0], [1], [0, 0, 1, 1], [], []>} : vector<8x8xbf16>, vector<8x128xbf16>, vector<8x128xf32> -> vector<8x128xf32>
    %39 = arith.truncf %38 : vector<8x128xf32> to vector<8x128xbf16>
    %c0_16 = arith.constant 0 : index
    %c0_17 = arith.constant 0 : index
    %40 = vector.load %arg21[%c0_16, %c0_17] : memref<8x256xbf16, #tpu.memory_space<vmem>>, vector<8x128xbf16>
    tpu.vector_store %arg21[%c0_16, %c0_17], %39 {strides = array<i32>} : memref<8x256xbf16, #tpu.memory_space<vmem>>, vector<8x128xbf16>,
    %41 = vector.extract_strided_slice %13 {offsets = [0, 128], sizes = [8, 128], strides = [1, 1]} : vector<8x256xbf16> to vector<8x128xbf16>
    %42 = vector.extract_strided_slice %14 {offsets = [0, 128], sizes = [8, 128], strides = [1, 1]} : vector<8x256xbf16> to vector<8x128xbf16>
    %43 = vector.extract_strided_slice %15 {offsets = [0, 128], sizes = [8, 128], strides = [1, 1]} : vector<8x256xbf16> to vector<8x128xbf16>
    %44 = tpu.transpose %42, [1, 0] : vector<8x128xbf16> -> vector<128x8xbf16>
    %cst_18 = arith.constant dense<0.000000e+00> : vector<8x8xf32>
    %45 = tpu.matmul %41, %44, %cst_18 {dimension_numbers = #tpu.dot_dimension_numbers<[1], [0], [0], [1], [0, 0, 1, 1], [], []>} : vector<8x128xbf16>, vector<128x8xbf16>, vector<8x8xf32> -> vector<8x8xf32>
    %cst_19 = arith.constant 0.0883883461 : f32
    %46 = vector.broadcast %cst_19 : f32 to vector<8x8xf32>
    %47 = arith.mulf %45, %46 : vector<8x8xf32>
    %48 = vector.broadcast %17 : vector<1x8xf32> to vector<8x8xf32>
    %49 = arith.addf %47, %48 : vector<8x8xf32>
    %cst_20 = arith.constant dense<0xFF800000> : vector<8xf32>
    %50 = vector.multi_reduction <maximumf>, %49, %cst_20 [1] : vector<8x8xf32> to vector<8xf32>
    %51 = vector.shape_cast %50 : vector<8xf32> to vector<8x1xf32>
    %52 = vector.broadcast %51 : vector<8x1xf32> to vector<8x8xf32>
    %53 = arith.subf %49, %52 : vector<8x8xf32>
    %54 = math.exp %53 : vector<8x8xf32>
    %cst_21 = arith.constant dense<0.000000e+00> : vector<8xf32>
    %55 = vector.multi_reduction <add>, %54, %cst_21 [1] : vector<8x8xf32> to vector<8xf32>
    %56 = vector.shape_cast %55 : vector<8xf32> to vector<8x1xf32>
    %57 = tpu.reciprocal %56 {approx = true} : vector<8x1xf32> -> vector<8x1xf32>
    %58 = vector.broadcast %57 : vector<8x1xf32> to vector<8x8xf32>
    %59 = arith.mulf %54, %58 : vector<8x8xf32>
    %60 = arith.truncf %59 : vector<8x8xf32> to vector<8x8xbf16>
    %cst_22 = arith.constant dense<0.000000e+00> : vector<8x128xf32>
    %61 = tpu.matmul %60, %43, %cst_22 {dimension_numbers = #tpu.dot_dimension_numbers<[1], [0], [0], [1], [0, 0, 1, 1], [], []>} : vector<8x8xbf16>, vector<8x128xbf16>, vector<8x128xf32> -> vector<8x128xf32>
    %62 = arith.truncf %61 : vector<8x128xf32> to vector<8x128xbf16>
    %c0_23 = arith.constant 0 : index
    %c128 = arith.constant 128 : index
    %63 = vector.load %arg21[%c0_23, %c128] : memref<8x256xbf16, #tpu.memory_space<vmem>>, vector<8x128xbf16>
    tpu.vector_store %arg21[%c0_23, %c128], %62 {strides = array<i32>} : memref<8x256xbf16, #tpu.memory_space<vmem>>, vector<8x128xbf16>,
    %c0_24 = arith.constant 0 : index
    %c0_25 = arith.constant 0 : index
    %64 = vector.load %arg21[%c0_24, %c0_25] : memref<8x256xbf16, #tpu.memory_space<vmem>>, vector<8x256xbf16>
    %c0_26 = arith.constant 0 : index
    %c0_27 = arith.constant 0 : index
    %c0_28 = arith.constant 0 : index
    %65 = vector.load %arg8[%c0_26, %c0_27, %c0_28] : memref<1x256x256xbf16, #tpu.memory_space<vmem>>, vector<1x256x256xbf16>
    %66 = vector.shape_cast %65 : vector<1x256x256xbf16> to vector<256x256xbf16>
    %cst_29 = arith.constant dense<0.000000e+00> : vector<8x256xf32>
    %67 = tpu.matmul %64, %66, %cst_29 {dimension_numbers = #tpu.dot_dimension_numbers<[1], [0], [0], [1], [0, 0, 1, 1], [], []>} : vector<8x256xbf16>, vector<256x256xbf16>, vector<8x256xf32> -> vector<8x256xf32>
    %c0_30 = arith.constant 0 : index
    %c0_31 = arith.constant 0 : index
    %c0_32 = arith.constant 0 : index
    %68 = vector.load %arg9[%c0_30, %c0_31, %c0_32] : memref<1x1x256xf32, #tpu.memory_space<vmem>>, vector<1x1x256xf32>
    %69 = vector.shape_cast %68 : vector<1x1x256xf32> to vector<1x256xf32>
    %70 = vector.broadcast %69 : vector<1x256xf32> to vector<8x256xf32>
    %71 = arith.addf %67, %70 : vector<8x256xf32>
    %72 = arith.addf %3, %71 : vector<8x256xf32>
    %c0_33 = arith.constant 0 : index
    %c0_34 = arith.constant 0 : index
    %c0_35 = arith.constant 0 : index
    %73 = vector.load %arg10[%c0_33, %c0_34, %c0_35] : memref<1x1x256xf32, #tpu.memory_space<vmem>>, vector<1x1x256xf32>
    %74 = vector.shape_cast %73 : vector<1x1x256xf32> to vector<1x256xf32>
    %c0_36 = arith.constant 0 : index
    %c0_37 = arith.constant 0 : index
    %c0_38 = arith.constant 0 : index
    %75 = vector.load %arg11[%c0_36, %c0_37, %c0_38] : memref<1x1x256xf32, #tpu.memory_space<vmem>>, vector<1x1x256xf32>
    %76 = vector.shape_cast %75 : vector<1x1x256xf32> to vector<1x256xf32>
    %cst_39 = arith.constant dense<0.000000e+00> : vector<8xf32>
    %77 = vector.multi_reduction <add>, %72, %cst_39 [1] : vector<8x256xf32> to vector<8xf32>
    %78 = vector.shape_cast %77 : vector<8xf32> to vector<8x1xf32>
    %cst_40 = arith.constant 2.560000e+02 : f32
    %79 = vector.broadcast %cst_40 : f32 to vector<8x1xf32>
    %80 = arith.divf %78, %79 : vector<8x1xf32>
    %81 = vector.broadcast %80 : vector<8x1xf32> to vector<8x256xf32>
    %82 = arith.subf %72, %81 : vector<8x256xf32>
    %83 = arith.mulf %82, %82 : vector<8x256xf32>
    %cst_41 = arith.constant dense<0.000000e+00> : vector<8xf32>
    %84 = vector.multi_reduction <add>, %83, %cst_41 [1] : vector<8x256xf32> to vector<8xf32>
    %85 = vector.shape_cast %84 : vector<8xf32> to vector<8x1xf32>
    %cst_42 = arith.constant 2.560000e+02 : f32
    %86 = vector.broadcast %cst_42 : f32 to vector<8x1xf32>
    %87 = arith.divf %85, %86 : vector<8x1xf32>
    %88 = vector.broadcast %80 : vector<8x1xf32> to vector<8x256xf32>
    %89 = arith.subf %72, %88 : vector<8x256xf32>
    %cst_43 = arith.constant 9.99999996E-13 : f32
    %90 = vector.broadcast %cst_43 : f32 to vector<8x1xf32>
    %91 = arith.addf %87, %90 : vector<8x1xf32>
    %92 = math.rsqrt %91 : vector<8x1xf32>
    %93 = vector.broadcast %92 : vector<8x1xf32> to vector<8x256xf32>
    %94 = arith.mulf %89, %93 : vector<8x256xf32>
    %95 = vector.broadcast %74 : vector<1x256xf32> to vector<8x256xf32>
    %96 = arith.mulf %94, %95 : vector<8x256xf32>
    %97 = vector.broadcast %76 : vector<1x256xf32> to vector<8x256xf32>
    %98 = arith.addf %96, %97 : vector<8x256xf32>
    %99 = arith.truncf %98 : vector<8x256xf32> to vector<8x256xbf16>
    %c0_44 = arith.constant 0 : index
    %c0_45 = arith.constant 0 : index
    %c0_46 = arith.constant 0 : index
    %100 = vector.load %arg12[%c0_44, %c0_45, %c0_46] : memref<1x256x512xbf16, #tpu.memory_space<vmem>>, vector<1x256x512xbf16>
    %101 = vector.shape_cast %100 : vector<1x256x512xbf16> to vector<256x512xbf16>
    %cst_47 = arith.constant dense<0.000000e+00> : vector<8x512xf32>
    %102 = tpu.matmul %99, %101, %cst_47 {dimension_numbers = #tpu.dot_dimension_numbers<[1], [0], [0], [1], [0, 0, 1, 1], [], []>} : vector<8x256xbf16>, vector<256x512xbf16>, vector<8x512xf32> -> vector<8x512xf32>
    %c0_48 = arith.constant 0 : index
    %c0_49 = arith.constant 0 : index
    %c0_50 = arith.constant 0 : index
    %103 = vector.load %arg13[%c0_48, %c0_49, %c0_50] : memref<1x1x512xf32, #tpu.memory_space<vmem>>, vector<1x1x512xf32>
    %104 = vector.shape_cast %103 : vector<1x1x512xf32> to vector<1x512xf32>
    %105 = vector.broadcast %104 : vector<1x512xf32> to vector<8x512xf32>
    %106 = arith.addf %102, %105 : vector<8x512xf32>
    %107 = arith.mulf %106, %106 : vector<8x512xf32>
    %108 = arith.mulf %106, %107 : vector<8x512xf32>
    %cst_51 = arith.constant 4.471500e-02 : f32
    %109 = vector.broadcast %cst_51 : f32 to vector<8x512xf32>
    %110 = arith.mulf %109, %108 : vector<8x512xf32>
    %111 = arith.addf %106, %110 : vector<8x512xf32>
    %cst_52 = arith.constant 0.797884583 : f32
    %112 = vector.broadcast %cst_52 : f32 to vector<8x512xf32>
    %113 = arith.mulf %112, %111 : vector<8x512xf32>
    %114 = math.tanh %113 : vector<8x512xf32>
    %cst_53 = arith.constant 1.000000e+00 : f32
    %115 = vector.broadcast %cst_53 : f32 to vector<8x512xf32>
    %116 = arith.addf %115, %114 : vector<8x512xf32>
    %cst_54 = arith.constant 5.000000e-01 : f32
    %117 = vector.broadcast %cst_54 : f32 to vector<8x512xf32>
    %118 = arith.mulf %117, %116 : vector<8x512xf32>
    %119 = arith.mulf %106, %118 : vector<8x512xf32>
    %120 = arith.truncf %119 : vector<8x512xf32> to vector<8x512xbf16>
    %c0_55 = arith.constant 0 : index
    %c0_56 = arith.constant 0 : index
    %c0_57 = arith.constant 0 : index
    %121 = vector.load %arg14[%c0_55, %c0_56, %c0_57] : memref<1x512x256xbf16, #tpu.memory_space<vmem>>, vector<1x512x256xbf16>
    %122 = vector.shape_cast %121 : vector<1x512x256xbf16> to vector<512x256xbf16>
    %cst_58 = arith.constant dense<0.000000e+00> : vector<8x256xf32>
    %123 = tpu.matmul %120, %122, %cst_58 {dimension_numbers = #tpu.dot_dimension_numbers<[1], [0], [0], [1], [0, 0, 1, 1], [], []>} : vector<8x512xbf16>, vector<512x256xbf16>, vector<8x256xf32> -> vector<8x256xf32>
    %c0_59 = arith.constant 0 : index
    %c0_60 = arith.constant 0 : index
    %c0_61 = arith.constant 0 : index
    %124 = vector.load %arg15[%c0_59, %c0_60, %c0_61] : memref<1x1x256xf32, #tpu.memory_space<vmem>>, vector<1x1x256xf32>
    %125 = vector.shape_cast %124 : vector<1x1x256xf32> to vector<1x256xf32>
    %126 = vector.broadcast %125 : vector<1x256xf32> to vector<8x256xf32>
    %127 = arith.addf %123, %126 : vector<8x256xf32>
    %128 = arith.addf %98, %127 : vector<8x256xf32>
    %c0_62 = arith.constant 0 : index
    %c0_63 = arith.constant 0 : index
    %c0_64 = arith.constant 0 : index
    %129 = vector.load %arg16[%c0_62, %c0_63, %c0_64] : memref<1x1x256xf32, #tpu.memory_space<vmem>>, vector<1x1x256xf32>
    %130 = vector.shape_cast %129 : vector<1x1x256xf32> to vector<1x256xf32>
    %c0_65 = arith.constant 0 : index
    %c0_66 = arith.constant 0 : index
    %c0_67 = arith.constant 0 : index
    %131 = vector.load %arg17[%c0_65, %c0_66, %c0_67] : memref<1x1x256xf32, #tpu.memory_space<vmem>>, vector<1x1x256xf32>
    %132 = vector.shape_cast %131 : vector<1x1x256xf32> to vector<1x256xf32>
    %cst_68 = arith.constant dense<0.000000e+00> : vector<8xf32>
    %133 = vector.multi_reduction <add>, %128, %cst_68 [1] : vector<8x256xf32> to vector<8xf32>
    %134 = vector.shape_cast %133 : vector<8xf32> to vector<8x1xf32>
    %cst_69 = arith.constant 2.560000e+02 : f32
    %135 = vector.broadcast %cst_69 : f32 to vector<8x1xf32>
    %136 = arith.divf %134, %135 : vector<8x1xf32>
    %137 = vector.broadcast %136 : vector<8x1xf32> to vector<8x256xf32>
    %138 = arith.subf %128, %137 : vector<8x256xf32>
    %139 = arith.mulf %138, %138 : vector<8x256xf32>
    %cst_70 = arith.constant dense<0.000000e+00> : vector<8xf32>
    %140 = vector.multi_reduction <add>, %139, %cst_70 [1] : vector<8x256xf32> to vector<8xf32>
    %141 = vector.shape_cast %140 : vector<8xf32> to vector<8x1xf32>
    %cst_71 = arith.constant 2.560000e+02 : f32
    %142 = vector.broadcast %cst_71 : f32 to vector<8x1xf32>
    %143 = arith.divf %141, %142 : vector<8x1xf32>
    %144 = vector.broadcast %136 : vector<8x1xf32> to vector<8x256xf32>
    %145 = arith.subf %128, %144 : vector<8x256xf32>
    %cst_72 = arith.constant 9.99999996E-13 : f32
    %146 = vector.broadcast %cst_72 : f32 to vector<8x1xf32>
    %147 = arith.addf %143, %146 : vector<8x1xf32>
    %148 = math.rsqrt %147 : vector<8x1xf32>
    %149 = vector.broadcast %148 : vector<8x1xf32> to vector<8x256xf32>
    %150 = arith.mulf %145, %149 : vector<8x256xf32>
    %151 = vector.broadcast %130 : vector<1x256xf32> to vector<8x256xf32>
    %152 = arith.mulf %150, %151 : vector<8x256xf32>
    %153 = vector.broadcast %132 : vector<1x256xf32> to vector<8x256xf32>
    %154 = arith.addf %152, %153 : vector<8x256xf32>
    %c0_73 = arith.constant 0 : index
    %c0_74 = arith.constant 0 : index
    %155 = vector.load %arg20[%c0_73, %c0_74] : memref<8x256xf32, #tpu.memory_space<vmem>>, vector<8x256xf32>
    tpu.vector_store %arg20[%c0_73, %c0_74], %154 {strides = array<i32>} : memref<8x256xf32, #tpu.memory_space<vmem>>, vector<8x256xf32>,
    %c1_i32 = arith.constant 1 : i32
    %156 = arith.cmpi eq, %arg1, %c1_i32 : i32
    %157 = arith.extui %156 : i1 to i32
    %c0_i32_75 = arith.constant 0 : i32
    %158 = arith.cmpi ne, %157, %c0_i32_75 : i32
    scf.if %158 {
      %c0_76 = arith.constant 0 : index
      %c0_77 = arith.constant 0 : index
      %c0_78 = arith.constant 0 : index
      %159 = vector.load %arg18[%c0_76, %c0_77, %c0_78] : memref<1x8x256xf32, #tpu.memory_space<vmem>>, vector<1x8x256xf32>
      %160 = vector.shape_cast %159 : vector<1x8x256xf32> to vector<8x256xf32>
      %161 = vector.shape_cast %154 : vector<8x256xf32> to vector<1x8x256xf32>
      tpu.vector_store %arg18[%c0_76, %c0_77, %c0_78], %161 {strides = array<i32>} : memref<1x8x256xf32, #tpu.memory_space<vmem>>, vector<1x8x256xf32>,
      %cst_79 = arith.constant dense<0.000000e+00> : vector<256xf32>
      %162 = vector.multi_reduction <add>, %154, %cst_79 [0] : vector<8x256xf32> to vector<256xf32>
      %163 = vector.shape_cast %162 : vector<256xf32> to vector<1x256xf32>
      %cst_80 = arith.constant 8.000000e+00 : f32
      %164 = vector.broadcast %cst_80 : f32 to vector<1x256xf32>
      %165 = arith.divf %163, %164 : vector<1x256xf32>
      %c0_81 = arith.constant 0 : index
      %c0_82 = arith.constant 0 : index
      %c0_83 = arith.constant 0 : index
      %166 = vector.load %arg19[%c0_81, %c0_82, %c0_83] : memref<1x1x256xf32, #tpu.memory_space<vmem>>, vector<1x1x256xf32>
      %167 = vector.shape_cast %166 : vector<1x1x256xf32> to vector<1x256xf32>
      %168 = vector.shape_cast %165 : vector<1x256xf32> to vector<1x1x256xf32>
      tpu.vector_store %arg19[%c0_81, %c0_82, %c0_83], %168 {strides = array<i32>} : memref<1x1x256xf32, #tpu.memory_space<vmem>>, vector<1x1x256xf32>,
    } else {
    }
    return
  }
  func.func @transform_0(%arg0: i32, %arg1: i32) -> (i32, i32, i32) {
    %c0_i32 = arith.constant 0 : i32
    %c0_i32_0 = arith.constant 0 : i32
    %c0_i32_1 = arith.constant 0 : i32
    return %arg0, %c0_i32, %c0_i32_0 : i32, i32, i32
  }
  func.func @transform_1(%arg0: i32, %arg1: i32) -> (i32, i32, i32) {
    %c0_i32 = arith.constant 0 : i32
    %c0_i32_0 = arith.constant 0 : i32
    %c0_i32_1 = arith.constant 0 : i32
    return %arg0, %c0_i32, %c0_i32_0 : i32, i32, i32
  }
  func.func @transform_2(%arg0: i32, %arg1: i32) -> (i32, i32) {
    %c0_i32 = arith.constant 0 : i32
    %c0_i32_0 = arith.constant 0 : i32
    %c0_i32_1 = arith.constant 0 : i32
    return %c0_i32, %c0_i32_0 : i32, i32
  }
  func.func @transform_3(%arg0: i32, %arg1: i32) -> (i32, i32) {
    %c0_i32 = arith.constant 0 : i32
    %c0_i32_0 = arith.constant 0 : i32
    %c0_i32_1 = arith.constant 0 : i32
    return %c0_i32, %c0_i32_0 : i32, i32
  }
  func.func @transform_4(%arg0: i32, %arg1: i32) -> (i32, i32, i32) {
    %c0_i32 = arith.constant 0 : i32
    %c0_i32_0 = arith.constant 0 : i32
    %c0_i32_1 = arith.constant 0 : i32
    return %arg1, %c0_i32, %c0_i32_0 : i32, i32, i32
  }
  func.func @transform_5(%arg0: i32, %arg1: i32) -> (i32, i32, i32) {
    %c0_i32 = arith.constant 0 : i32
    %c0_i32_0 = arith.constant 0 : i32
    %c0_i32_1 = arith.constant 0 : i32
    return %arg1, %c0_i32, %c0_i32_0 : i32, i32, i32
  }
  func.func @transform_6(%arg0: i32, %arg1: i32) -> (i32, i32, i32) {
    %c0_i32 = arith.constant 0 : i32
    %c0_i32_0 = arith.constant 0 : i32
    %c0_i32_1 = arith.constant 0 : i32
    return %arg1, %c0_i32, %c0_i32_0 : i32, i32, i32
  }
  func.func @transform_7(%arg0: i32, %arg1: i32) -> (i32, i32, i32) {
    %c0_i32 = arith.constant 0 : i32
    %c0_i32_0 = arith.constant 0 : i32
    %c0_i32_1 = arith.constant 0 : i32
    return %arg1, %c0_i32, %c0_i32_0 : i32, i32, i32
  }
  func.func @transform_8(%arg0: i32, %arg1: i32) -> (i32, i32, i32) {
    %c0_i32 = arith.constant 0 : i32
    %c0_i32_0 = arith.constant 0 : i32
    %c0_i32_1 = arith.constant 0 : i32
    return %arg1, %c0_i32, %c0_i32_0 : i32, i32, i32
  }
  func.func @transform_9(%arg0: i32, %arg1: i32) -> (i32, i32, i32) {
    %c0_i32 = arith.constant 0 : i32
    %c0_i32_0 = arith.constant 0 : i32
    %c0_i32_1 = arith.constant 0 : i32
    return %arg1, %c0_i32, %c0_i32_0 : i32, i32, i32
  }
  func.func @transform_10(%arg0: i32, %arg1: i32) -> (i32, i32, i32) {
    %c0_i32 = arith.constant 0 : i32
    %c0_i32_0 = arith.constant 0 : i32
    %c0_i32_1 = arith.constant 0 : i32
    return %arg1, %c0_i32, %c0_i32_0 : i32, i32, i32
  }
  func.func @transform_11(%arg0: i32, %arg1: i32) -> (i32, i32, i32) {
    %c0_i32 = arith.constant 0 : i32
    %c0_i32_0 = arith.constant 0 : i32
    %c0_i32_1 = arith.constant 0 : i32
    return %arg1, %c0_i32, %c0_i32_0 : i32, i32, i32
  }
  func.func @transform_12(%arg0: i32, %arg1: i32) -> (i32, i32, i32) {
    %c0_i32 = arith.constant 0 : i32
    %c0_i32_0 = arith.constant 0 : i32
    %c0_i32_1 = arith.constant 0 : i32
    return %arg1, %c0_i32, %c0_i32_0 : i32, i32, i32
  }
  func.func @transform_13(%arg0: i32, %arg1: i32) -> (i32, i32, i32) {
    %c0_i32 = arith.constant 0 : i32
    %c0_i32_0 = arith.constant 0 : i32
    %c0_i32_1 = arith.constant 0 : i32
    return %arg1, %c0_i32, %c0_i32_0 : i32, i32, i32
  }
  func.func @transform_14(%arg0: i32, %arg1: i32) -> (i32, i32, i32) {
    %c0_i32 = arith.constant 0 : i32
    %c0_i32_0 = arith.constant 0 : i32
    %c0_i32_1 = arith.constant 0 : i32
    return %arg1, %c0_i32, %c0_i32_0 : i32, i32, i32
  }
  func.func @transform_15(%arg0: i32, %arg1: i32) -> (i32, i32, i32) {
    %c0_i32 = arith.constant 0 : i32
    %c0_i32_0 = arith.constant 0 : i32
    %c0_i32_1 = arith.constant 0 : i32
    return %arg1, %c0_i32, %c0_i32_0 : i32, i32, i32
  }
  func.func @transform_16(%arg0: i32, %arg1: i32) -> (i32, i32, i32) {
    %c0_i32 = arith.constant 0 : i32
    %c0_i32_0 = arith.constant 0 : i32
    %c0_i32_1 = arith.constant 0 : i32
    return %arg0, %c0_i32, %c0_i32_0 : i32, i32, i32
  }
  func.func @transform_17(%arg0: i32, %arg1: i32) -> (i32, i32, i32) {
    %c0_i32 = arith.constant 0 : i32
    %c0_i32_0 = arith.constant 0 : i32
    %c0_i32_1 = arith.constant 0 : i32
    return %arg0, %c0_i32, %c0_i32_0 : i32, i32, i32
  }
}

</mosaic_0001>

<llo_original>
// kernel: bert_encoder_seq_forward.1
$region0: #{bert_encoder_seq_forward.1}
  #allocation0 [shape = 'u32[]', space=smem, size = 0x4, offset = 0x4, fixed_abs, tag = 'smem constant byte address 0x4 - core index']
  #allocation1 [shape = 'u32[144,128]{1,0:T(1,128)}', space=vmem, size = 0x12000, scoped, tag = 'internal scratch']
  #allocation2 [shape = 'f32[8,256]{1,0:T(8,128)}', space=vmem, size = 0x2000, scoped, tag = 'scratch operand']
  #allocation3 [shape = 'bf16[8,256]{1,0:T(8,128)(2,1)}', space=vmem, size = 0x1000, scoped, tag = 'scratch operand']
  %s0 = inlined_call_operand.vmem [shape: f32[2,8,256], index: 0, kind: input, shape index: {}]
  %s1 = inlined_call_operand.vmem [shape: f32[2,1,8], index: 1, kind: input, shape index: {}]
  %s2 = inlined_call_operand.vmem [shape: f32[1,256], index: 2, kind: input, shape index: {}]
  %s3 = inlined_call_operand.vmem [shape: f32[1,256], index: 3, kind: input, shape index: {}]
  %s4 = inlined_call_operand.hbm [shape: bf16[2,256,768], index: 4, kind: input, shape index: {}]
  %s5 = inlined_call_operand.vmem [shape: f32[2,1,768], index: 5, kind: input, shape index: {}]
  %s6 = inlined_call_operand.hbm [shape: bf16[2,256,256], index: 6, kind: input, shape index: {}]
  %s7 = inlined_call_operand.vmem [shape: f32[2,1,256], index: 7, kind: input, shape index: {}]
  %s8 = inlined_call_operand.vmem [shape: f32[2,1,256], index: 8, kind: input, shape index: {}]
  %s9 = inlined_call_operand.vmem [shape: f32[2,1,256], index: 9, kind: input, shape index: {}]
  %s10 = inlined_call_operand.hbm [shape: bf16[2,256,512], index: 10, kind: input, shape index: {}]
  %s11 = inlined_call_operand.vmem [shape: f32[2,1,512], index: 11, kind: input, shape index: {}]
  %s12 = inlined_call_operand.hbm [shape: bf16[2,512,256], index: 12, kind: input, shape index: {}]
  %s13 = inlined_call_operand.vmem [shape: f32[2,1,256], index: 13, kind: input, shape index: {}]
  %s14 = inlined_call_operand.vmem [shape: f32[2,1,256], index: 14, kind: input, shape index: {}]
  %s15 = inlined_call_operand.vmem [shape: f32[2,1,256], index: 15, kind: input, shape index: {}]
  %s16 = inlined_call_operand.vmem [shape: f32[2,8,256], index: 16, kind: output, shape index: {0}]
  %s17 = inlined_call_operand.vmem [shape: f32[2,1,256], index: 17, kind: output, shape index: {1}]
  %18 = xla_tuple %s16, %s17
  %s19 = sld [smem:[#allocation0]]
  $region129: #{bert_encoder_seq_forward.1} parent=0
    _
  %s21 = ssub.s32 1, %s19
  %s22 = scalar_select 0, %s21, %s19
  $region1: #{bert_encoder_seq_forward.1} parent=0
    #allocation4 [shape = 'u8[786432]{0}', space=vmem, size = 0xc0000, scoped, tag = 'input window, operand 4']
    #allocation5 [shape = 's32[2]{0}', space=sflag, size = 0x8, scoped, tag = 'scoped memory for bert_encoder_seq_forward.1']
    #allocation6 [shape = 'u8[262144]{0}', space=vmem, size = 0x40000, scoped, tag = 'input window, operand 6']
    #allocation7 [shape = 's32[2]{0}', space=sflag, size = 0x8, scoped, tag = 'scoped memory for bert_encoder_seq_forward.1']
    #allocation8 [shape = 'u8[524288]{0}', space=vmem, size = 0x80000, scoped, tag = 'input window, operand 10']
    #allocation9 [shape = 'u8[524288]{0}', space=vmem, size = 0x80000, scoped, tag = 'input window, operand 12']
    #allocation10 [shape = 's32[2]{0}', space=sflag, size = 0x8, scoped, tag = 'scoped memory for bert_encoder_seq_forward.1']
    %23 = vsyncpa [#allocation5], 0
    %s24 = scalar_lea.sflag [#allocation5], 1
    %25 = vsyncpa %s24, 0
    %26 = vsyncpa [#allocation7], 0
    %s27 = scalar_lea.sflag [#allocation7], 1
    %28 = vsyncpa %s27, 0
    %29 = vsyncpa [#allocation10], 0
    %s30 = scalar_lea.sflag [#allocation10], 1
    %31 = vsyncpa %s30, 0
    loop: start=0, step=1, limit=6
    $region2: #{bert_encoder_seq_forward.1} parent=1 // loop_pre_header
      _
    $region3: #{bert_encoder_seq_forward.1} parent=1 // loop_header
      %s33 = sphi 0, %s37
      %p34 = scmp.ge.s32.totalorder %s33, 6
      %s40 = sphi 0, %s52
      %s41 = sphi 0, %s48
      %s42 = sphi 0, %s40
      %s43 = sphi 0, %s41
      %s44 = sphi 0, %s42
      %s45 = sphi 0, %s43
      %s55 = sphi 0, %s57
      %s58 = sphi 0, %s55
      %s59 = sphi 0, %s58
      %s75 = sphi 0, %s59
      %s81 = sphi 0, %s83
      %s84 = sphi 0, %s81
      %s85 = sphi 0, %s84
      %s101 = sphi 0, %s85
      %s105 = sphi 0, %s105
      %s107 = sphi 0, %s105
      %s108 = sphi 0, %s107
      %s122 = sphi 0, %s108
      %s126 = sphi 0, %s126
      %s128 = sphi 0, %s126
      %s129 = sphi 0, %s128
      %s143 = sphi 0, %s129
      %s149 = sphi 0, %s151
      %s152 = sphi 0, %s149
      %s153 = sphi 0, %s152
      %s169 = sphi 0, %s153
      %s175 = sphi 0, %s177
      %s178 = sphi 0, %s175
      %s179 = sphi 0, %s178
      %s195 = sphi 0, %s179
      %s201 = sphi 0, %s203
      %s204 = sphi 0, %s201
      %s205 = sphi 0, %s204
      %s221 = sphi 0, %s205
      %s227 = sphi 0, %s229
      %s230 = sphi 0, %s227
      %s231 = sphi 0, %s230
      %s247 = sphi 0, %s231
      %s253 = sphi 0, %s255
      %s256 = sphi 0, %s253
      %s257 = sphi 0, %s256
      %s273 = sphi 0, %s257
      %s279 = sphi 0, %s281
      %s282 = sphi 0, %s279
      %s283 = sphi 0, %s282
      %s299 = sphi 0, %s283
      %s305 = sphi 0, %s307
      %s308 = sphi 0, %s305
      %s309 = sphi 0, %s308
      %s325 = sphi 0, %s309
      %s331 = sphi 0, %s333
      %s334 = sphi 0, %s331
      %s335 = sphi 0, %s334
      %s351 = sphi 0, %s335
      %s357 = sphi 0, %s359
      %s360 = sphi 0, %s357
      %s361 = sphi 0, %s360
      %s377 = sphi 0, %s361
      %s383 = sphi 0, %s385
      %s386 = sphi 0, %s383
      %s387 = sphi 0, %s386
      %s403 = sphi 0, %s387
      %s409 = sphi 0, %s411
      %s412 = sphi 0, %s409
      %s413 = sphi 0, %s412
      %s429 = sphi 0, %s413
      %s435 = sphi 0, %s437
      %s438 = sphi 0, %s435
      %s439 = sphi 0, %s438
      %s455 = sphi 0, %s439
      %s461 = sphi 0, %s463
      %s464 = sphi 0, %s461
      %s465 = sphi 0, %s464
      %s481 = sphi 0, %s465
      %s487 = sphi 0, %s489
      %s490 = sphi 0, %s487
      %s491 = sphi 0, %s490
      %s507 = sphi 0, %s491
    $region4: #{bert_encoder_seq_forward.1} parent=1 // loop_header_branch
      %36 = sbr.rel (%p34) target = $region8
    $region5: #{bert_encoder_seq_forward.1} parent=1 // loop_body
      %s38 = ssub.s32 %s33, 1
      %s39 = ssub.s32 %s33, 2
      %s46 = sadd.s32 1, %s41
      %p47 = scmp.ge.s32.totalorder %s46, 2
      %s48 = scalar_select %p47, 0, %s46
      %s49 = sadd.s32 1, %s40
      %s50 = scalar_select %p47, %s49, %s40
      %p51 = scmp.ge.s32.totalorder %s50, 2
      %s52 = scalar_select %p51, 0, %s50
      %s53 = ssub.s32 %s40, %s52
      %p54 = scmp.eq.s32.totalorder %s53, 0
      %s56 = sadd.s32 %s55, 1
      %s57 = scalar_select %p54, %s55, %s56
      %p60 = pneg %p54
      %p61 = scmp.eq.s32.totalorder %s33, 3
      %p62 = por %p60, %p61
      %p63 = scmp.ne.s32.totalorder %s55, %s58
      %p64 = scmp.eq.s32.totalorder %s33, 0
      %p65 = por %p63, %p64
      %p66 = scmp.ne.s32.totalorder %s55, %s58
      %p67 = scmp.eq.s32.totalorder %s38, 3
      %p68 = por %p66, %p67
      %p69 = scmp.ne.s32.totalorder %s58, %s59
      %p70 = scmp.eq.s32.totalorder %s38, 0
      %p71 = por %p69, %p70
      %p72 = scmp.ne.s32.totalorder %s58, %s59
      %p73 = scmp.eq.s32.totalorder %s39, 3
      %p74 = por %p72, %p73
      %p76 = scmp.ne.s32.totalorder %s59, %s75
      %p77 = scmp.eq.s32.totalorder %s39, 0
      %p78 = por %p76, %p77
      %s79 = ssub.s32 %s40, %s52
      %p80 = scmp.eq.s32.totalorder %s79, 0
      %s82 = sadd.s32 %s81, 1
      %s83 = scalar_select %p80, %s81, %s82
      %p86 = pneg %p80
      %p87 = scmp.eq.s32.totalorder %s33, 3
      %p88 = por %p86, %p87
      %p89 = scmp.ne.s32.totalorder %s81, %s84
      %p90 = scmp.eq.s32.totalorder %s33, 0
      %p91 = por %p89, %p90
      %p92 = scmp.ne.s32.totalorder %s81, %s84
      %p93 = scmp.eq.s32.totalorder %s38, 3
      %p94 = por %p92, %p93
      %p95 = scmp.ne.s32.totalorder %s84, %s85
      %p96 = scmp.eq.s32.totalorder %s38, 0
      %p97 = por %p95, %p96
      %p98 = scmp.ne.s32.totalorder %s84, %s85
      %p99 = scmp.eq.s32.totalorder %s39, 3
      %p100 = por %p98, %p99
      %p102 = scmp.ne.s32.totalorder %s85, %s101
      %p103 = scmp.eq.s32.totalorder %s39, 0
      %p104 = por %p102, %p103
      %s106 = sadd.s32 %s105, 1
      %p109 = scmp.eq.s32.totalorder %s33, 3
      %p110 = scmp.ne.s32.totalorder %s105, %s107
      %p111 = scmp.eq.s32.totalorder %s33, 0
      %p112 = por %p110, %p111
      %p113 = scmp.ne.s32.totalorder %s105, %s107
      %p114 = scmp.eq.s32.totalorder %s38, 3
      %p115 = por %p113, %p114
      %p116 = scmp.ne.s32.totalorder %s107, %s108
      %p117 = scmp.eq.s32.totalorder %s38, 0
      %p118 = por %p116, %p117
      %p119 = scmp.ne.s32.totalorder %s107, %s108
      %p120 = scmp.eq.s32.totalorder %s39, 3
      %p121 = por %p119, %p120
      %p123 = scmp.ne.s32.totalorder %s108, %s122
      %p124 = scmp.eq.s32.totalorder %s39, 0
      %p125 = por %p123, %p124
      %s127 = sadd.s32 %s126, 1
      %p130 = scmp.eq.s32.totalorder %s33, 3
      %p131 = scmp.ne.s32.totalorder %s126, %s128
      %p132 = scmp.eq.s32.totalorder %s33, 0
      %p133 = por %p131, %p132
      %p134 = scmp.ne.s32.totalorder %s126, %s128
      %p135 = scmp.eq.s32.totalorder %s38, 3
      %p136 = por %p134, %p135
      %p137 = scmp.ne.s32.totalorder %s128, %s129
      %p138 = scmp.eq.s32.totalorder %s38, 0
      %p139 = por %p137, %p138
      %p140 = scmp.ne.s32.totalorder %s128, %s129
      %p141 = scmp.eq.s32.totalorder %s39, 3
      %p142 = por %p140, %p141
      %p144 = scmp.ne.s32.totalorder %s129, %s143
      %p145 = scmp.eq.s32.totalorder %s39, 0
      %p146 = por %p144, %p145
      %s147 = ssub.s32 %s41, %s48
      %p148 = scmp.eq.s32.totalorder %s147, 0
      %s150 = sadd.s32 %s149, 1
      %s151 = scalar_select %p148, %s149, %s150
      %p154 = pneg %p148
      %p155 = scmp.eq.s32.totalorder %s33, 3
      %p156 = por %p154, %p155
      %p157 = scmp.ne.s32.totalorder %s149, %s152
      %p158 = scmp.eq.s32.totalorder %s33, 0
      %p159 = por %p157, %p158
      %p160 = scmp.ne.s32.totalorder %s149, %s152
      %p161 = scmp.eq.s32.totalorder %s38, 3
      %p162 = por %p160, %p161
      %p163 = scmp.ne.s32.totalorder %s152, %s153
      %p164 = scmp.eq.s32.totalorder %s38, 0
      %p165 = por %p163, %p164
      %p166 = scmp.ne.s32.totalorder %s152, %s153
      %p167 = scmp.eq.s32.totalorder %s39, 3
      %p168 = por %p166, %p167
      %p170 = scmp.ne.s32.totalorder %s153, %s169
      %p171 = scmp.eq.s32.totalorder %s39, 0
      %p172 = por %p170, %p171
      %s173 = ssub.s32 %s41, %s48
      %p174 = scmp.eq.s32.totalorder %s173, 0
      %s176 = sadd.s32 %s175, 1
      %s177 = scalar_select %p174, %s175, %s176
      %p180 = pneg %p174
      %p181 = scmp.eq.s32.totalorder %s33, 3
      %p182 = por %p180, %p181
      %p183 = scmp.ne.s32.totalorder %s175, %s178
      %p184 = scmp.eq.s32.totalorder %s33, 0
      %p185 = por %p183, %p184
      %p186 = scmp.ne.s32.totalorder %s175, %s178
      %p187 = scmp.eq.s32.totalorder %s38, 3
      %p188 = por %p186, %p187
      %p189 = scmp.ne.s32.totalorder %s178, %s179
      %p190 = scmp.eq.s32.totalorder %s38, 0
      %p191 = por %p189, %p190
      %p192 = scmp.ne.s32.totalorder %s178, %s179
      %p193 = scmp.eq.s32.totalorder %s39, 3
      %p194 = por %p192, %p193
      %p196 = scmp.ne.s32.totalorder %s179, %s195
      %p197 = scmp.eq.s32.totalorder %s39, 0
      %p198 = por %p196, %p197
      %s199 = ssub.s32 %s41, %s48
      %p200 = scmp.eq.s32.totalorder %s199, 0
      %s202 = sadd.s32 %s201, 1
      %s203 = scalar_select %p200, %s201, %s202
      %p206 = pneg %p200
      %p207 = scmp.eq.s32.totalorder %s33, 3
      %p208 = por %p206, %p207
      %p209 = scmp.ne.s32.totalorder %s201, %s204
      %p210 = scmp.eq.s32.totalorder %s33, 0
      %p211 = por %p209, %p210
      %p212 = scmp.ne.s32.totalorder %s201, %s204
      %p213 = scmp.eq.s32.totalorder %s38, 3
      %p214 = por %p212, %p213
      %p215 = scmp.ne.s32.totalorder %s204, %s205
      %p216 = scmp.eq.s32.totalorder %s38, 0
      %p217 = por %p215, %p216
      %p218 = scmp.ne.s32.totalorder %s204, %s205
      %p219 = scmp.eq.s32.totalorder %s39, 3
      %p220 = por %p218, %p219
      %p222 = scmp.ne.s32.totalorder %s205, %s221
      %p223 = scmp.eq.s32.totalorder %s39, 0
      %p224 = por %p222, %p223
      %s225 = ssub.s32 %s41, %s48
      %p226 = scmp.eq.s32.totalorder %s225, 0
      %s228 = sadd.s32 %s227, 1
      %s229 = scalar_select %p226, %s227, %s228
      %p232 = pneg %p226
      %p233 = scmp.eq.s32.totalorder %s33, 3
      %p234 = por %p232, %p233
      %p235 = scmp.ne.s32.totalorder %s227, %s230
      %p236 = scmp.eq.s32.totalorder %s33, 0
      %p237 = por %p235, %p236
      %p238 = scmp.ne.s32.totalorder %s227, %s230
      %p239 = scmp.eq.s32.totalorder %s38, 3
      %p240 = por %p238, %p239
      %p241 = scmp.ne.s32.totalorder %s230, %s231
      %p242 = scmp.eq.s32.totalorder %s38, 0
      %p243 = por %p241, %p242
      %p244 = scmp.ne.s32.totalorder %s230, %s231
      %p245 = scmp.eq.s32.totalorder %s39, 3
      %p246 = por %p244, %p245
      %p248 = scmp.ne.s32.totalorder %s231, %s247
      %p249 = scmp.eq.s32.totalorder %s39, 0
      %p250 = por %p248, %p249
      %s251 = ssub.s32 %s41, %s48
      %p252 = scmp.eq.s32.totalorder %s251, 0
      %s254 = sadd.s32 %s253, 1
      %s255 = scalar_select %p252, %s253, %s254
      %p258 = pneg %p252
      %p259 = scmp.eq.s32.totalorder %s33, 3
      %p260 = por %p258, %p259
      %p261 = scmp.ne.s32.totalorder %s253, %s256
      %p262 = scmp.eq.s32.totalorder %s33, 0
      %p263 = por %p261, %p262
      %p264 = scmp.ne.s32.totalorder %s253, %s256
      %p265 = scmp.eq.s32.totalorder %s38, 3
      %p266 = por %p264, %p265
      %p267 = scmp.ne.s32.totalorder %s256, %s257
      %p268 = scmp.eq.s32.totalorder %s38, 0
      %p269 = por %p267, %p268
      %p270 = scmp.ne.s32.totalorder %s256, %s257
      %p271 = scmp.eq.s32.totalorder %s39, 3
      %p272 = por %p270, %p271
      %p274 = scmp.ne.s32.totalorder %s257, %s273
      %p275 = scmp.eq.s32.totalorder %s39, 0
      %p276 = por %p274, %p275
      %s277 = ssub.s32 %s41, %s48
      %p278 = scmp.eq.s32.totalorder %s277, 0
      %s280 = sadd.s32 %s279, 1
      %s281 = scalar_select %p278, %s279, %s280
      %p284 = pneg %p278
      %p285 = scmp.eq.s32.totalorder %s33, 3
      %p286 = por %p284, %p285
      %p287 = scmp.ne.s32.totalorder %s279, %s282
      %p288 = scmp.eq.s32.totalorder %s33, 0
      %p289 = por %p287, %p288
      %p290 = scmp.ne.s32.totalorder %s279, %s282
      %p291 = scmp.eq.s32.totalorder %s38, 3
      %p292 = por %p290, %p291
      %p293 = scmp.ne.s32.totalorder %s282, %s283
      %p294 = scmp.eq.s32.totalorder %s38, 0
      %p295 = por %p293, %p294
      %p296 = scmp.ne.s32.totalorder %s282, %s283
      %p297 = scmp.eq.s32.totalorder %s39, 3
      %p298 = por %p296, %p297
      %p300 = scmp.ne.s32.totalorder %s283, %s299
      %p301 = scmp.eq.s32.totalorder %s39, 0
      %p302 = por %p300, %p301
      %s303 = ssub.s32 %s41, %s48
      %p304 = scmp.eq.s32.totalorder %s303, 0
      %s306 = sadd.s32 %s305, 1
      %s307 = scalar_select %p304, %s305, %s306
      %p310 = pneg %p304
      %p311 = scmp.eq.s32.totalorder %s33, 3
      %p312 = por %p310, %p311
      %p313 = scmp.ne.s32.totalorder %s305, %s308
      %p314 = scmp.eq.s32.totalorder %s33, 0
      %p315 = por %p313, %p314
      %p316 = scmp.ne.s32.totalorder %s305, %s308
      %p317 = scmp.eq.s32.totalorder %s38, 3
      %p318 = por %p316, %p317
      %p319 = scmp.ne.s32.totalorder %s308, %s309
      %p320 = scmp.eq.s32.totalorder %s38, 0
      %p321 = por %p319, %p320
      %p322 = scmp.ne.s32.totalorder %s308, %s309
      %p323 = scmp.eq.s32.totalorder %s39, 3
      %p324 = por %p322, %p323
      %p326 = scmp.ne.s32.totalorder %s309, %s325
      %p327 = scmp.eq.s32.totalorder %s39, 0
      %p328 = por %p326, %p327
      %s329 = ssub.s32 %s41, %s48
      %p330 = scmp.eq.s32.totalorder %s329, 0
      %s332 = sadd.s32 %s331, 1
      %s333 = scalar_select %p330, %s331, %s332
      %p336 = pneg %p330
      %p337 = scmp.eq.s32.totalorder %s33, 3
      %p338 = por %p336, %p337
      %p339 = scmp.ne.s32.totalorder %s331, %s334
      %p340 = scmp.eq.s32.totalorder %s33, 0
      %p341 = por %p339, %p340
      %p342 = scmp.ne.s32.totalorder %s331, %s334
      %p343 = scmp.eq.s32.totalorder %s38, 3
      %p344 = por %p342, %p343
      %p345 = scmp.ne.s32.totalorder %s334, %s335
      %p346 = scmp.eq.s32.totalorder %s38, 0
      %p347 = por %p345, %p346
      %p348 = scmp.ne.s32.totalorder %s334, %s335
      %p349 = scmp.eq.s32.totalorder %s39, 3
      %p350 = por %p348, %p349
      %p352 = scmp.ne.s32.totalorder %s335, %s351
      %p353 = scmp.eq.s32.totalorder %s39, 0
      %p354 = por %p352, %p353
      %s355 = ssub.s32 %s41, %s48
      %p356 = scmp.eq.s32.totalorder %s355, 0
      %s358 = sadd.s32 %s357, 1
      %s359 = scalar_select %p356, %s357, %s358
      %p362 = pneg %p356
      %p363 = scmp.eq.s32.totalorder %s33, 3
      %p364 = por %p362, %p363
      %p365 = scmp.ne.s32.totalorder %s357, %s360
      %p366 = scmp.eq.s32.totalorder %s33, 0
      %p367 = por %p365, %p366
      %p368 = scmp.ne.s32.totalorder %s357, %s360
      %p369 = scmp.eq.s32.totalorder %s38, 3
      %p370 = por %p368, %p369
      %p371 = scmp.ne.s32.totalorder %s360, %s361
      %p372 = scmp.eq.s32.totalorder %s38, 0
      %p373 = por %p371, %p372
      %p374 = scmp.ne.s32.totalorder %s360, %s361
      %p375 = scmp.eq.s32.totalorder %s39, 3
      %p376 = por %p374, %p375
      %p378 = scmp.ne.s32.totalorder %s361, %s377
      %p379 = scmp.eq.s32.totalorder %s39, 0
      %p380 = por %p378, %p379
      %s381 = ssub.s32 %s41, %s48
      %p382 = scmp.eq.s32.totalorder %s381, 0
      %s384 = sadd.s32 %s383, 1
      %s385 = scalar_select %p382, %s383, %s384
      %p388 = pneg %p382
      %p389 = scmp.eq.s32.totalorder %s33, 3
      %p390 = por %p388, %p389
      %p391 = scmp.ne.s32.totalorder %s383, %s386
      %p392 = scmp.eq.s32.totalorder %s33, 0
      %p393 = por %p391, %p392
      %p394 = scmp.ne.s32.totalorder %s383, %s386
      %p395 = scmp.eq.s32.totalorder %s38, 3
      %p396 = por %p394, %p395
      %p397 = scmp.ne.s32.totalorder %s386, %s387
      %p398 = scmp.eq.s32.totalorder %s38, 0
      %p399 = por %p397, %p398
      %p400 = scmp.ne.s32.totalorder %s386, %s387
      %p401 = scmp.eq.s32.totalorder %s39, 3
      %p402 = por %p400, %p401
      %p404 = scmp.ne.s32.totalorder %s387, %s403
      %p405 = scmp.eq.s32.totalorder %s39, 0
      %p406 = por %p404, %p405
      %s407 = ssub.s32 %s41, %s48
      %p408 = scmp.eq.s32.totalorder %s407, 0
      %s410 = sadd.s32 %s409, 1
      %s411 = scalar_select %p408, %s409, %s410
      %p414 = pneg %p408
      %p415 = scmp.eq.s32.totalorder %s33, 3
      %p416 = por %p414, %p415
      %p417 = scmp.ne.s32.totalorder %s409, %s412
      %p418 = scmp.eq.s32.totalorder %s33, 0
      %p419 = por %p417, %p418
      %p420 = scmp.ne.s32.totalorder %s409, %s412
      %p421 = scmp.eq.s32.totalorder %s38, 3
      %p422 = por %p420, %p421
      %p423 = scmp.ne.s32.totalorder %s412, %s413
      %p424 = scmp.eq.s32.totalorder %s38, 0
      %p425 = por %p423, %p424
      %p426 = scmp.ne.s32.totalorder %s412, %s413
      %p427 = scmp.eq.s32.totalorder %s39, 3
      %p428 = por %p426, %p427
      %p430 = scmp.ne.s32.totalorder %s413, %s429
      %p431 = scmp.eq.s32.totalorder %s39, 0
      %p432 = por %p430, %p431
      %s433 = ssub.s32 %s41, %s48
      %p434 = scmp.eq.s32.totalorder %s433, 0
      %s436 = sadd.s32 %s435, 1
      %s437 = scalar_select %p434, %s435, %s436
      %p440 = pneg %p434
      %p441 = scmp.eq.s32.totalorder %s33, 3
      %p442 = por %p440, %p441
      %p443 = scmp.ne.s32.totalorder %s435, %s438
      %p444 = scmp.eq.s32.totalorder %s33, 0
      %p445 = por %p443, %p444
      %p446 = scmp.ne.s32.totalorder %s435, %s438
      %p447 = scmp.eq.s32.totalorder %s38, 3
      %p448 = por %p446, %p447
      %p449 = scmp.ne.s32.totalorder %s438, %s439
      %p450 = scmp.eq.s32.totalorder %s38, 0
      %p451 = por %p449, %p450
      %p452 = scmp.ne.s32.totalorder %s438, %s439
      %p453 = scmp.eq.s32.totalorder %s39, 3
      %p454 = por %p452, %p453
      %p456 = scmp.ne.s32.totalorder %s439, %s455
      %p457 = scmp.eq.s32.totalorder %s39, 0
      %p458 = por %p456, %p457
      %s459 = ssub.s32 %s40, %s52
      %p460 = scmp.eq.s32.totalorder %s459, 0
      %s462 = sadd.s32 %s461, 1
      %s463 = scalar_select %p460, %s461, %s462
      %p466 = pneg %p460
      %p467 = scmp.eq.s32.totalorder %s33, 3
      %p468 = por %p466, %p467
      %p469 = scmp.ne.s32.totalorder %s461, %s464
      %p470 = scmp.eq.s32.totalorder %s33, 0
      %p471 = por %p469, %p470
      %p472 = scmp.ne.s32.totalorder %s461, %s464
      %p473 = scmp.eq.s32.totalorder %s38, 3
      %p474 = por %p472, %p473
      %p475 = scmp.ne.s32.totalorder %s464, %s465
      %p476 = scmp.eq.s32.totalorder %s38, 0
      %p477 = por %p475, %p476
      %p478 = scmp.ne.s32.totalorder %s464, %s465
      %p479 = scmp.eq.s32.totalorder %s39, 3
      %p480 = por %p478, %p479
      %p482 = scmp.ne.s32.totalorder %s465, %s481
      %p483 = scmp.eq.s32.totalorder %s39, 0
      %p484 = por %p482, %p483
      %s485 = ssub.s32 %s40, %s52
      %p486 = scmp.eq.s32.totalorder %s485, 0
      %s488 = sadd.s32 %s487, 1
      %s489 = scalar_select %p486, %s487, %s488
      %p492 = pneg %p486
      %p493 = scmp.eq.s32.totalorder %s33, 3
      %p494 = por %p492, %p493
      %p495 = scmp.ne.s32.totalorder %s487, %s490
      %p496 = scmp.eq.s32.totalorder %s33, 0
      %p497 = por %p495, %p496
      %p498 = scmp.ne.s32.totalorder %s487, %s490
      %p499 = scmp.eq.s32.totalorder %s38, 3
      %p500 = por %p498, %p499
      %p501 = scmp.ne.s32.totalorder %s490, %s491
      %p502 = scmp.eq.s32.totalorder %s38, 0
      %p503 = por %p501, %p502
      %p504 = scmp.ne.s32.totalorder %s490, %s491
      %p505 = scmp.eq.s32.totalorder %s39, 3
      %p506 = por %p504, %p505
      %p508 = scmp.ne.s32.totalorder %s491, %s507
      %p509 = scmp.eq.s32.totalorder %s39, 0
      %p510 = por %p508, %p509
      %p511 = scmp.le.s32.totalorder 1, %s33
      %p512 = scmp.lt.s32.totalorder %s33, 5
      %p513 = pnand %p511, %p512
      %p514 = pneg %p513
      // Predicated region
      $region9: #{bert_encoder_seq_forward.1} parent=5 // pred_check
        _
      $region10: #{bert_encoder_seq_forward.1} parent=5 // pred_check_branch
        %516 = sbr.rel (%p513) target = $region12
      $region11: #{bert_encoder_seq_forward.1} parent=5 // pred_region
        %s517 = ssub.s32 %s33, 1
        // Predicated region
        $region13: #{bert_encoder_seq_forward.1} parent=11 // pred_check
          %p518 = pneg %p118
        $region14: #{bert_encoder_seq_forward.1} parent=11 // pred_check_branch
          %520 = sbr.rel (%p518) target = $region16
        $region15: #{bert_encoder_seq_forward.1} parent=11 // pred_region
          _
        $region16: #{bert_encoder_seq_forward.1} parent=11 // pred_fallthru
          _
        // Predicated region
        $region17: #{bert_encoder_seq_forward.1} parent=11 // pred_check
          %p521 = pneg %p139
        $region18: #{bert_encoder_seq_forward.1} parent=11 // pred_check_branch
          %523 = sbr.rel (%p521) target = $region20
        $region19: #{bert_encoder_seq_forward.1} parent=11 // pred_region
          _
        $region20: #{bert_encoder_seq_forward.1} parent=11 // pred_fallthru
          _
      $region12: #{bert_encoder_seq_forward.1} parent=5 // pred_fallthru
        _
      %p524 = scmp.lt.s32.totalorder %s33, 4
      // Predicated region
      $region21: #{bert_encoder_seq_forward.1} parent=5 // pred_check
        %p525 = pneg %p524
      $region22: #{bert_encoder_seq_forward.1} parent=5 // pred_check_branch
        %527 = sbr.rel (%p525) target = $region24
      $region23: #{bert_encoder_seq_forward.1} parent=5 // pred_region
        // Predicated region
        $region25: #{bert_encoder_seq_forward.1} parent=23 // pred_check
          %p528 = pneg %p65
        $region26: #{bert_encoder_seq_forward.1} parent=23 // pred_check_branch
          %530 = sbr.rel (%p528) target = $region28
        $region27: #{bert_encoder_seq_forward.1} parent=23 // pred_region
          %p531 = scmp.lt.s32.totalorder %s40, 1
          %s532 = scalar_select %p531, %s40, 1
          %s533 = smul.addr %s532, 2
          %s534 = smul.addr %s533, 8
          %s535 = scalar_lea.vmem %s0, %s534
        $region28: #{bert_encoder_seq_forward.1} parent=23 // pred_fallthru
          _
        // Predicated region
        $region29: #{bert_encoder_seq_forward.1} parent=23 // pred_check
          %p536 = pneg %p91
        $region30: #{bert_encoder_seq_forward.1} parent=23 // pred_check_branch
          %538 = sbr.rel (%p536) target = $region32
        $region31: #{bert_encoder_seq_forward.1} parent=23 // pred_region
          %p539 = scmp.lt.s32.totalorder %s40, 1
          %s540 = scalar_select %p539, %s40, 1
          %s541 = scalar_lea.vmem %s1, %s540
        $region32: #{bert_encoder_seq_forward.1} parent=23 // pred_fallthru
          _
        // Predicated region
        $region33: #{bert_encoder_seq_forward.1} parent=23 // pred_check
          %p542 = pneg %p159
        $region34: #{bert_encoder_seq_forward.1} parent=23 // pred_check_branch
          %544 = sbr.rel (%p542) target = $region36
        $region35: #{bert_encoder_seq_forward.1} parent=23 // pred_region
          %s545 = sand.u32 %s149, 1
          %s546 = scalar_lea.sflag [#allocation5], %s545
          %s547 = sand.u32 %s149, 1
          %s548 = smul.addr %s547, 768
          %s549 = scalar_lea.vmem [#allocation4], %s548
          %s551 = ssub.s32 12288, 12288
          %552 = vsyncadd %s546, %s551
          %s553 = smul.addr %s41, 192
          %s554 = smul.addr %s553, 64
          %s555 = scalar_lea.hbm %s4, %s554
          %s556 = sshll.u32 %s549, 4
          %s557 = int_to_ptr.vmem [resolvable:$true] %s556
          %562 = dma.hbm_to_vmem [thread:$0]  %s555, 12288, %s557, %s546, 384, 384, 24
        $region36: #{bert_encoder_seq_forward.1} parent=23 // pred_fallthru
          _
        // Predicated region
        $region37: #{bert_encoder_seq_forward.1} parent=23 // pred_check
          %p563 = pneg %p185
        $region38: #{bert_encoder_seq_forward.1} parent=23 // pred_check_branch
          %565 = sbr.rel (%p563) target = $region40
        $region39: #{bert_encoder_seq_forward.1} parent=23 // pred_region
          %p566 = scmp.lt.s32.totalorder %s41, 1
          %s567 = scalar_select %p566, %s41, 1
          %s568 = smul.addr %s567, 6
          %s569 = scalar_lea.vmem %s5, %s568
        $region40: #{bert_encoder_seq_forward.1} parent=23 // pred_fallthru
          _
        // Predicated region
        $region41: #{bert_encoder_seq_forward.1} parent=23 // pred_check
          %p570 = pneg %p211
        $region42: #{bert_encoder_seq_forward.1} parent=23 // pred_check_branch
          %572 = sbr.rel (%p570) target = $region44
        $region43: #{bert_encoder_seq_forward.1} parent=23 // pred_region
          %s573 = sand.u32 %s33, 1
          %s574 = scalar_lea.sflag [#allocation7], %s573
          %s575 = sand.u32 %s201, 1
          %s576 = smul.addr %s575, 256
          %s577 = scalar_lea.vmem [#allocation6], %s576
          %s579 = ssub.s32 4096, 4096
          %580 = vsyncadd %s574, %s579
          %s581 = smul.addr %s41, 64
          %s582 = smul.addr %s581, 64
          %s583 = scalar_lea.hbm %s6, %s582
          %s584 = sshll.u32 %s577, 4
          %s585 = int_to_ptr.vmem [resolvable:$true] %s584
          %590 = dma.hbm_to_vmem [thread:$0]  %s583, 4096, %s585, %s574, 128, 128, 8
        $region44: #{bert_encoder_seq_forward.1} parent=23 // pred_fallthru
          _
        // Predicated region
        $region45: #{bert_encoder_seq_forward.1} parent=23 // pred_check
          %p591 = pneg %p237
        $region46: #{bert_encoder_seq_forward.1} parent=23 // pred_check_branch
          %593 = sbr.rel (%p591) target = $region48
        $region47: #{bert_encoder_seq_forward.1} parent=23 // pred_region
          %p594 = scmp.lt.s32.totalorder %s41, 1
          %s595 = scalar_select %p594, %s41, 1
          %s596 = smul.addr %s595, 2
          %s597 = scalar_lea.vmem %s7, %s596
        $region48: #{bert_encoder_seq_forward.1} parent=23 // pred_fallthru
          _
        // Predicated region
        $region49: #{bert_encoder_seq_forward.1} parent=23 // pred_check
          %p598 = pneg %p263
        $region50: #{bert_encoder_seq_forward.1} parent=23 // pred_check_branch
          %600 = sbr.rel (%p598) target = $region52
        $region51: #{bert_encoder_seq_forward.1} parent=23 // pred_region
          %p601 = scmp.lt.s32.totalorder %s41, 1
          %s602 = scalar_select %p601, %s41, 1
          %s603 = smul.addr %s602, 2
          %s604 = scalar_lea.vmem %s8, %s603
        $region52: #{bert_encoder_seq_forward.1} parent=23 // pred_fallthru
          _
        // Predicated region
        $region53: #{bert_encoder_seq_forward.1} parent=23 // pred_check
          %p605 = pneg %p289
        $region54: #{bert_encoder_seq_forward.1} parent=23 // pred_check_branch
          %607 = sbr.rel (%p605) target = $region56
        $region55: #{bert_encoder_seq_forward.1} parent=23 // pred_region
          %p608 = scmp.lt.s32.totalorder %s41, 1
          %s609 = scalar_select %p608, %s41, 1
          %s610 = smul.addr %s609, 2
          %s611 = scalar_lea.vmem %s9, %s610
        $region56: #{bert_encoder_seq_forward.1} parent=23 // pred_fallthru
          _
        // Predicated region
        $region57: #{bert_encoder_seq_forward.1} parent=23 // pred_check
          %p612 = pneg %p315
        $region58: #{bert_encoder_seq_forward.1} parent=23 // pred_check_branch
          %614 = sbr.rel (%p612) target = $region60
        $region59: #{bert_encoder_seq_forward.1} parent=23 // pred_region
          %s615 = sand.u32 %s33, 1
          %s616 = scalar_lea.sflag [#allocation7], %s615
          %s617 = sand.u32 %s305, 1
          %s618 = smul.addr %s617, 512
          %s619 = scalar_lea.vmem [#allocation8], %s618
          %s621 = ssub.s32 8192, 8192
          %622 = vsyncadd %s616, %s621
          %s623 = smul.addr %s41, 128
          %s624 = smul.addr %s623, 64
          %s625 = scalar_lea.hbm %s10, %s624
          %s626 = sshll.u32 %s619, 4
          %s627 = int_to_ptr.vmem [resolvable:$true] %s626
          %632 = dma.hbm_to_vmem [thread:$0]  %s625, 8192, %s627, %s616, 256, 256, 16
        $region60: #{bert_encoder_seq_forward.1} parent=23 // pred_fallthru
          _
        // Predicated region
        $region61: #{bert_encoder_seq_forward.1} parent=23 // pred_check
          %p633 = pneg %p341
        $region62: #{bert_encoder_seq_forward.1} parent=23 // pred_check_branch
          %635 = sbr.rel (%p633) target = $region64
        $region63: #{bert_encoder_seq_forward.1} parent=23 // pred_region
          %p636 = scmp.lt.s32.totalorder %s41, 1
          %s637 = scalar_select %p636, %s41, 1
          %s638 = smul.addr %s637, 4
          %s639 = scalar_lea.vmem %s11, %s638
        $region64: #{bert_encoder_seq_forward.1} parent=23 // pred_fallthru
          _
        // Predicated region
        $region65: #{bert_encoder_seq_forward.1} parent=23 // pred_check
          %p640 = pneg %p367
        $region66: #{bert_encoder_seq_forward.1} parent=23 // pred_check_branch
          %642 = sbr.rel (%p640) target = $region68
        $region67: #{bert_encoder_seq_forward.1} parent=23 // pred_region
          %s643 = sand.u32 %s357, 1
          %s644 = scalar_lea.sflag [#allocation10], %s643
          %s645 = sand.u32 %s357, 1
          %s646 = smul.addr %s645, 512
          %s647 = scalar_lea.vmem [#allocation9], %s646
          %s649 = ssub.s32 8192, 8192
          %650 = vsyncadd %s644, %s649
          %s651 = smul.addr %s41, 128
          %s652 = smul.addr %s651, 64
          %s653 = scalar_lea.hbm %s12, %s652
          %s654 = sshll.u32 %s647, 4
          %s655 = int_to_ptr.vmem [resolvable:$true] %s654
          %660 = dma.hbm_to_vmem [thread:$0]  %s653, 8192, %s655, %s644, 128, 128, 8
        $region68: #{bert_encoder_seq_forward.1} parent=23 // pred_fallthru
          _
        // Predicated region
        $region69: #{bert_encoder_seq_forward.1} parent=23 // pred_check
          %p661 = pneg %p393
        $region70: #{bert_encoder_seq_forward.1} parent=23 // pred_check_branch
          %663 = sbr.rel (%p661) target = $region72
        $region71: #{bert_encoder_seq_forward.1} parent=23 // pred_region
          %p664 = scmp.lt.s32.totalorder %s41, 1
          %s665 = scalar_select %p664, %s41, 1
          %s666 = smul.addr %s665, 2
          %s667 = scalar_lea.vmem %s13, %s666
        $region72: #{bert_encoder_seq_forward.1} parent=23 // pred_fallthru
          _
        // Predicated region
        $region73: #{bert_encoder_seq_forward.1} parent=23 // pred_check
          %p668 = pneg %p419
        $region74: #{bert_encoder_seq_forward.1} parent=23 // pred_check_branch
          %670 = sbr.rel (%p668) target = $region76
        $region75: #{bert_encoder_seq_forward.1} parent=23 // pred_region
          %p671 = scmp.lt.s32.totalorder %s41, 1
          %s672 = scalar_select %p671, %s41, 1
          %s673 = smul.addr %s672, 2
          %s674 = scalar_lea.vmem %s14, %s673
        $region76: #{bert_encoder_seq_forward.1} parent=23 // pred_fallthru
          _
        // Predicated region
        $region77: #{bert_encoder_seq_forward.1} parent=23 // pred_check
          %p675 = pneg %p445
        $region78: #{bert_encoder_seq_forward.1} parent=23 // pred_check_branch
          %677 = sbr.rel (%p675) target = $region80
        $region79: #{bert_encoder_seq_forward.1} parent=23 // pred_region
          %p678 = scmp.lt.s32.totalorder %s41, 1
          %s679 = scalar_select %p678, %s41, 1
          %s680 = smul.addr %s679, 2
          %s681 = scalar_lea.vmem %s15, %s680
        $region80: #{bert_encoder_seq_forward.1} parent=23 // pred_fallthru
          _
      $region24: #{bert_encoder_seq_forward.1} parent=5 // pred_fallthru
        _
      %p682 = scmp.le.s32.totalorder 1, %s33
      %p683 = scmp.lt.s32.totalorder %s33, 5
      %p684 = pnand %p682, %p683
      %p685 = pneg %p684
      // Predicated region
      $region81: #{bert_encoder_seq_forward.1} parent=5 // pred_check
        _
      $region82: #{bert_encoder_seq_forward.1} parent=5 // pred_check_branch
        %687 = sbr.rel (%p684) target = $region84
      $region83: #{bert_encoder_seq_forward.1} parent=5 // pred_region
        %s688 = ssub.s32 %s33, 1
        %s689 = sand.u32 %s152, 1
        %s690 = scalar_lea.sflag [#allocation5], %s689
        %s691 = sand.u32 %s152, 1
        %s692 = smul.addr %s691, 768
        %s693 = scalar_lea.vmem [#allocation4], %s692
        // Predicated region
        $region85: #{bert_encoder_seq_forward.1} parent=83 // pred_check
          %p694 = pneg %p165
        $region86: #{bert_encoder_seq_forward.1} parent=83 // pred_check_branch
          %696 = sbr.rel (%p694) target = $region88
        $region87: #{bert_encoder_seq_forward.1} parent=83 // pred_region
          %697 = dma.done %s690, 12288
        $region88: #{bert_encoder_seq_forward.1} parent=83 // pred_fallthru
          _
        %s698 = sand.u32 %s38, 1
        %s699 = scalar_lea.sflag [#allocation7], %s698
        %s700 = sand.u32 %s204, 1
        %s701 = smul.addr %s700, 256
        %s702 = scalar_lea.vmem [#allocation6], %s701
        // Predicated region
        $region89: #{bert_encoder_seq_forward.1} parent=83 // pred_check
          %p703 = pneg %p217
        $region90: #{bert_encoder_seq_forward.1} parent=83 // pred_check_branch
          %705 = sbr.rel (%p703) target = $region92
        $region91: #{bert_encoder_seq_forward.1} parent=83 // pred_region
          %706 = dma.done %s699, 4096
        $region92: #{bert_encoder_seq_forward.1} parent=83 // pred_fallthru
          _
        %s707 = sand.u32 %s38, 1
        %s708 = scalar_lea.sflag [#allocation7], %s707
        %s709 = sand.u32 %s308, 1
        %s710 = smul.addr %s709, 512
        %s711 = scalar_lea.vmem [#allocation8], %s710
        // Predicated region
        $region93: #{bert_encoder_seq_forward.1} parent=83 // pred_check
          %p712 = pneg %p321
        $region94: #{bert_encoder_seq_forward.1} parent=83 // pred_check_branch
          %714 = sbr.rel (%p712) target = $region96
        $region95: #{bert_encoder_seq_forward.1} parent=83 // pred_region
          %715 = dma.done %s708, 8192
        $region96: #{bert_encoder_seq_forward.1} parent=83 // pred_fallthru
          _
        %s716 = sand.u32 %s360, 1
        %s717 = scalar_lea.sflag [#allocation10], %s716
        %s718 = sand.u32 %s360, 1
        %s719 = smul.addr %s718, 512
        %s720 = scalar_lea.vmem [#allocation9], %s719
        // Predicated region
        $region97: #{bert_encoder_seq_forward.1} parent=83 // pred_check
          %p721 = pneg %p373
        $region98: #{bert_encoder_seq_forward.1} parent=83 // pred_check_branch
          %723 = sbr.rel (%p721) target = $region100
        $region99: #{bert_encoder_seq_forward.1} parent=83 // pred_region
          %724 = dma.done %s717, 8192
        $region100: #{bert_encoder_seq_forward.1} parent=83 // pred_fallthru
          _
        %p725 = scmp.lt.s32.totalorder %s42, 1
        %s726 = scalar_select %p725, %s42, 1
        %s727 = smul.addr %s726, 2
        %s728 = smul.addr %s727, 8
        %s729 = scalar_lea.vmem %s0, %s728
        %p730 = pneg %p71
        %p731 = pneg %p68
        %p732 = scmp.lt.s32.totalorder %s42, 1
        %s733 = scalar_select %p732, %s42, 1
        %s734 = scalar_lea.vmem %s1, %s733
        %p735 = pneg %p97
        %p736 = pneg %p94
        %p737 = pneg %p118
        %p738 = pneg %p115
        %p739 = pneg %p139
        %p740 = pneg %p136
        %s741 = sand.u32 %s152, 1
        %s742 = scalar_lea.sflag [#allocation5], %s741
        %s743 = sand.u32 %s152, 1
        %s744 = smul.addr %s743, 768
        %s745 = scalar_lea.vmem [#allocation4], %s744
        %p746 = pneg %p165
        %p747 = pneg %p162
        %p748 = scmp.lt.s32.totalorder %s43, 1
        %s749 = scalar_select %p748, %s43, 1
        %s750 = smul.addr %s749, 6
        %s751 = scalar_lea.vmem %s5, %s750
        %p752 = pneg %p191
        %p753 = pneg %p188
        %s754 = sand.u32 %s38, 1
        %s755 = scalar_lea.sflag [#allocation7], %s754
        %s756 = sand.u32 %s204, 1
        %s757 = smul.addr %s756, 256
        %s758 = scalar_lea.vmem [#allocation6], %s757
        %p759 = pneg %p217
        %p760 = pneg %p214
        %p761 = scmp.lt.s32.totalorder %s43, 1
        %s762 = scalar_select %p761, %s43, 1
        %s763 = smul.addr %s762, 2
        %s764 = scalar_lea.vmem %s7, %s763
        %p765 = pneg %p243
        %p766 = pneg %p240
        %p767 = scmp.lt.s32.totalorder %s43, 1
        %s768 = scalar_select %p767, %s43, 1
        %s769 = smul.addr %s768, 2
        %s770 = scalar_lea.vmem %s8, %s769
        %p771 = pneg %p269
        %p772 = pneg %p266
        %p773 = scmp.lt.s32.totalorder %s43, 1
        %s774 = scalar_select %p773, %s43, 1
        %s775 = smul.addr %s774, 2
        %s776 = scalar_lea.vmem %s9, %s775
        %p777 = pneg %p295
        %p778 = pneg %p292
        %s779 = sand.u32 %s38, 1
        %s780 = scalar_lea.sflag [#allocation7], %s779
        %s781 = sand.u32 %s308, 1
        %s782 = smul.addr %s781, 512
        %s783 = scalar_lea.vmem [#allocation8], %s782
        %p784 = pneg %p321
        %p785 = pneg %p318
        %p786 = scmp.lt.s32.totalorder %s43, 1
        %s787 = scalar_select %p786, %s43, 1
        %s788 = smul.addr %s787, 4
        %s789 = scalar_lea.vmem %s11, %s788
        %p790 = pneg %p347
        %p791 = pneg %p344
        %s792 = sand.u32 %s360, 1
        %s793 = scalar_lea.sflag [#allocation10], %s792
        %s794 = sand.u32 %s360, 1
        %s795 = smul.addr %s794, 512
        %s796 = scalar_lea.vmem [#allocation9], %s795
        %p797 = pneg %p373
        %p798 = pneg %p370
        %p799 = scmp.lt.s32.totalorder %s43, 1
        %s800 = scalar_select %p799, %s43, 1
        %s801 = smul.addr %s800, 2
        %s802 = scalar_lea.vmem %s13, %s801
        %p803 = pneg %p399
        %p804 = pneg %p396
        %p805 = scmp.lt.s32.totalorder %s43, 1
        %s806 = scalar_select %p805, %s43, 1
        %s807 = smul.addr %s806, 2
        %s808 = scalar_lea.vmem %s14, %s807
        %p809 = pneg %p425
        %p810 = pneg %p422
        %p811 = scmp.lt.s32.totalorder %s43, 1
        %s812 = scalar_select %p811, %s43, 1
        %s813 = smul.addr %s812, 2
        %s814 = scalar_lea.vmem %s15, %s813
        %p815 = pneg %p451
        %p816 = pneg %p448
        %p817 = pneg %p477
        %p818 = pneg %p474
        %p819 = scmp.lt.s32.totalorder %s42, 1
        %s820 = scalar_select %p819, %s42, 1
        %s821 = smul.addr %s820, 2
        %s822 = smul.addr %s821, 8
        %s823 = scalar_lea.vmem %s16, %s822
        %p824 = pneg %p503
        %p825 = pneg %p500
        %p826 = scmp.lt.s32.totalorder %s42, 1
        %s827 = scalar_select %p826, %s42, 1
        %s828 = smul.addr %s827, 2
        %s829 = scalar_lea.vmem %s17, %s828
        %p830 = scmp.lt.s32.totalorder %s42, 1
        %s831 = scalar_select %p830, %s42, 1
        %s832 = smul.addr %s831, 2
        %s833 = smul.addr %s832, 8
        %s834 = scalar_lea.vmem %s0, %s833
        %p835 = scmp.lt.s32.totalorder %s42, 1
        %s836 = scalar_select %p835, %s42, 1
        %s837 = scalar_lea.vmem %s1, %s836
        %p838 = scmp.lt.s32.totalorder %s43, 1
        %s839 = scalar_select %p838, %s43, 1
        %s840 = smul.addr %s839, 6
        %s841 = scalar_lea.vmem %s5, %s840
        %p842 = scmp.lt.s32.totalorder %s43, 1
        %s843 = scalar_select %p842, %s43, 1
        %s844 = smul.addr %s843, 2
        %s845 = scalar_lea.vmem %s7, %s844
        %p846 = scmp.lt.s32.totalorder %s43, 1
        %s847 = scalar_select %p846, %s43, 1
        %s848 = smul.addr %s847, 2
        %s849 = scalar_lea.vmem %s8, %s848
        %p850 = scmp.lt.s32.totalorder %s43, 1
        %s851 = scalar_select %p850, %s43, 1
        %s852 = smul.addr %s851, 2
        %s853 = scalar_lea.vmem %s9, %s852
        %p854 = scmp.lt.s32.totalorder %s43, 1
        %s855 = scalar_select %p854, %s43, 1
        %s856 = smul.addr %s855, 4
        %s857 = scalar_lea.vmem %s11, %s856
        %p858 = scmp.lt.s32.totalorder %s43, 1
        %s859 = scalar_select %p858, %s43, 1
        %s860 = smul.addr %s859, 2
        %s861 = scalar_lea.vmem %s13, %s860
        %p862 = scmp.lt.s32.totalorder %s43, 1
        %s863 = scalar_select %p862, %s43, 1
        %s864 = smul.addr %s863, 2
        %s865 = scalar_lea.vmem %s14, %s864
        %p866 = scmp.lt.s32.totalorder %s43, 1
        %s867 = scalar_select %p866, %s43, 1
        %s868 = smul.addr %s867, 2
        %s869 = scalar_lea.vmem %s15, %s868
        %p870 = scmp.lt.s32.totalorder %s42, 1
        %s871 = scalar_select %p870, %s42, 1
        %s872 = smul.addr %s871, 2
        %s873 = smul.addr %s872, 8
        %s874 = scalar_lea.vmem %s16, %s873
        %p875 = scmp.lt.s32.totalorder %s42, 1
        %s876 = scalar_select %p875, %s42, 1
        %s877 = smul.addr %s876, 2
        %s878 = scalar_lea.vmem %s17, %s877
        %p880 = scmp.eq.s32.totalorder %s43, 0
        // Predicated region
        $region101: #{bert_encoder_seq_forward.1} parent=83 // pred_check
          %p881 = pneg %p880
        $region102: #{bert_encoder_seq_forward.1} parent=83 // pred_check_branch
          %883 = sbr.rel (%p881) target = $region104
        $region103: #{bert_encoder_seq_forward.1} parent=83 // pred_region
          %v884 = vld [vmem:[%s834] sm:$0xff]
          %v885 = vld [vmem:[%s834 + $0x8] sm:$0xff]
          %v886 = vld [vmem:[%s2] sm:$0x3]
          %v887 = vld [vmem:[%s3] sm:$0x3]
          %v888 = vadd.f32 %v884, %v885
          %889 = vadd.xlane.f32.xlu0 %v888
          %v890 = vpop.xlane.xlu0 %889
          %v891 = vrcp.pop 256.0
          %v892 = vmul.f32 %v890, %v891
          %v893 = vsub.f32 %v884, %v892
          %v894 = vsub.f32 %v885, %v892
          %v895 = vmul.f32 %v893, %v893
          %v896 = vmul.f32 %v894, %v894
          %v897 = vadd.f32 %v895, %v896
          %898 = vadd.xlane.f32.xlu0 %v897
          %v899 = vpop.xlane.xlu0 %898
          %v900 = vmul.f32 %v899, %v891
          %v901 = vadd.f32 %v900, 1e-12
          %v902 = vrsqrt.pop %v901
          %v903 = vmul.f32 %v893, %v902
          %v904 = vmul.f32 %v894, %v902
          %v906 = vlaneseq
          %v907 = vshrl.u32 %v906, 7
          %v908 = vsub.s32 0, %v907
          %v909 = vrot.slane %v886, %v908
          %v910 = vlaneseq
          %v911 = vshrl.u32 %v910, 7
          %v912 = vsub.s32 1, %v911
          %v913 = vrot.slane %v886, %v912
          %v916 = vmul.f32 %v903, %v909
          %v917 = vmul.f32 %v904, %v913
          %v919 = vlaneseq
          %v920 = vshrl.u32 %v919, 7
          %v921 = vsub.s32 0, %v920
          %v922 = vrot.slane %v887, %v921
          %v923 = vlaneseq
          %v924 = vshrl.u32 %v923, 7
          %v925 = vsub.s32 1, %v924
          %v926 = vrot.slane %v887, %v925
          %v929 = vadd.f32 %v916, %v922
          %v930 = vadd.f32 %v917, %v926
          %931 = vst [vmem:[#allocation2] sm:$0xff] %v929
          %932 = vst [vmem:[#allocation2 + $0x8] sm:$0xff] %v930
        $region104: #{bert_encoder_seq_forward.1} parent=83 // pred_fallthru
          _
        %v933 = vld [vmem:[#allocation2] sm:$0xff]
        %v934 = vld [vmem:[#allocation2 + $0x8] sm:$0xff]
        %v935 = vpack.c.bf16 %v933, %v933
        %v936 = vpack.c.bf16 %v934, %v934
        %v937 = vld [vmem:[%s693] sm:$0xff]
        %v938 = vld [vmem:[%s693 + $0x8] sm:$0xff]
        %v939 = vld [vmem:[%s693 + $0x10] sm:$0xff]
        %v940 = vld [vmem:[%s693 + $0x18] sm:$0xff]
        %v941 = vld [vmem:[%s693 + $0x20] sm:$0xff]
        %v942 = vld [vmem:[%s693 + $0x28] sm:$0xff]
        %v943 = vld [vmem:[%s693 + $0x30] sm:$0xff]
        %v944 = vld [vmem:[%s693 + $0x38] sm:$0xff]
        %v945 = vld [vmem:[%s693 + $0x40] sm:$0xff]
        %v946 = vld [vmem:[%s693 + $0x48] sm:$0xff]
        %v947 = vld [vmem:[%s693 + $0x50] sm:$0xff]
        %v948 = vld [vmem:[%s693 + $0x58] sm:$0xff]
        %v949 = vld [vmem:[%s693 + $0x60] sm:$0xff]
        %v950 = vld [vmem:[%s693 + $0x68] sm:$0xff]
        %v951 = vld [vmem:[%s693 + $0x70] sm:$0xff]
        %v952 = vld [vmem:[%s693 + $0x78] sm:$0xff]
        %v953 = vld [vmem:[%s693 + $0x80] sm:$0xff]
        %v954 = vld [vmem:[%s693 + $0x88] sm:$0xff]
        %v955 = vld [vmem:[%s693 + $0x90] sm:$0xff]
        %v956 = vld [vmem:[%s693 + $0x98] sm:$0xff]
        %v957 = vld [vmem:[%s693 + $0xa0] sm:$0xff]
        %v958 = vld [vmem:[%s693 + $0xa8] sm:$0xff]
        %v959 = vld [vmem:[%s693 + $0xb0] sm:$0xff]
        %v960 = vld [vmem:[%s693 + $0xb8] sm:$0xff]
        %v961 = vld [vmem:[%s693 + $0xc0] sm:$0xff]
        %v962 = vld [vmem:[%s693 + $0xc8] sm:$0xff]
        %v963 = vld [vmem:[%s693 + $0xd0] sm:$0xff]
        %v964 = vld [vmem:[%s693 + $0xd8] sm:$0xff]
        %v965 = vld [vmem:[%s693 + $0xe0] sm:$0xff]
        %v966 = vld [vmem:[%s693 + $0xe8] sm:$0xff]
        %v967 = vld [vmem:[%s693 + $0xf0] sm:$0xff]
        %v968 = vld [vmem:[%s693 + $0xf8] sm:$0xff]
        %v969 = vld [vmem:[%s693 + $0x100] sm:$0xff]
        %v970 = vld [vmem:[%s693 + $0x108] sm:$0xff]
        %v971 = vld [vmem:[%s693 + $0x110] sm:$0xff]
        %v972 = vld [vmem:[%s693 + $0x118] sm:$0xff]
        %v973 = vld [vmem:[%s693 + $0x120] sm:$0xff]
        %v974 = vld [vmem:[%s693 + $0x128] sm:$0xff]
        %v975 = vld [vmem:[%s693 + $0x130] sm:$0xff]
        %v976 = vld [vmem:[%s693 + $0x138] sm:$0xff]
        %v977 = vld [vmem:[%s693 + $0x140] sm:$0xff]
        %v978 = vld [vmem:[%s693 + $0x148] sm:$0xff]
        %v979 = vld [vmem:[%s693 + $0x150] sm:$0xff]
        %v980 = vld [vmem:[%s693 + $0x158] sm:$0xff]
        %v981 = vld [vmem:[%s693 + $0x160] sm:$0xff]
        %v982 = vld [vmem:[%s693 + $0x168] sm:$0xff]
        %v983 = vld [vmem:[%s693 + $0x170] sm:$0xff]
        %v984 = vld [vmem:[%s693 + $0x178] sm:$0xff]
        %v985 = vld [vmem:[%s693 + $0x180] sm:$0xff]
        %v986 = vld [vmem:[%s693 + $0x188] sm:$0xff]
        %v987 = vld [vmem:[%s693 + $0x190] sm:$0xff]
        %v988 = vld [vmem:[%s693 + $0x198] sm:$0xff]
        %v989 = vld [vmem:[%s693 + $0x1a0] sm:$0xff]
        %v990 = vld [vmem:[%s693 + $0x1a8] sm:$0xff]
        %v991 = vld [vmem:[%s693 + $0x1b0] sm:$0xff]
        %v992 = vld [vmem:[%s693 + $0x1b8] sm:$0xff]
        %v993 = vld [vmem:[%s693 + $0x1c0] sm:$0xff]
        %v994 = vld [vmem:[%s693 + $0x1c8] sm:$0xff]
        %v995 = vld [vmem:[%s693 + $0x1d0] sm:$0xff]
        %v996 = vld [vmem:[%s693 + $0x1d8] sm:$0xff]
        %v997 = vld [vmem:[%s693 + $0x1e0] sm:$0xff]
        %v998 = vld [vmem:[%s693 + $0x1e8] sm:$0xff]
        %v999 = vld [vmem:[%s693 + $0x1f0] sm:$0xff]
        %v1000 = vld [vmem:[%s693 + $0x1f8] sm:$0xff]
        %v1001 = vld [vmem:[%s693 + $0x200] sm:$0xff]
        %v1002 = vld [vmem:[%s693 + $0x208] sm:$0xff]
        %v1003 = vld [vmem:[%s693 + $0x210] sm:$0xff]
        %v1004 = vld [vmem:[%s693 + $0x218] sm:$0xff]
        %v1005 = vld [vmem:[%s693 + $0x220] sm:$0xff]
        %v1006 = vld [vmem:[%s693 + $0x228] sm:$0xff]
        %v1007 = vld [vmem:[%s693 + $0x230] sm:$0xff]
        %v1008 = vld [vmem:[%s693 + $0x238] sm:$0xff]
        %v1009 = vld [vmem:[%s693 + $0x240] sm:$0xff]
        %v1010 = vld [vmem:[%s693 + $0x248] sm:$0xff]
        %v1011 = vld [vmem:[%s693 + $0x250] sm:$0xff]
        %v1012 = vld [vmem:[%s693 + $0x258] sm:$0xff]
        %v1013 = vld [vmem:[%s693 + $0x260] sm:$0xff]
        %v1014 = vld [vmem:[%s693 + $0x268] sm:$0xff]
        %v1015 = vld [vmem:[%s693 + $0x270] sm:$0xff]
        %v1016 = vld [vmem:[%s693 + $0x278] sm:$0xff]
        %v1017 = vld [vmem:[%s693 + $0x280] sm:$0xff]
        %v1018 = vld [vmem:[%s693 + $0x288] sm:$0xff]
        %v1019 = vld [vmem:[%s693 + $0x290] sm:$0xff]
        %v1020 = vld [vmem:[%s693 + $0x298] sm:$0xff]
        %v1021 = vld [vmem:[%s693 + $0x2a0] sm:$0xff]
        %v1022 = vld [vmem:[%s693 + $0x2a8] sm:$0xff]
        %v1023 = vld [vmem:[%s693 + $0x2b0] sm:$0xff]
        %v1024 = vld [vmem:[%s693 + $0x2b8] sm:$0xff]
        %v1025 = vld [vmem:[%s693 + $0x2c0] sm:$0xff]
        %v1026 = vld [vmem:[%s693 + $0x2c8] sm:$0xff]
        %v1027 = vld [vmem:[%s693 + $0x2d0] sm:$0xff]
        %v1028 = vld [vmem:[%s693 + $0x2d8] sm:$0xff]
        %v1029 = vld [vmem:[%s693 + $0x2e0] sm:$0xff]
        %v1030 = vld [vmem:[%s693 + $0x2e8] sm:$0xff]
        %v1031 = vld [vmem:[%s693 + $0x2f0] sm:$0xff]
        %v1032 = vld [vmem:[%s693 + $0x2f8] sm:$0xff]
        %v1033 = vld [vmem:[%s841] sm:$0x3f]
        %v1035 = vlaneseq
        %v1036 = vshrl.u32 %v1035, 7
        %v1037 = vsub.s32 0, %v1036
        %v1038 = vrot.slane %v1033, %v1037
        %v1039 = vlaneseq
        %v1040 = vshrl.u32 %v1039, 7
        %v1041 = vsub.s32 1, %v1040
        %v1042 = vrot.slane %v1033, %v1041
        %v1043 = vlaneseq
        %v1044 = vshrl.u32 %v1043, 7
        %v1045 = vsub.s32 2, %v1044
        %v1046 = vrot.slane %v1033, %v1045
        %v1047 = vlaneseq
        %v1048 = vshrl.u32 %v1047, 7
        %v1049 = vsub.s32 3, %v1048
        %v1050 = vrot.slane %v1033, %v1049
        %v1051 = vlaneseq
        %v1052 = vshrl.u32 %v1051, 7
        %v1053 = vsub.s32 4, %v1052
        %v1054 = vrot.slane %v1033, %v1053
        %v1055 = vlaneseq
        %v1056 = vshrl.u32 %v1055, 7
        %v1057 = vsub.s32 5, %v1056
        %v1058 = vrot.slane %v1033, %v1057
        %v1161 = vunpack.c.l.b16 %v937
        %v1162 = vunpack.c.h.b16 %v937
        %v1163 = vunpack.c.l.b16 %v938
        %v1164 = vunpack.c.h.b16 %v938
        %v1165 = vunpack.c.l.b16 %v939
        %v1166 = vunpack.c.h.b16 %v939
        %v1167 = vunpack.c.l.b16 %v940
        %v1168 = vunpack.c.h.b16 %v940
        %v1169 = vunpack.c.l.b16 %v941
        %v1170 = vunpack.c.h.b16 %v941
        %v1171 = vunpack.c.l.b16 %v942
        %v1172 = vunpack.c.h.b16 %v942
        %v1173 = vunpack.c.l.b16 %v943
        %v1174 = vunpack.c.h.b16 %v943
        %v1175 = vunpack.c.l.b16 %v944
        %v1176 = vunpack.c.h.b16 %v944
        %v1177 = vunpack.c.l.b16 %v945
        %v1178 = vunpack.c.h.b16 %v945
        %v1179 = vunpack.c.l.b16 %v946
        %v1180 = vunpack.c.h.b16 %v946
        %v1181 = vunpack.c.l.b16 %v947
        %v1182 = vunpack.c.h.b16 %v947
        %v1183 = vunpack.c.l.b16 %v948
        %v1184 = vunpack.c.h.b16 %v948
        %v1185 = vunpack.c.l.b16 %v949
        %v1186 = vunpack.c.h.b16 %v949
        %v1187 = vunpack.c.l.b16 %v950
        %v1188 = vunpack.c.h.b16 %v950
        %v1189 = vunpack.c.l.b16 %v951
        %v1190 = vunpack.c.h.b16 %v951
        %v1191 = vunpack.c.l.b16 %v952
        %v1192 = vunpack.c.h.b16 %v952
        %v1193 = vunpack.c.l.b16 %v953
        %v1194 = vunpack.c.h.b16 %v953
        %v1195 = vunpack.c.l.b16 %v954
        %v1196 = vunpack.c.h.b16 %v954
        %v1197 = vunpack.c.l.b16 %v955
        %v1198 = vunpack.c.h.b16 %v955
        %v1199 = vunpack.c.l.b16 %v956
        %v1200 = vunpack.c.h.b16 %v956
        %v1201 = vunpack.c.l.b16 %v957
        %v1202 = vunpack.c.h.b16 %v957
        %v1203 = vunpack.c.l.b16 %v958
        %v1204 = vunpack.c.h.b16 %v958
        %v1205 = vunpack.c.l.b16 %v959
        %v1206 = vunpack.c.h.b16 %v959
        %v1207 = vunpack.c.l.b16 %v960
        %v1208 = vunpack.c.h.b16 %v960
        %v1209 = vunpack.c.l.b16 %v961
        %v1210 = vunpack.c.h.b16 %v961
        %v1211 = vunpack.c.l.b16 %v962
        %v1212 = vunpack.c.h.b16 %v962
        %v1213 = vunpack.c.l.b16 %v963
        %v1214 = vunpack.c.h.b16 %v963
        %v1215 = vunpack.c.l.b16 %v964
        %v1216 = vunpack.c.h.b16 %v964
        %v1217 = vunpack.c.l.b16 %v965
        %v1218 = vunpack.c.h.b16 %v965
        %v1219 = vunpack.c.l.b16 %v966
        %v1220 = vunpack.c.h.b16 %v966
        %v1221 = vunpack.c.l.b16 %v967
        %v1222 = vunpack.c.h.b16 %v967
        %v1223 = vunpack.c.l.b16 %v968
        %v1224 = vunpack.c.h.b16 %v968
        %v1225 = vunpack.c.l.b16 %v969
        %v1226 = vunpack.c.h.b16 %v969
        %v1227 = vunpack.c.l.b16 %v970
        %v1228 = vunpack.c.h.b16 %v970
        %v1229 = vunpack.c.l.b16 %v971
        %v1230 = vunpack.c.h.b16 %v971
        %v1231 = vunpack.c.l.b16 %v972
        %v1232 = vunpack.c.h.b16 %v972
        %v1233 = vunpack.c.l.b16 %v973
        %v1234 = vunpack.c.h.b16 %v973
        %v1235 = vunpack.c.l.b16 %v974
        %v1236 = vunpack.c.h.b16 %v974
        %v1237 = vunpack.c.l.b16 %v975
        %v1238 = vunpack.c.h.b16 %v975
        %v1239 = vunpack.c.l.b16 %v976
        %v1240 = vunpack.c.h.b16 %v976
        %v1241 = vunpack.c.l.b16 %v977
        %v1242 = vunpack.c.h.b16 %v977
        %v1243 = vunpack.c.l.b16 %v978
        %v1244 = vunpack.c.h.b16 %v978
        %v1245 = vunpack.c.l.b16 %v979
        %v1246 = vunpack.c.h.b16 %v979
        %v1247 = vunpack.c.l.b16 %v980
        %v1248 = vunpack.c.h.b16 %v980
        %v1249 = vunpack.c.l.b16 %v981
        %v1250 = vunpack.c.h.b16 %v981
        %v1251 = vunpack.c.l.b16 %v982
        %v1252 = vunpack.c.h.b16 %v982
        %v1253 = vunpack.c.l.b16 %v983
        %v1254 = vunpack.c.h.b16 %v983
        %v1255 = vunpack.c.l.b16 %v984
        %v1256 = vunpack.c.h.b16 %v984
        %v1257 = vunpack.c.l.b16 %v985
        %v1258 = vunpack.c.h.b16 %v985
        %v1259 = vunpack.c.l.b16 %v986
        %v1260 = vunpack.c.h.b16 %v986
        %v1261 = vunpack.c.l.b16 %v987
        %v1262 = vunpack.c.h.b16 %v987
        %v1263 = vunpack.c.l.b16 %v988
        %v1264 = vunpack.c.h.b16 %v988
        %v1265 = vunpack.c.l.b16 %v989
        %v1266 = vunpack.c.h.b16 %v989
        %v1267 = vunpack.c.l.b16 %v990
        %v1268 = vunpack.c.h.b16 %v990
        %v1269 = vunpack.c.l.b16 %v991
        %v1270 = vunpack.c.h.b16 %v991
        %v1271 = vunpack.c.l.b16 %v992
        %v1272 = vunpack.c.h.b16 %v992
        %v1273 = vunpack.c.l.b16 %v993
        %v1274 = vunpack.c.h.b16 %v993
        %v1275 = vunpack.c.l.b16 %v994
        %v1276 = vunpack.c.h.b16 %v994
        %v1277 = vunpack.c.l.b16 %v995
        %v1278 = vunpack.c.h.b16 %v995
        %v1279 = vunpack.c.l.b16 %v996
        %v1280 = vunpack.c.h.b16 %v996
        %v1281 = vunpack.c.l.b16 %v997
        %v1282 = vunpack.c.h.b16 %v997
        %v1283 = vunpack.c.l.b16 %v998
        %v1284 = vunpack.c.h.b16 %v998
        %v1285 = vunpack.c.l.b16 %v999
        %v1286 = vunpack.c.h.b16 %v999
        %v1287 = vunpack.c.l.b16 %v1000
        %v1288 = vunpack.c.h.b16 %v1000
        %v1289 = vunpack.c.l.b16 %v1001
        %v1290 = vunpack.c.h.b16 %v1001
        %v1291 = vunpack.c.l.b16 %v1002
        %v1292 = vunpack.c.h.b16 %v1002
        %v1293 = vunpack.c.l.b16 %v1003
        %v1294 = vunpack.c.h.b16 %v1003
        %v1295 = vunpack.c.l.b16 %v1004
        %v1296 = vunpack.c.h.b16 %v1004
        %v1297 = vunpack.c.l.b16 %v1005
        %v1298 = vunpack.c.h.b16 %v1005
        %v1299 = vunpack.c.l.b16 %v1006
        %v1300 = vunpack.c.h.b16 %v1006
        %v1301 = vunpack.c.l.b16 %v1007
        %v1302 = vunpack.c.h.b16 %v1007
        %v1303 = vunpack.c.l.b16 %v1008
        %v1304 = vunpack.c.h.b16 %v1008
        %v1305 = vunpack.c.l.b16 %v1009
        %v1306 = vunpack.c.h.b16 %v1009
        %v1307 = vunpack.c.l.b16 %v1010
        %v1308 = vunpack.c.h.b16 %v1010
        %v1309 = vunpack.c.l.b16 %v1011
        %v1310 = vunpack.c.h.b16 %v1011
        %v1311 = vunpack.c.l.b16 %v1012
        %v1312 = vunpack.c.h.b16 %v1012
        %v1313 = vunpack.c.l.b16 %v1013
        %v1314 = vunpack.c.h.b16 %v1013
        %v1315 = vunpack.c.l.b16 %v1014
        %v1316 = vunpack.c.h.b16 %v1014
        %v1317 = vunpack.c.l.b16 %v1015
        %v1318 = vunpack.c.h.b16 %v1015
        %v1319 = vunpack.c.l.b16 %v1016
        %v1320 = vunpack.c.h.b16 %v1016
        %v1321 = vunpack.c.l.b16 %v1017
        %v1322 = vunpack.c.h.b16 %v1017
        %v1323 = vunpack.c.l.b16 %v1018
        %v1324 = vunpack.c.h.b16 %v1018
        %v1325 = vunpack.c.l.b16 %v1019
        %v1326 = vunpack.c.h.b16 %v1019
        %v1327 = vunpack.c.l.b16 %v1020
        %v1328 = vunpack.c.h.b16 %v1020
        %v1329 = vunpack.c.l.b16 %v1021
        %v1330 = vunpack.c.h.b16 %v1021
        %v1331 = vunpack.c.l.b16 %v1022
        %v1332 = vunpack.c.h.b16 %v1022
        %v1333 = vunpack.c.l.b16 %v1023
        %v1334 = vunpack.c.h.b16 %v1023
        %v1335 = vunpack.c.l.b16 %v1024
        %v1336 = vunpack.c.h.b16 %v1024
        %v1337 = vunpack.c.l.b16 %v1025
        %v1338 = vunpack.c.h.b16 %v1025
        %v1339 = vunpack.c.l.b16 %v1026
        %v1340 = vunpack.c.h.b16 %v1026
        %v1341 = vunpack.c.l.b16 %v1027
        %v1342 = vunpack.c.h.b16 %v1027
        %v1343 = vunpack.c.l.b16 %v1028
        %v1344 = vunpack.c.h.b16 %v1028
        %v1345 = vunpack.c.l.b16 %v1029
        %v1346 = vunpack.c.h.b16 %v1029
        %v1347 = vunpack.c.l.b16 %v1030
        %v1348 = vunpack.c.h.b16 %v1030
        %v1349 = vunpack.c.l.b16 %v1031
        %v1350 = vunpack.c.h.b16 %v1031
        %v1351 = vunpack.c.l.b16 %v1032
        %v1352 = vunpack.c.h.b16 %v1032
        %v1353 = vpack.c.b16 %v1167, %v1161
        %v1354 = vpack.c.b16 %v1168, %v1162
        %v1355 = vpack.c.b16 %v1169, %v1163
        %v1356 = vpack.c.b16 %v1170, %v1164
        %v1357 = vpack.c.b16 %v1171, %v1165
        %v1358 = vpack.c.b16 %v1172, %v1166
        %v1359 = vpack.c.b16 %v1179, %v1173
        %v1360 = vpack.c.b16 %v1180, %v1174
        %v1361 = vpack.c.b16 %v1181, %v1175
        %v1362 = vpack.c.b16 %v1182, %v1176
        %v1363 = vpack.c.b16 %v1183, %v1177
        %v1364 = vpack.c.b16 %v1184, %v1178
        %v1365 = vpack.c.b16 %v1191, %v1185
        %v1366 = vpack.c.b16 %v1192, %v1186
        %v1367 = vpack.c.b16 %v1193, %v1187
        %v1368 = vpack.c.b16 %v1194, %v1188
        %v1369 = vpack.c.b16 %v1195, %v1189
        %v1370 = vpack.c.b16 %v1196, %v1190
        %v1371 = vpack.c.b16 %v1203, %v1197
        %v1372 = vpack.c.b16 %v1204, %v1198
        %v1373 = vpack.c.b16 %v1205, %v1199
        %v1374 = vpack.c.b16 %v1206, %v1200
        %v1375 = vpack.c.b16 %v1207, %v1201
        %v1376 = vpack.c.b16 %v1208, %v1202
        %v1377 = vpack.c.b16 %v1215, %v1209
        %v1378 = vpack.c.b16 %v1216, %v1210
        %v1379 = vpack.c.b16 %v1217, %v1211
        %v1380 = vpack.c.b16 %v1218, %v1212
        %v1381 = vpack.c.b16 %v1219, %v1213
        %v1382 = vpack.c.b16 %v1220, %v1214
        %v1383 = vpack.c.b16 %v1227, %v1221
        %v1384 = vpack.c.b16 %v1228, %v1222
        %v1385 = vpack.c.b16 %v1229, %v1223
        %v1386 = vpack.c.b16 %v1230, %v1224
        %v1387 = vpack.c.b16 %v1231, %v1225
        %v1388 = vpack.c.b16 %v1232, %v1226
        %v1389 = vpack.c.b16 %v1239, %v1233
        %v1390 = vpack.c.b16 %v1240, %v1234
        %v1391 = vpack.c.b16 %v1241, %v1235
        %v1392 = vpack.c.b16 %v1242, %v1236
        %v1393 = vpack.c.b16 %v1243, %v1237
        %v1394 = vpack.c.b16 %v1244, %v1238
        %v1395 = vpack.c.b16 %v1251, %v1245
        %v1396 = vpack.c.b16 %v1252, %v1246
        %v1397 = vpack.c.b16 %v1253, %v1247
        %v1398 = vpack.c.b16 %v1254, %v1248
        %v1399 = vpack.c.b16 %v1255, %v1249
        %v1400 = vpack.c.b16 %v1256, %v1250
        %v1401 = vpack.c.b16 %v1263, %v1257
        %v1402 = vpack.c.b16 %v1264, %v1258
        %v1403 = vpack.c.b16 %v1265, %v1259
        %v1404 = vpack.c.b16 %v1266, %v1260
        %v1405 = vpack.c.b16 %v1267, %v1261
        %v1406 = vpack.c.b16 %v1268, %v1262
        %v1407 = vpack.c.b16 %v1275, %v1269
        %v1408 = vpack.c.b16 %v1276, %v1270
        %v1409 = vpack.c.b16 %v1277, %v1271
        %v1410 = vpack.c.b16 %v1278, %v1272
        %v1411 = vpack.c.b16 %v1279, %v1273
        %v1412 = vpack.c.b16 %v1280, %v1274
        %v1413 = vpack.c.b16 %v1287, %v1281
        %v1414 = vpack.c.b16 %v1288, %v1282
        %v1415 = vpack.c.b16 %v1289, %v1283
        %v1416 = vpack.c.b16 %v1290, %v1284
        %v1417 = vpack.c.b16 %v1291, %v1285
        %v1418 = vpack.c.b16 %v1292, %v1286
        %v1419 = vpack.c.b16 %v1299, %v1293
        %v1420 = vpack.c.b16 %v1300, %v1294
        %v1421 = vpack.c.b16 %v1301, %v1295
        %v1422 = vpack.c.b16 %v1302, %v1296
        %v1423 = vpack.c.b16 %v1303, %v1297
        %v1424 = vpack.c.b16 %v1304, %v1298
        %v1425 = vpack.c.b16 %v1311, %v1305
        %v1426 = vpack.c.b16 %v1312, %v1306
        %v1427 = vpack.c.b16 %v1313, %v1307
        %v1428 = vpack.c.b16 %v1314, %v1308
        %v1429 = vpack.c.b16 %v1315, %v1309
        %v1430 = vpack.c.b16 %v1316, %v1310
        %v1431 = vpack.c.b16 %v1323, %v1317
        %v1432 = vpack.c.b16 %v1324, %v1318
        %v1433 = vpack.c.b16 %v1325, %v1319
        %v1434 = vpack.c.b16 %v1326, %v1320
        %v1435 = vpack.c.b16 %v1327, %v1321
        %v1436 = vpack.c.b16 %v1328, %v1322
        %v1437 = vpack.c.b16 %v1335, %v1329
        %v1438 = vpack.c.b16 %v1336, %v1330
        %v1439 = vpack.c.b16 %v1337, %v1331
        %v1440 = vpack.c.b16 %v1338, %v1332
        %v1441 = vpack.c.b16 %v1339, %v1333
        %v1442 = vpack.c.b16 %v1340, %v1334
        %v1443 = vpack.c.b16 %v1347, %v1341
        %v1444 = vpack.c.b16 %v1348, %v1342
        %v1445 = vpack.c.b16 %v1349, %v1343
        %v1446 = vpack.c.b16 %v1350, %v1344
        %v1447 = vpack.c.b16 %v1351, %v1345
        %v1448 = vpack.c.b16 %v1352, %v1346
        %1545 = vmatprep.subr.bf16.mxu0 %v1354
        %1546 = vmatpush1.bf16.msra.mxu0 %v1353
        %1547 = vmatprep.subr.bf16.mxu0 %v1360
        %1548 = vmatpush1.bf16.msra.mxu0 %v1359
        %1549 = vmatprep.subr.bf16.mxu0 %v1366
        %1550 = vmatpush1.bf16.msra.mxu0 %v1365
        %1551 = vmatprep.subr.bf16.mxu0 %v1372
        %1552 = vmatpush1.bf16.msra.mxu0 %v1371
        %1553 = vmatprep.subr.bf16.mxu0 %v1378
        %1554 = vmatpush1.bf16.msra.mxu0 %v1377
        %1555 = vmatprep.subr.bf16.mxu0 %v1384
        %1556 = vmatpush1.bf16.msra.mxu0 %v1383
        %1557 = vmatprep.subr.bf16.mxu0 %v1390
        %1558 = vmatpush1.bf16.msra.mxu0 %v1389
        %1559 = vmatprep.subr.bf16.mxu0 %v1396
        %1560 = vmatpush1.bf16.msra.mxu0 %v1395
        %1561 = vmatprep.subr.bf16.mxu0 %v1402
        %1562 = vmatpush1.bf16.msra.mxu0 %v1401
        %1563 = vmatprep.subr.bf16.mxu0 %v1408
        %1564 = vmatpush1.bf16.msra.mxu0 %v1407
        %1565 = vmatprep.subr.bf16.mxu0 %v1414
        %1566 = vmatpush1.bf16.msra.mxu0 %v1413
        %1567 = vmatprep.subr.bf16.mxu0 %v1420
        %1568 = vmatpush1.bf16.msra.mxu0 %v1419
        %1569 = vmatprep.subr.bf16.mxu0 %v1426
        %1570 = vmatpush1.bf16.msra.mxu0 %v1425
        %1571 = vmatprep.subr.bf16.mxu0 %v1432
        %1572 = vmatpush1.bf16.msra.mxu0 %v1431
        %1573 = vmatprep.subr.bf16.mxu0 %v1438
        %1574 = vmatpush1.bf16.msra.mxu0 %v1437
        %1575 = vmatprep.subr.bf16.mxu0 %v1444
        %1576 = vmatpush1.bf16.msra.mxu0 %v1443
        %1577 = vmatprep.mubr.bf16.mxu0 %v936
        %1578 = vmatmul.mubr.bf16.gmra.mrb[0].mxu0 %v935
        %v1579 = vpop.f32.mrb[0].mxu0
        %v1580 = vadd.f32 %v1038, %v1579
        %v1581 = vpop.f32.mrb[0].mxu0
        %v1582 = vadd.f32 %v1042, %v1581
        %v1583 = vpop.f32.mrb[0].mxu0
        %v1584 = vpop.f32.mrb[0].mxu0
        %1585 = vdwg.mxu0
        %1586 = vmatprep.subr.bf16.mxu0 %v1356
        %1587 = vmatpush1.bf16.msra.mxu0 %v1355
        %1588 = vmatprep.subr.bf16.mxu0 %v1362
        %1589 = vmatpush1.bf16.msra.mxu0 %v1361
        %1590 = vmatprep.subr.bf16.mxu0 %v1368
        %1591 = vmatpush1.bf16.msra.mxu0 %v1367
        %1592 = vmatprep.subr.bf16.mxu0 %v1374
        %1593 = vmatpush1.bf16.msra.mxu0 %v1373
        %1594 = vmatprep.subr.bf16.mxu0 %v1380
        %1595 = vmatpush1.bf16.msra.mxu0 %v1379
        %1596 = vmatprep.subr.bf16.mxu0 %v1386
        %1597 = vmatpush1.bf16.msra.mxu0 %v1385
        %1598 = vmatprep.subr.bf16.mxu0 %v1392
        %1599 = vmatpush1.bf16.msra.mxu0 %v1391
        %1600 = vmatprep.subr.bf16.mxu0 %v1398
        %1601 = vmatpush1.bf16.msra.mxu0 %v1397
        %1602 = vmatprep.subr.bf16.mxu0 %v1404
        %1603 = vmatpush1.bf16.msra.mxu0 %v1403
        %1604 = vmatprep.subr.bf16.mxu0 %v1410
        %1605 = vmatpush1.bf16.msra.mxu0 %v1409
        %1606 = vmatprep.subr.bf16.mxu0 %v1416
        %1607 = vmatpush1.bf16.msra.mxu0 %v1415
        %1608 = vmatprep.subr.bf16.mxu0 %v1422
        %1609 = vmatpush1.bf16.msra.mxu0 %v1421
        %1610 = vmatprep.subr.bf16.mxu0 %v1428
        %1611 = vmatpush1.bf16.msra.mxu0 %v1427
        %1612 = vmatprep.subr.bf16.mxu0 %v1434
        %1613 = vmatpush1.bf16.msra.mxu0 %v1433
        %1614 = vmatprep.subr.bf16.mxu0 %v1440
        %1615 = vmatpush1.bf16.msra.mxu0 %v1439
        %1616 = vmatprep.subr.bf16.mxu0 %v1446
        %1617 = vmatpush1.bf16.msra.mxu0 %v1445
        %1618 = vmatprep.mubr.bf16.mxu0 %v936
        %1619 = vmatmul.mubr.bf16.gmra.mrb[0].mxu0 %v935
        %v1620 = vpop.f32.mrb[0].mxu0
        %v1621 = vadd.f32 %v1046, %v1620
        %v1622 = vpop.f32.mrb[0].mxu0
        %v1623 = vadd.f32 %v1050, %v1622
        %v1624 = vpop.f32.mrb[0].mxu0
        %v1625 = vpop.f32.mrb[0].mxu0
        %1626 = vdwg.mxu0
        %1627 = vmatprep.subr.bf16.mxu0 %v1358
        %1628 = vmatpush1.bf16.msra.mxu0 %v1357
        %1629 = vmatprep.subr.bf16.mxu0 %v1364
        %1630 = vmatpush1.bf16.msra.mxu0 %v1363
        %1631 = vmatprep.subr.bf16.mxu0 %v1370
        %1632 = vmatpush1.bf16.msra.mxu0 %v1369
        %1633 = vmatprep.subr.bf16.mxu0 %v1376
        %1634 = vmatpush1.bf16.msra.mxu0 %v1375
        %1635 = vmatprep.subr.bf16.mxu0 %v1382
        %1636 = vmatpush1.bf16.msra.mxu0 %v1381
        %1637 = vmatprep.subr.bf16.mxu0 %v1388
        %1638 = vmatpush1.bf16.msra.mxu0 %v1387
        %1639 = vmatprep.subr.bf16.mxu0 %v1394
        %1640 = vmatpush1.bf16.msra.mxu0 %v1393
        %1641 = vmatprep.subr.bf16.mxu0 %v1400
        %1642 = vmatpush1.bf16.msra.mxu0 %v1399
        %1643 = vmatprep.subr.bf16.mxu0 %v1406
        %1644 = vmatpush1.bf16.msra.mxu0 %v1405
        %1645 = vmatprep.subr.bf16.mxu0 %v1412
        %1646 = vmatpush1.bf16.msra.mxu0 %v1411
        %1647 = vmatprep.subr.bf16.mxu0 %v1418
        %1648 = vmatpush1.bf16.msra.mxu0 %v1417
        %1649 = vmatprep.subr.bf16.mxu0 %v1424
        %1650 = vmatpush1.bf16.msra.mxu0 %v1423
        %1651 = vmatprep.subr.bf16.mxu0 %v1430
        %1652 = vmatpush1.bf16.msra.mxu0 %v1429
        %1653 = vmatprep.subr.bf16.mxu0 %v1436
        %1654 = vmatpush1.bf16.msra.mxu0 %v1435
        %1655 = vmatprep.subr.bf16.mxu0 %v1442
        %1656 = vmatpush1.bf16.msra.mxu0 %v1441
        %1657 = vmatprep.subr.bf16.mxu0 %v1448
        %1658 = vmatpush1.bf16.msra.mxu0 %v1447
        %1659 = vmatprep.mubr.bf16.mxu0 %v936
        %1660 = vmatmul.mubr.bf16.gmra.mrb[0].mxu0 %v935
        %v1661 = vpop.f32.mrb[0].mxu0
        %v1662 = vadd.f32 %v1054, %v1661
        %v1663 = vpop.f32.mrb[0].mxu0
        %v1664 = vadd.f32 %v1058, %v1663
        %v1665 = vpop.f32.mrb[0].mxu0
        %v1666 = vpop.f32.mrb[0].mxu0
        %1667 = vdwg.mxu0
        %v1668 = vpack.c.bf16 %v1580, %v1580
        %v1669 = vpack.c.bf16 %v1582, %v1582
        %v1670 = vpack.c.bf16 %v1621, %v1621
        %v1671 = vpack.c.bf16 %v1623, %v1623
        %v1672 = vpack.c.bf16 %v1662, %v1662
        %v1673 = vpack.c.bf16 %v1664, %v1664
        %v1674 = vld [vmem:[%s837] sm:$0x1]
        %1675 = vmatprep.subr.bf16.mxu0 0
        %1676 = vmatpush1.bf16.xpose.msra.mxu0 %v1670
        %1677 = vmatprep.subr.bf16.mxu0 0
        %1678 = vmatpush1.bf16.xpose.msra.mxu0 0
        %1679 = vmatprep.subr.bf16.mxu0 0
        %1680 = vmatpush1.bf16.xpose.msra.mxu0 0
        %1681 = vmatprep.subr.bf16.mxu0 0
        %1682 = vmatpush1.bf16.xpose.msra.mxu0 0
        %1683 = vmatprep.subr.bf16.mxu0 0
        %1684 = vmatpush1.bf16.xpose.msra.mxu0 0
        %1685 = vmatprep.subr.bf16.mxu0 0
        %1686 = vmatpush1.bf16.xpose.msra.mxu0 0
        %1687 = vmatprep.subr.bf16.mxu0 0
        %1688 = vmatpush1.bf16.xpose.msra.mxu0 0
        %1689 = vmatprep.subr.bf16.mxu0 0
        %1690 = vmatpush1.bf16.xpose.msra.mxu0 0
        %1691 = vmatprep.subr.bf16.mxu0 0
        %1692 = vmatpush1.bf16.xpose.msra.mxu0 0
        %1693 = vmatprep.subr.bf16.mxu0 0
        %1694 = vmatpush1.bf16.xpose.msra.mxu0 0
        %1695 = vmatprep.subr.bf16.mxu0 0
        %1696 = vmatpush1.bf16.xpose.msra.mxu0 0
        %1697 = vmatprep.subr.bf16.mxu0 0
        %1698 = vmatpush1.bf16.xpose.msra.mxu0 0
        %1699 = vmatprep.subr.bf16.mxu0 0
        %1700 = vmatpush1.bf16.xpose.msra.mxu0 0
        %1701 = vmatprep.subr.bf16.mxu0 0
        %1702 = vmatpush1.bf16.xpose.msra.mxu0 0
        %1703 = vmatprep.subr.bf16.mxu0 0
        %1704 = vmatpush1.bf16.xpose.msra.mxu0 0
        %1705 = vmatprep.subr.bf16.mxu0 0
        %1706 = vmatpush1.bf16.xpose.msra.mxu0 0
        %1707 = vmatprep.mubr.bf16.mxu0 0
        %1708 = vmatmul.mubr.bf16.gmra.mrb[0].mxu0 %v1668
        %v1709 = vpop.f32.mrb[0].mxu0
        %v1710 = vadd.f32 0.0, %v1709
        %v1711 = vpop.f32.mrb[0].mxu0
        %v1712 = vpop.f32.mrb[0].mxu0
        %v1713 = vpop.f32.mrb[0].mxu0
        %1714 = vdwg.mxu0
        %v1715 = vmul.f32 %v1710, 0.088388346
        %v1717 = vlaneseq
        %v1718 = vshrl.u32 %v1717, 7
        %v1719 = vsub.s32 0, %v1718
        %v1720 = vrot.slane %v1674, %v1719
        %v1722 = vadd.f32 %v1715, %v1720
        %vm1723 = vcmask 64512
        %v1724 = vsel %vm1723, %v1722, -inf
        %1725 = vmax.xlane.f32.xlu0 %v1724
        %v1726 = vpop.xlane.xlu0 %1725
        %v1727 = vsub.f32 %v1722, %v1726
        %v1728 = vmul.f32 %v1727, 1.442695
        %v1729 = vpow.pop %v1728
        %v1730 = vsel %vm1723, %v1729, 0.0
        %1731 = vadd.xlane.f32.xlu0 %v1730
        %v1732 = vpop.xlane.xlu0 %1731
        %v1733 = vrcp.pop %v1732
        %v1734 = vmul.f32 %v1729, %v1733
        %v1735 = vpack.c.bf16 %v1734, %v1734
        %v1737 = vsel %vm1723, %v1735, 0
        %vm1739 = vcmask 1043456
        %v1741 = vsel %vm1739, %v1672, 0
        %1743 = vmatprep.subr.bf16.mxu0 0
        %1744 = vmatpush1.bf16.msra.mxu0 %v1741
        %1745 = vmatprep.subr.bf16.mxu0 0
        %1746 = vmatpush1.bf16.msra.mxu0 0
        %1747 = vmatprep.subr.bf16.mxu0 0
        %1748 = vmatpush1.bf16.msra.mxu0 0
        %1749 = vmatprep.subr.bf16.mxu0 0
        %1750 = vmatpush1.bf16.msra.mxu0 0
        %1751 = vmatprep.subr.bf16.mxu0 0
        %1752 = vmatpush1.bf16.msra.mxu0 0
        %1753 = vmatprep.subr.bf16.mxu0 0
        %1754 = vmatpush1.bf16.msra.mxu0 0
        %1755 = vmatprep.subr.bf16.mxu0 0
        %1756 = vmatpush1.bf16.msra.mxu0 0
        %1757 = vmatprep.subr.bf16.mxu0 0
        %1758 = vmatpush1.bf16.msra.mxu0 0
        %1759 = vmatprep.subr.bf16.mxu0 0
        %1760 = vmatpush1.bf16.msra.mxu0 0
        %1761 = vmatprep.subr.bf16.mxu0 0
        %1762 = vmatpush1.bf16.msra.mxu0 0
        %1763 = vmatprep.subr.bf16.mxu0 0
        %1764 = vmatpush1.bf16.msra.mxu0 0
        %1765 = vmatprep.subr.bf16.mxu0 0
        %1766 = vmatpush1.bf16.msra.mxu0 0
        %1767 = vmatprep.subr.bf16.mxu0 0
        %1768 = vmatpush1.bf16.msra.mxu0 0
        %1769 = vmatprep.subr.bf16.mxu0 0
        %1770 = vmatpush1.bf16.msra.mxu0 0
        %1771 = vmatprep.subr.bf16.mxu0 0
        %1772 = vmatpush1.bf16.msra.mxu0 0
        %1773 = vmatprep.subr.bf16.mxu0 0
        %1774 = vmatpush1.bf16.msra.mxu0 0
        %1775 = vmatprep.mubr.bf16.mxu0 0
        %1776 = vmatmul.mubr.bf16.gmra.mrb[0].mxu0 %v1737
        %v1777 = vpop.f32.mrb[0].mxu0
        %v1778 = vadd.f32 0.0, %v1777
        %v1779 = vpop.f32.mrb[0].mxu0
        %v1780 = vpop.f32.mrb[0].mxu0
        %v1781 = vpop.f32.mrb[0].mxu0
        %1782 = vdwg.mxu0
        %v1783 = vpack.c.bf16 %v1778, %v1778
        %1784 = vst [vmem:[#allocation3] sm:$0xf] %v1783
        %1785 = vmatprep.subr.bf16.mxu0 0
        %1786 = vmatpush1.bf16.xpose.msra.mxu0 %v1671
        %1787 = vmatprep.subr.bf16.mxu0 0
        %1788 = vmatpush1.bf16.xpose.msra.mxu0 0
        %1789 = vmatprep.subr.bf16.mxu0 0
        %1790 = vmatpush1.bf16.xpose.msra.mxu0 0
        %1791 = vmatprep.subr.bf16.mxu0 0
        %1792 = vmatpush1.bf16.xpose.msra.mxu0 0
        %1793 = vmatprep.subr.bf16.mxu0 0
        %1794 = vmatpush1.bf16.xpose.msra.mxu0 0
        %1795 = vmatprep.subr.bf16.mxu0 0
        %1796 = vmatpush1.bf16.xpose.msra.mxu0 0
        %1797 = vmatprep.subr.bf16.mxu0 0
        %1798 = vmatpush1.bf16.xpose.msra.mxu0 0
        %1799 = vmatprep.subr.bf16.mxu0 0
        %1800 = vmatpush1.bf16.xpose.msra.mxu0 0
        %1801 = vmatprep.subr.bf16.mxu0 0
        %1802 = vmatpush1.bf16.xpose.msra.mxu0 0
        %1803 = vmatprep.subr.bf16.mxu0 0
        %1804 = vmatpush1.bf16.xpose.msra.mxu0 0
        %1805 = vmatprep.subr.bf16.mxu0 0
        %1806 = vmatpush1.bf16.xpose.msra.mxu0 0
        %1807 = vmatprep.subr.bf16.mxu0 0
        %1808 = vmatpush1.bf16.xpose.msra.mxu0 0
        %1809 = vmatprep.subr.bf16.mxu0 0
        %1810 = vmatpush1.bf16.xpose.msra.mxu0 0
        %1811 = vmatprep.subr.bf16.mxu0 0
        %1812 = vmatpush1.bf16.xpose.msra.mxu0 0
        %1813 = vmatprep.subr.bf16.mxu0 0
        %1814 = vmatpush1.bf16.xpose.msra.mxu0 0
        %1815 = vmatprep.subr.bf16.mxu0 0
        %1816 = vmatpush1.bf16.xpose.msra.mxu0 0
        %1817 = vmatprep.mubr.bf16.mxu0 0
        %1818 = vmatmul.mubr.bf16.gmra.mrb[0].mxu0 %v1669
        %v1819 = vpop.f32.mrb[0].mxu0
        %v1820 = vadd.f32 0.0, %v1819
        %v1821 = vpop.f32.mrb[0].mxu0
        %v1822 = vpop.f32.mrb[0].mxu0
        %v1823 = vpop.f32.mrb[0].mxu0
        %1824 = vdwg.mxu0
        %v1825 = vmul.f32 %v1820, 0.088388346
        %v1826 = vadd.f32 %v1825, %v1720
        %v1827 = vsel %vm1723, %v1826, -inf
        %1828 = vmax.xlane.f32.xlu0 %v1827
        %v1829 = vpop.xlane.xlu0 %1828
        %v1830 = vsub.f32 %v1826, %v1829
        %v1831 = vmul.f32 %v1830, 1.442695
        %v1832 = vpow.pop %v1831
        %v1833 = vsel %vm1723, %v1832, 0.0
        %1834 = vadd.xlane.f32.xlu0 %v1833
        %v1835 = vpop.xlane.xlu0 %1834
        %v1836 = vrcp.pop %v1835
        %v1837 = vmul.f32 %v1832, %v1836
        %v1838 = vpack.c.bf16 %v1837, %v1837
        %v1840 = vsel %vm1723, %v1838, 0
        %v1843 = vsel %vm1739, %v1673, 0
        %1845 = vmatprep.subr.bf16.mxu0 0
        %1846 = vmatpush1.bf16.msra.mxu0 %v1843
        %1847 = vmatprep.subr.bf16.mxu0 0
        %1848 = vmatpush1.bf16.msra.mxu0 0
        %1849 = vmatprep.subr.bf16.mxu0 0
        %1850 = vmatpush1.bf16.msra.mxu0 0
        %1851 = vmatprep.subr.bf16.mxu0 0
        %1852 = vmatpush1.bf16.msra.mxu0 0
        %1853 = vmatprep.subr.bf16.mxu0 0
        %1854 = vmatpush1.bf16.msra.mxu0 0
        %1855 = vmatprep.subr.bf16.mxu0 0
        %1856 = vmatpush1.bf16.msra.mxu0 0
        %1857 = vmatprep.subr.bf16.mxu0 0
        %1858 = vmatpush1.bf16.msra.mxu0 0
        %1859 = vmatprep.subr.bf16.mxu0 0
        %1860 = vmatpush1.bf16.msra.mxu0 0
        %1861 = vmatprep.subr.bf16.mxu0 0
        %1862 = vmatpush1.bf16.msra.mxu0 0
        %1863 = vmatprep.subr.bf16.mxu0 0
        %1864 = vmatpush1.bf16.msra.mxu0 0
        %1865 = vmatprep.subr.bf16.mxu0 0
        %1866 = vmatpush1.bf16.msra.mxu0 0
        %1867 = vmatprep.subr.bf16.mxu0 0
        %1868 = vmatpush1.bf16.msra.mxu0 0
        %1869 = vmatprep.subr.bf16.mxu0 0
        %1870 = vmatpush1.bf16.msra.mxu0 0
        %1871 = vmatprep.subr.bf16.mxu0 0
        %1872 = vmatpush1.bf16.msra.mxu0 0
        %1873 = vmatprep.subr.bf16.mxu0 0
        %1874 = vmatpush1.bf16.msra.mxu0 0
        %1875 = vmatprep.subr.bf16.mxu0 0
        %1876 = vmatpush1.bf16.msra.mxu0 0
        %1877 = vmatprep.mubr.bf16.mxu0 0
        %1878 = vmatmul.mubr.bf16.gmra.mrb[0].mxu0 %v1840
        %v1879 = vpop.f32.mrb[0].mxu0
        %v1880 = vadd.f32 0.0, %v1879
        %v1881 = vpop.f32.mrb[0].mxu0
        %v1882 = vpop.f32.mrb[0].mxu0
        %v1883 = vpop.f32.mrb[0].mxu0
        %1884 = vdwg.mxu0
        %v1885 = vpack.c.bf16 %v1880, %v1880
        %1886 = vst [vmem:[#allocation3 + $0x4] sm:$0xf] %v1885
        %v1887 = vld [vmem:[#allocation3] sm:$0xff]
        %v1888 = vld [vmem:[%s702] sm:$0xff]
        %v1889 = vld [vmem:[%s702 + $0x8] sm:$0xff]
        %v1890 = vld [vmem:[%s702 + $0x10] sm:$0xff]
        %v1891 = vld [vmem:[%s702 + $0x18] sm:$0xff]
        %v1892 = vld [vmem:[%s702 + $0x20] sm:$0xff]
        %v1893 = vld [vmem:[%s702 + $0x28] sm:$0xff]
        %v1894 = vld [vmem:[%s702 + $0x30] sm:$0xff]
        %v1895 = vld [vmem:[%s702 + $0x38] sm:$0xff]
        %v1896 = vld [vmem:[%s702 + $0x40] sm:$0xff]
        %v1897 = vld [vmem:[%s702 + $0x48] sm:$0xff]
        %v1898 = vld [vmem:[%s702 + $0x50] sm:$0xff]
        %v1899 = vld [vmem:[%s702 + $0x58] sm:$0xff]
        %v1900 = vld [vmem:[%s702 + $0x60] sm:$0xff]
        %v1901 = vld [vmem:[%s702 + $0x68] sm:$0xff]
        %v1902 = vld [vmem:[%s702 + $0x70] sm:$0xff]
        %v1903 = vld [vmem:[%s702 + $0x78] sm:$0xff]
        %v1904 = vld [vmem:[%s702 + $0x80] sm:$0xff]
        %v1905 = vld [vmem:[%s702 + $0x88] sm:$0xff]
        %v1906 = vld [vmem:[%s702 + $0x90] sm:$0xff]
        %v1907 = vld [vmem:[%s702 + $0x98] sm:$0xff]
        %v1908 = vld [vmem:[%s702 + $0xa0] sm:$0xff]
        %v1909 = vld [vmem:[%s702 + $0xa8] sm:$0xff]
        %v1910 = vld [vmem:[%s702 + $0xb0] sm:$0xff]
        %v1911 = vld [vmem:[%s702 + $0xb8] sm:$0xff]
        %v1912 = vld [vmem:[%s702 + $0xc0] sm:$0xff]
        %v1913 = vld [vmem:[%s702 + $0xc8] sm:$0xff]
        %v1914 = vld [vmem:[%s702 + $0xd0] sm:$0xff]
        %v1915 = vld [vmem:[%s702 + $0xd8] sm:$0xff]
        %v1916 = vld [vmem:[%s702 + $0xe0] sm:$0xff]
        %v1917 = vld [vmem:[%s702 + $0xe8] sm:$0xff]
        %v1918 = vld [vmem:[%s702 + $0xf0] sm:$0xff]
        %v1919 = vld [vmem:[%s702 + $0xf8] sm:$0xff]
        %v1920 = vld [vmem:[%s845] sm:$0x3]
        %v1922 = vlaneseq
        %v1923 = vshrl.u32 %v1922, 7
        %v1924 = vsub.s32 0, %v1923
        %v1925 = vrot.slane %v1920, %v1924
        %v1926 = vlaneseq
        %v1927 = vshrl.u32 %v1926, 7
        %v1928 = vsub.s32 1, %v1927
        %v1929 = vrot.slane %v1920, %v1928
        %v1933 = vunpack.c.l.b16 %v1887
        %v1934 = vunpack.c.h.b16 %v1887
        %v1935 = vpack.c.b16 %v1933, %v1933
        %v1936 = vpack.c.b16 %v1934, %v1934
        %v1971 = vunpack.c.l.b16 %v1888
        %v1972 = vunpack.c.h.b16 %v1888
        %v1973 = vunpack.c.l.b16 %v1889
        %v1974 = vunpack.c.h.b16 %v1889
        %v1975 = vunpack.c.l.b16 %v1890
        %v1976 = vunpack.c.h.b16 %v1890
        %v1977 = vunpack.c.l.b16 %v1891
        %v1978 = vunpack.c.h.b16 %v1891
        %v1979 = vunpack.c.l.b16 %v1892
        %v1980 = vunpack.c.h.b16 %v1892
        %v1981 = vunpack.c.l.b16 %v1893
        %v1982 = vunpack.c.h.b16 %v1893
        %v1983 = vunpack.c.l.b16 %v1894
        %v1984 = vunpack.c.h.b16 %v1894
        %v1985 = vunpack.c.l.b16 %v1895
        %v1986 = vunpack.c.h.b16 %v1895
        %v1987 = vunpack.c.l.b16 %v1896
        %v1988 = vunpack.c.h.b16 %v1896
        %v1989 = vunpack.c.l.b16 %v1897
        %v1990 = vunpack.c.h.b16 %v1897
        %v1991 = vunpack.c.l.b16 %v1898
        %v1992 = vunpack.c.h.b16 %v1898
        %v1993 = vunpack.c.l.b16 %v1899
        %v1994 = vunpack.c.h.b16 %v1899
        %v1995 = vunpack.c.l.b16 %v1900
        %v1996 = vunpack.c.h.b16 %v1900
        %v1997 = vunpack.c.l.b16 %v1901
        %v1998 = vunpack.c.h.b16 %v1901
        %v1999 = vunpack.c.l.b16 %v1902
        %v2000 = vunpack.c.h.b16 %v1902
        %v2001 = vunpack.c.l.b16 %v1903
        %v2002 = vunpack.c.h.b16 %v1903
        %v2003 = vunpack.c.l.b16 %v1904
        %v2004 = vunpack.c.h.b16 %v1904
        %v2005 = vunpack.c.l.b16 %v1905
        %v2006 = vunpack.c.h.b16 %v1905
        %v2007 = vunpack.c.l.b16 %v1906
        %v2008 = vunpack.c.h.b16 %v1906
        %v2009 = vunpack.c.l.b16 %v1907
        %v2010 = vunpack.c.h.b16 %v1907
        %v2011 = vunpack.c.l.b16 %v1908
        %v2012 = vunpack.c.h.b16 %v1908
        %v2013 = vunpack.c.l.b16 %v1909
        %v2014 = vunpack.c.h.b16 %v1909
        %v2015 = vunpack.c.l.b16 %v1910
        %v2016 = vunpack.c.h.b16 %v1910
        %v2017 = vunpack.c.l.b16 %v1911
        %v2018 = vunpack.c.h.b16 %v1911
        %v2019 = vunpack.c.l.b16 %v1912
        %v2020 = vunpack.c.h.b16 %v1912
        %v2021 = vunpack.c.l.b16 %v1913
        %v2022 = vunpack.c.h.b16 %v1913
        %v2023 = vunpack.c.l.b16 %v1914
        %v2024 = vunpack.c.h.b16 %v1914
        %v2025 = vunpack.c.l.b16 %v1915
        %v2026 = vunpack.c.h.b16 %v1915
        %v2027 = vunpack.c.l.b16 %v1916
        %v2028 = vunpack.c.h.b16 %v1916
        %v2029 = vunpack.c.l.b16 %v1917
        %v2030 = vunpack.c.h.b16 %v1917
        %v2031 = vunpack.c.l.b16 %v1918
        %v2032 = vunpack.c.h.b16 %v1918
        %v2033 = vunpack.c.l.b16 %v1919
        %v2034 = vunpack.c.h.b16 %v1919
        %v2035 = vpack.c.b16 %v1973, %v1971
        %v2036 = vpack.c.b16 %v1974, %v1972
        %v2037 = vpack.c.b16 %v1977, %v1975
        %v2038 = vpack.c.b16 %v1978, %v1976
        %v2039 = vpack.c.b16 %v1981, %v1979
        %v2040 = vpack.c.b16 %v1982, %v1980
        %v2041 = vpack.c.b16 %v1985, %v1983
        %v2042 = vpack.c.b16 %v1986, %v1984
        %v2043 = vpack.c.b16 %v1989, %v1987
        %v2044 = vpack.c.b16 %v1990, %v1988
        %v2045 = vpack.c.b16 %v1993, %v1991
        %v2046 = vpack.c.b16 %v1994, %v1992
        %v2047 = vpack.c.b16 %v1997, %v1995
        %v2048 = vpack.c.b16 %v1998, %v1996
        %v2049 = vpack.c.b16 %v2001, %v1999
        %v2050 = vpack.c.b16 %v2002, %v2000
        %v2051 = vpack.c.b16 %v2005, %v2003
        %v2052 = vpack.c.b16 %v2006, %v2004
        %v2053 = vpack.c.b16 %v2009, %v2007
        %v2054 = vpack.c.b16 %v2010, %v2008
        %v2055 = vpack.c.b16 %v2013, %v2011
        %v2056 = vpack.c.b16 %v2014, %v2012
        %v2057 = vpack.c.b16 %v2017, %v2015
        %v2058 = vpack.c.b16 %v2018, %v2016
        %v2059 = vpack.c.b16 %v2021, %v2019
        %v2060 = vpack.c.b16 %v2022, %v2020
        %v2061 = vpack.c.b16 %v2025, %v2023
        %v2062 = vpack.c.b16 %v2026, %v2024
        %v2063 = vpack.c.b16 %v2029, %v2027
        %v2064 = vpack.c.b16 %v2030, %v2028
        %v2065 = vpack.c.b16 %v2033, %v2031
        %v2066 = vpack.c.b16 %v2034, %v2032
        %2099 = vmatprep.subr.bf16.mxu0 %v2036
        %2100 = vmatpush1.bf16.msra.mxu0 %v2035
        %2101 = vmatprep.subr.bf16.mxu0 %v2038
        %2102 = vmatpush1.bf16.msra.mxu0 %v2037
        %2103 = vmatprep.subr.bf16.mxu0 %v2040
        %2104 = vmatpush1.bf16.msra.mxu0 %v2039
        %2105 = vmatprep.subr.bf16.mxu0 %v2042
        %2106 = vmatpush1.bf16.msra.mxu0 %v2041
        %2107 = vmatprep.subr.bf16.mxu0 %v2044
        %2108 = vmatpush1.bf16.msra.mxu0 %v2043
        %2109 = vmatprep.subr.bf16.mxu0 %v2046
        %2110 = vmatpush1.bf16.msra.mxu0 %v2045
        %2111 = vmatprep.subr.bf16.mxu0 %v2048
        %2112 = vmatpush1.bf16.msra.mxu0 %v2047
        %2113 = vmatprep.subr.bf16.mxu0 %v2050
        %2114 = vmatpush1.bf16.msra.mxu0 %v2049
        %2115 = vmatprep.subr.bf16.mxu0 %v2052
        %2116 = vmatpush1.bf16.msra.mxu0 %v2051
        %2117 = vmatprep.subr.bf16.mxu0 %v2054
        %2118 = vmatpush1.bf16.msra.mxu0 %v2053
        %2119 = vmatprep.subr.bf16.mxu0 %v2056
        %2120 = vmatpush1.bf16.msra.mxu0 %v2055
        %2121 = vmatprep.subr.bf16.mxu0 %v2058
        %2122 = vmatpush1.bf16.msra.mxu0 %v2057
        %2123 = vmatprep.subr.bf16.mxu0 %v2060
        %2124 = vmatpush1.bf16.msra.mxu0 %v2059
        %2125 = vmatprep.subr.bf16.mxu0 %v2062
        %2126 = vmatpush1.bf16.msra.mxu0 %v2061
        %2127 = vmatprep.subr.bf16.mxu0 %v2064
        %2128 = vmatpush1.bf16.msra.mxu0 %v2063
        %2129 = vmatprep.subr.bf16.mxu0 %v2066
        %2130 = vmatpush1.bf16.msra.mxu0 %v2065
        %2131 = vmatprep.mubr.bf16.mxu0 %v1936
        %2132 = vmatmul.mubr.bf16.gmra.mrb[0].mxu0 %v1935
        %v2133 = vpop.f32.mrb[0].mxu0
        %v2134 = vadd.f32 %v1925, %v2133
        %v2135 = vpop.f32.mrb[0].mxu0
        %v2136 = vadd.f32 %v1929, %v2135
        %v2137 = vpop.f32.mrb[0].mxu0
        %v2138 = vpop.f32.mrb[0].mxu0
        %2139 = vdwg.mxu0
        %v2140 = vadd.f32 %v933, %v2134
        %v2141 = vadd.f32 %v934, %v2136
        %v2142 = vld [vmem:[%s849] sm:$0x3]
        %v2143 = vld [vmem:[%s853] sm:$0x3]
        %v2144 = vadd.f32 %v2140, %v2141
        %2145 = vadd.xlane.f32.xlu0 %v2144
        %v2146 = vpop.xlane.xlu0 %2145
        %v2147 = vrcp.pop 256.0
        %v2148 = vmul.f32 %v2146, %v2147
        %v2149 = vsub.f32 %v2140, %v2148
        %v2150 = vsub.f32 %v2141, %v2148
        %v2151 = vmul.f32 %v2149, %v2149
        %v2152 = vmul.f32 %v2150, %v2150
        %v2153 = vadd.f32 %v2151, %v2152
        %2154 = vadd.xlane.f32.xlu0 %v2153
        %v2155 = vpop.xlane.xlu0 %2154
        %v2156 = vmul.f32 %v2155, %v2147
        %v2157 = vadd.f32 %v2156, 1e-12
        %v2158 = vrsqrt.pop %v2157
        %v2159 = vmul.f32 %v2149, %v2158
        %v2160 = vmul.f32 %v2150, %v2158
        %v2162 = vlaneseq
        %v2163 = vshrl.u32 %v2162, 7
        %v2164 = vsub.s32 0, %v2163
        %v2165 = vrot.slane %v2142, %v2164
        %v2166 = vlaneseq
        %v2167 = vshrl.u32 %v2166, 7
        %v2168 = vsub.s32 1, %v2167
        %v2169 = vrot.slane %v2142, %v2168
        %v2172 = vmul.f32 %v2159, %v2165
        %v2173 = vmul.f32 %v2160, %v2169
        %v2175 = vlaneseq
        %v2176 = vshrl.u32 %v2175, 7
        %v2177 = vsub.s32 0, %v2176
        %v2178 = vrot.slane %v2143, %v2177
        %v2179 = vlaneseq
        %v2180 = vshrl.u32 %v2179, 7
        %v2181 = vsub.s32 1, %v2180
        %v2182 = vrot.slane %v2143, %v2181
        %v2185 = vadd.f32 %v2172, %v2178
        %v2186 = vadd.f32 %v2173, %v2182
        %v2187 = vpack.c.bf16 %v2185, %v2185
        %v2188 = vpack.c.bf16 %v2186, %v2186
        %v2189 = vld [vmem:[%s711] sm:$0xff]
        %v2190 = vld [vmem:[%s711 + $0x8] sm:$0xff]
        %v2191 = vld [vmem:[%s711 + $0x10] sm:$0xff]
        %v2192 = vld [vmem:[%s711 + $0x18] sm:$0xff]
        %v2193 = vld [vmem:[%s711 + $0x20] sm:$0xff]
        %v2194 = vld [vmem:[%s711 + $0x28] sm:$0xff]
        %v2195 = vld [vmem:[%s711 + $0x30] sm:$0xff]
        %v2196 = vld [vmem:[%s711 + $0x38] sm:$0xff]
        %v2197 = vld [vmem:[%s711 + $0x40] sm:$0xff]
        %v2198 = vld [vmem:[%s711 + $0x48] sm:$0xff]
        %v2199 = vld [vmem:[%s711 + $0x50] sm:$0xff]
        %v2200 = vld [vmem:[%s711 + $0x58] sm:$0xff]
        %v2201 = vld [vmem:[%s711 + $0x60] sm:$0xff]
        %v2202 = vld [vmem:[%s711 + $0x68] sm:$0xff]
        %v2203 = vld [vmem:[%s711 + $0x70] sm:$0xff]
        %v2204 = vld [vmem:[%s711 + $0x78] sm:$0xff]
        %v2205 = vld [vmem:[%s711 + $0x80] sm:$0xff]
        %v2206 = vld [vmem:[%s711 + $0x88] sm:$0xff]
        %v2207 = vld [vmem:[%s711 + $0x90] sm:$0xff]
        %v2208 = vld [vmem:[%s711 + $0x98] sm:$0xff]
        %v2209 = vld [vmem:[%s711 + $0xa0] sm:$0xff]
        %v2210 = vld [vmem:[%s711 + $0xa8] sm:$0xff]
        %v2211 = vld [vmem:[%s711 + $0xb0] sm:$0xff]
        %v2212 = vld [vmem:[%s711 + $0xb8] sm:$0xff]
        %v2213 = vld [vmem:[%s711 + $0xc0] sm:$0xff]
        %v2214 = vld [vmem:[%s711 + $0xc8] sm:$0xff]
        %v2215 = vld [vmem:[%s711 + $0xd0] sm:$0xff]
        %v2216 = vld [vmem:[%s711 + $0xd8] sm:$0xff]
        %v2217 = vld [vmem:[%s711 + $0xe0] sm:$0xff]
        %v2218 = vld [vmem:[%s711 + $0xe8] sm:$0xff]
        %v2219 = vld [vmem:[%s711 + $0xf0] sm:$0xff]
        %v2220 = vld [vmem:[%s711 + $0xf8] sm:$0xff]
        %v2221 = vld [vmem:[%s711 + $0x100] sm:$0xff]
        %v2222 = vld [vmem:[%s711 + $0x108] sm:$0xff]
        %v2223 = vld [vmem:[%s711 + $0x110] sm:$0xff]
        %v2224 = vld [vmem:[%s711 + $0x118] sm:$0xff]
        %v2225 = vld [vmem:[%s711 + $0x120] sm:$0xff]
        %v2226 = vld [vmem:[%s711 + $0x128] sm:$0xff]
        %v2227 = vld [vmem:[%s711 + $0x130] sm:$0xff]
        %v2228 = vld [vmem:[%s711 + $0x138] sm:$0xff]
        %v2229 = vld [vmem:[%s711 + $0x140] sm:$0xff]
        %v2230 = vld [vmem:[%s711 + $0x148] sm:$0xff]
        %v2231 = vld [vmem:[%s711 + $0x150] sm:$0xff]
        %v2232 = vld [vmem:[%s711 + $0x158] sm:$0xff]
        %v2233 = vld [vmem:[%s711 + $0x160] sm:$0xff]
        %v2234 = vld [vmem:[%s711 + $0x168] sm:$0xff]
        %v2235 = vld [vmem:[%s711 + $0x170] sm:$0xff]
        %v2236 = vld [vmem:[%s711 + $0x178] sm:$0xff]
        %v2237 = vld [vmem:[%s711 + $0x180] sm:$0xff]
        %v2238 = vld [vmem:[%s711 + $0x188] sm:$0xff]
        %v2239 = vld [vmem:[%s711 + $0x190] sm:$0xff]
        %v2240 = vld [vmem:[%s711 + $0x198] sm:$0xff]
        %v2241 = vld [vmem:[%s711 + $0x1a0] sm:$0xff]
        %v2242 = vld [vmem:[%s711 + $0x1a8] sm:$0xff]
        %v2243 = vld [vmem:[%s711 + $0x1b0] sm:$0xff]
        %v2244 = vld [vmem:[%s711 + $0x1b8] sm:$0xff]
        %v2245 = vld [vmem:[%s711 + $0x1c0] sm:$0xff]
        %v2246 = vld [vmem:[%s711 + $0x1c8] sm:$0xff]
        %v2247 = vld [vmem:[%s711 + $0x1d0] sm:$0xff]
        %v2248 = vld [vmem:[%s711 + $0x1d8] sm:$0xff]
        %v2249 = vld [vmem:[%s711 + $0x1e0] sm:$0xff]
        %v2250 = vld [vmem:[%s711 + $0x1e8] sm:$0xff]
        %v2251 = vld [vmem:[%s711 + $0x1f0] sm:$0xff]
        %v2252 = vld [vmem:[%s711 + $0x1f8] sm:$0xff]
        %v2253 = vld [vmem:[%s857] sm:$0xf]
        %v2255 = vlaneseq
        %v2256 = vshrl.u32 %v2255, 7
        %v2257 = vsub.s32 0, %v2256
        %v2258 = vrot.slane %v2253, %v2257
        %v2259 = vlaneseq
        %v2260 = vshrl.u32 %v2259, 7
        %v2261 = vsub.s32 1, %v2260
        %v2262 = vrot.slane %v2253, %v2261
        %v2263 = vlaneseq
        %v2264 = vshrl.u32 %v2263, 7
        %v2265 = vsub.s32 2, %v2264
        %v2266 = vrot.slane %v2253, %v2265
        %v2267 = vlaneseq
        %v2268 = vshrl.u32 %v2267, 7
        %v2269 = vsub.s32 3, %v2268
        %v2270 = vrot.slane %v2253, %v2269
        %v2339 = vunpack.c.l.b16 %v2189
        %v2340 = vunpack.c.h.b16 %v2189
        %v2341 = vunpack.c.l.b16 %v2190
        %v2342 = vunpack.c.h.b16 %v2190
        %v2343 = vunpack.c.l.b16 %v2191
        %v2344 = vunpack.c.h.b16 %v2191
        %v2345 = vunpack.c.l.b16 %v2192
        %v2346 = vunpack.c.h.b16 %v2192
        %v2347 = vunpack.c.l.b16 %v2193
        %v2348 = vunpack.c.h.b16 %v2193
        %v2349 = vunpack.c.l.b16 %v2194
        %v2350 = vunpack.c.h.b16 %v2194
        %v2351 = vunpack.c.l.b16 %v2195
        %v2352 = vunpack.c.h.b16 %v2195
        %v2353 = vunpack.c.l.b16 %v2196
        %v2354 = vunpack.c.h.b16 %v2196
        %v2355 = vunpack.c.l.b16 %v2197
        %v2356 = vunpack.c.h.b16 %v2197
        %v2357 = vunpack.c.l.b16 %v2198
        %v2358 = vunpack.c.h.b16 %v2198
        %v2359 = vunpack.c.l.b16 %v2199
        %v2360 = vunpack.c.h.b16 %v2199
        %v2361 = vunpack.c.l.b16 %v2200
        %v2362 = vunpack.c.h.b16 %v2200
        %v2363 = vunpack.c.l.b16 %v2201
        %v2364 = vunpack.c.h.b16 %v2201
        %v2365 = vunpack.c.l.b16 %v2202
        %v2366 = vunpack.c.h.b16 %v2202
        %v2367 = vunpack.c.l.b16 %v2203
        %v2368 = vunpack.c.h.b16 %v2203
        %v2369 = vunpack.c.l.b16 %v2204
        %v2370 = vunpack.c.h.b16 %v2204
        %v2371 = vunpack.c.l.b16 %v2205
        %v2372 = vunpack.c.h.b16 %v2205
        %v2373 = vunpack.c.l.b16 %v2206
        %v2374 = vunpack.c.h.b16 %v2206
        %v2375 = vunpack.c.l.b16 %v2207
        %v2376 = vunpack.c.h.b16 %v2207
        %v2377 = vunpack.c.l.b16 %v2208
        %v2378 = vunpack.c.h.b16 %v2208
        %v2379 = vunpack.c.l.b16 %v2209
        %v2380 = vunpack.c.h.b16 %v2209
        %v2381 = vunpack.c.l.b16 %v2210
        %v2382 = vunpack.c.h.b16 %v2210
        %v2383 = vunpack.c.l.b16 %v2211
        %v2384 = vunpack.c.h.b16 %v2211
        %v2385 = vunpack.c.l.b16 %v2212
        %v2386 = vunpack.c.h.b16 %v2212
        %v2387 = vunpack.c.l.b16 %v2213
        %v2388 = vunpack.c.h.b16 %v2213
        %v2389 = vunpack.c.l.b16 %v2214
        %v2390 = vunpack.c.h.b16 %v2214
        %v2391 = vunpack.c.l.b16 %v2215
        %v2392 = vunpack.c.h.b16 %v2215
        %v2393 = vunpack.c.l.b16 %v2216
        %v2394 = vunpack.c.h.b16 %v2216
        %v2395 = vunpack.c.l.b16 %v2217
        %v2396 = vunpack.c.h.b16 %v2217
        %v2397 = vunpack.c.l.b16 %v2218
        %v2398 = vunpack.c.h.b16 %v2218
        %v2399 = vunpack.c.l.b16 %v2219
        %v2400 = vunpack.c.h.b16 %v2219
        %v2401 = vunpack.c.l.b16 %v2220
        %v2402 = vunpack.c.h.b16 %v2220
        %v2403 = vunpack.c.l.b16 %v2221
        %v2404 = vunpack.c.h.b16 %v2221
        %v2405 = vunpack.c.l.b16 %v2222
        %v2406 = vunpack.c.h.b16 %v2222
        %v2407 = vunpack.c.l.b16 %v2223
        %v2408 = vunpack.c.h.b16 %v2223
        %v2409 = vunpack.c.l.b16 %v2224
        %v2410 = vunpack.c.h.b16 %v2224
        %v2411 = vunpack.c.l.b16 %v2225
        %v2412 = vunpack.c.h.b16 %v2225
        %v2413 = vunpack.c.l.b16 %v2226
        %v2414 = vunpack.c.h.b16 %v2226
        %v2415 = vunpack.c.l.b16 %v2227
        %v2416 = vunpack.c.h.b16 %v2227
        %v2417 = vunpack.c.l.b16 %v2228
        %v2418 = vunpack.c.h.b16 %v2228
        %v2419 = vunpack.c.l.b16 %v2229
        %v2420 = vunpack.c.h.b16 %v2229
        %v2421 = vunpack.c.l.b16 %v2230
        %v2422 = vunpack.c.h.b16 %v2230
        %v2423 = vunpack.c.l.b16 %v2231
        %v2424 = vunpack.c.h.b16 %v2231
        %v2425 = vunpack.c.l.b16 %v2232
        %v2426 = vunpack.c.h.b16 %v2232
        %v2427 = vunpack.c.l.b16 %v2233
        %v2428 = vunpack.c.h.b16 %v2233
        %v2429 = vunpack.c.l.b16 %v2234
        %v2430 = vunpack.c.h.b16 %v2234
        %v2431 = vunpack.c.l.b16 %v2235
        %v2432 = vunpack.c.h.b16 %v2235
        %v2433 = vunpack.c.l.b16 %v2236
        %v2434 = vunpack.c.h.b16 %v2236
        %v2435 = vunpack.c.l.b16 %v2237
        %v2436 = vunpack.c.h.b16 %v2237
        %v2437 = vunpack.c.l.b16 %v2238
        %v2438 = vunpack.c.h.b16 %v2238
        %v2439 = vunpack.c.l.b16 %v2239
        %v2440 = vunpack.c.h.b16 %v2239
        %v2441 = vunpack.c.l.b16 %v2240
        %v2442 = vunpack.c.h.b16 %v2240
        %v2443 = vunpack.c.l.b16 %v2241
        %v2444 = vunpack.c.h.b16 %v2241
        %v2445 = vunpack.c.l.b16 %v2242
        %v2446 = vunpack.c.h.b16 %v2242
        %v2447 = vunpack.c.l.b16 %v2243
        %v2448 = vunpack.c.h.b16 %v2243
        %v2449 = vunpack.c.l.b16 %v2244
        %v2450 = vunpack.c.h.b16 %v2244
        %v2451 = vunpack.c.l.b16 %v2245
        %v2452 = vunpack.c.h.b16 %v2245
        %v2453 = vunpack.c.l.b16 %v2246
        %v2454 = vunpack.c.h.b16 %v2246
        %v2455 = vunpack.c.l.b16 %v2247
        %v2456 = vunpack.c.h.b16 %v2247
        %v2457 = vunpack.c.l.b16 %v2248
        %v2458 = vunpack.c.h.b16 %v2248
        %v2459 = vunpack.c.l.b16 %v2249
        %v2460 = vunpack.c.h.b16 %v2249
        %v2461 = vunpack.c.l.b16 %v2250
        %v2462 = vunpack.c.h.b16 %v2250
        %v2463 = vunpack.c.l.b16 %v2251
        %v2464 = vunpack.c.h.b16 %v2251
        %v2465 = vunpack.c.l.b16 %v2252
        %v2466 = vunpack.c.h.b16 %v2252
        %v2467 = vpack.c.b16 %v2343, %v2339
        %v2468 = vpack.c.b16 %v2344, %v2340
        %v2469 = vpack.c.b16 %v2345, %v2341
        %v2470 = vpack.c.b16 %v2346, %v2342
        %v2471 = vpack.c.b16 %v2351, %v2347
        %v2472 = vpack.c.b16 %v2352, %v2348
        %v2473 = vpack.c.b16 %v2353, %v2349
        %v2474 = vpack.c.b16 %v2354, %v2350
        %v2475 = vpack.c.b16 %v2359, %v2355
        %v2476 = vpack.c.b16 %v2360, %v2356
        %v2477 = vpack.c.b16 %v2361, %v2357
        %v2478 = vpack.c.b16 %v2362, %v2358
        %v2479 = vpack.c.b16 %v2367, %v2363
        %v2480 = vpack.c.b16 %v2368, %v2364
        %v2481 = vpack.c.b16 %v2369, %v2365
        %v2482 = vpack.c.b16 %v2370, %v2366
        %v2483 = vpack.c.b16 %v2375, %v2371
        %v2484 = vpack.c.b16 %v2376, %v2372
        %v2485 = vpack.c.b16 %v2377, %v2373
        %v2486 = vpack.c.b16 %v2378, %v2374
        %v2487 = vpack.c.b16 %v2383, %v2379
        %v2488 = vpack.c.b16 %v2384, %v2380
        %v2489 = vpack.c.b16 %v2385, %v2381
        %v2490 = vpack.c.b16 %v2386, %v2382
        %v2491 = vpack.c.b16 %v2391, %v2387
        %v2492 = vpack.c.b16 %v2392, %v2388
        %v2493 = vpack.c.b16 %v2393, %v2389
        %v2494 = vpack.c.b16 %v2394, %v2390
        %v2495 = vpack.c.b16 %v2399, %v2395
        %v2496 = vpack.c.b16 %v2400, %v2396
        %v2497 = vpack.c.b16 %v2401, %v2397
        %v2498 = vpack.c.b16 %v2402, %v2398
        %v2499 = vpack.c.b16 %v2407, %v2403
        %v2500 = vpack.c.b16 %v2408, %v2404
        %v2501 = vpack.c.b16 %v2409, %v2405
        %v2502 = vpack.c.b16 %v2410, %v2406
        %v2503 = vpack.c.b16 %v2415, %v2411
        %v2504 = vpack.c.b16 %v2416, %v2412
        %v2505 = vpack.c.b16 %v2417, %v2413
        %v2506 = vpack.c.b16 %v2418, %v2414
        %v2507 = vpack.c.b16 %v2423, %v2419
        %v2508 = vpack.c.b16 %v2424, %v2420
        %v2509 = vpack.c.b16 %v2425, %v2421
        %v2510 = vpack.c.b16 %v2426, %v2422
        %v2511 = vpack.c.b16 %v2431, %v2427
        %v2512 = vpack.c.b16 %v2432, %v2428
        %v2513 = vpack.c.b16 %v2433, %v2429
        %v2514 = vpack.c.b16 %v2434, %v2430
        %v2515 = vpack.c.b16 %v2439, %v2435
        %v2516 = vpack.c.b16 %v2440, %v2436
        %v2517 = vpack.c.b16 %v2441, %v2437
        %v2518 = vpack.c.b16 %v2442, %v2438
        %v2519 = vpack.c.b16 %v2447, %v2443
        %v2520 = vpack.c.b16 %v2448, %v2444
        %v2521 = vpack.c.b16 %v2449, %v2445
        %v2522 = vpack.c.b16 %v2450, %v2446
        %v2523 = vpack.c.b16 %v2455, %v2451
        %v2524 = vpack.c.b16 %v2456, %v2452
        %v2525 = vpack.c.b16 %v2457, %v2453
        %v2526 = vpack.c.b16 %v2458, %v2454
        %v2527 = vpack.c.b16 %v2463, %v2459
        %v2528 = vpack.c.b16 %v2464, %v2460
        %v2529 = vpack.c.b16 %v2465, %v2461
        %v2530 = vpack.c.b16 %v2466, %v2462
        %2595 = vmatprep.subr.bf16.mxu0 %v2468
        %2596 = vmatpush1.bf16.msra.mxu0 %v2467
        %2597 = vmatprep.subr.bf16.mxu0 %v2472
        %2598 = vmatpush1.bf16.msra.mxu0 %v2471
        %2599 = vmatprep.subr.bf16.mxu0 %v2476
        %2600 = vmatpush1.bf16.msra.mxu0 %v2475
        %2601 = vmatprep.subr.bf16.mxu0 %v2480
        %2602 = vmatpush1.bf16.msra.mxu0 %v2479
        %2603 = vmatprep.subr.bf16.mxu0 %v2484
        %2604 = vmatpush1.bf16.msra.mxu0 %v2483
        %2605 = vmatprep.subr.bf16.mxu0 %v2488
        %2606 = vmatpush1.bf16.msra.mxu0 %v2487
        %2607 = vmatprep.subr.bf16.mxu0 %v2492
        %2608 = vmatpush1.bf16.msra.mxu0 %v2491
        %2609 = vmatprep.subr.bf16.mxu0 %v2496
        %2610 = vmatpush1.bf16.msra.mxu0 %v2495
        %2611 = vmatprep.subr.bf16.mxu0 %v2500
        %2612 = vmatpush1.bf16.msra.mxu0 %v2499
        %2613 = vmatprep.subr.bf16.mxu0 %v2504
        %2614 = vmatpush1.bf16.msra.mxu0 %v2503
        %2615 = vmatprep.subr.bf16.mxu0 %v2508
        %2616 = vmatpush1.bf16.msra.mxu0 %v2507
        %2617 = vmatprep.subr.bf16.mxu0 %v2512
        %2618 = vmatpush1.bf16.msra.mxu0 %v2511
        %2619 = vmatprep.subr.bf16.mxu0 %v2516
        %2620 = vmatpush1.bf16.msra.mxu0 %v2515
        %2621 = vmatprep.subr.bf16.mxu0 %v2520
        %2622 = vmatpush1.bf16.msra.mxu0 %v2519
        %2623 = vmatprep.subr.bf16.mxu0 %v2524
        %2624 = vmatpush1.bf16.msra.mxu0 %v2523
        %2625 = vmatprep.subr.bf16.mxu0 %v2528
        %2626 = vmatpush1.bf16.msra.mxu0 %v2527
        %2627 = vmatprep.mubr.bf16.mxu0 %v2188
        %2628 = vmatmul.mubr.bf16.gmra.mrb[0].mxu0 %v2187
        %v2629 = vpop.f32.mrb[0].mxu0
        %v2630 = vadd.f32 %v2258, %v2629
        %v2631 = vpop.f32.mrb[0].mxu0
        %v2632 = vadd.f32 %v2262, %v2631
        %v2633 = vpop.f32.mrb[0].mxu0
        %v2634 = vpop.f32.mrb[0].mxu0
        %2635 = vdwg.mxu0
        %2636 = vmatprep.subr.bf16.mxu0 %v2470
        %2637 = vmatpush1.bf16.msra.mxu0 %v2469
        %2638 = vmatprep.subr.bf16.mxu0 %v2474
        %2639 = vmatpush1.bf16.msra.mxu0 %v2473
        %2640 = vmatprep.subr.bf16.mxu0 %v2478
        %2641 = vmatpush1.bf16.msra.mxu0 %v2477
        %2642 = vmatprep.subr.bf16.mxu0 %v2482
        %2643 = vmatpush1.bf16.msra.mxu0 %v2481
        %2644 = vmatprep.subr.bf16.mxu0 %v2486
        %2645 = vmatpush1.bf16.msra.mxu0 %v2485
        %2646 = vmatprep.subr.bf16.mxu0 %v2490
        %2647 = vmatpush1.bf16.msra.mxu0 %v2489
        %2648 = vmatprep.subr.bf16.mxu0 %v2494
        %2649 = vmatpush1.bf16.msra.mxu0 %v2493
        %2650 = vmatprep.subr.bf16.mxu0 %v2498
        %2651 = vmatpush1.bf16.msra.mxu0 %v2497
        %2652 = vmatprep.subr.bf16.mxu0 %v2502
        %2653 = vmatpush1.bf16.msra.mxu0 %v2501
        %2654 = vmatprep.subr.bf16.mxu0 %v2506
        %2655 = vmatpush1.bf16.msra.mxu0 %v2505
        %2656 = vmatprep.subr.bf16.mxu0 %v2510
        %2657 = vmatpush1.bf16.msra.mxu0 %v2509
        %2658 = vmatprep.subr.bf16.mxu0 %v2514
        %2659 = vmatpush1.bf16.msra.mxu0 %v2513
        %2660 = vmatprep.subr.bf16.mxu0 %v2518
        %2661 = vmatpush1.bf16.msra.mxu0 %v2517
        %2662 = vmatprep.subr.bf16.mxu0 %v2522
        %2663 = vmatpush1.bf16.msra.mxu0 %v2521
        %2664 = vmatprep.subr.bf16.mxu0 %v2526
        %2665 = vmatpush1.bf16.msra.mxu0 %v2525
        %2666 = vmatprep.subr.bf16.mxu0 %v2530
        %2667 = vmatpush1.bf16.msra.mxu0 %v2529
        %2668 = vmatprep.mubr.bf16.mxu0 %v2188
        %2669 = vmatmul.mubr.bf16.gmra.mrb[0].mxu0 %v2187
        %v2670 = vpop.f32.mrb[0].mxu0
        %v2671 = vadd.f32 %v2266, %v2670
        %v2672 = vpop.f32.mrb[0].mxu0
        %v2673 = vadd.f32 %v2270, %v2672
        %v2674 = vpop.f32.mrb[0].mxu0
        %v2675 = vpop.f32.mrb[0].mxu0
        %2676 = vdwg.mxu0
        %v2677 = vmul.f32 %v2630, %v2630
        %v2678 = vmul.f32 %v2632, %v2632
        %v2679 = vmul.f32 %v2671, %v2671
        %v2680 = vmul.f32 %v2673, %v2673
        %v2681 = vmul.f32 %v2630, %v2677
        %v2682 = vmul.f32 %v2632, %v2678
        %v2683 = vmul.f32 %v2671, %v2679
        %v2684 = vmul.f32 %v2673, %v2680
        %v2685 = vmul.f32 %v2681, 0.044715
        %v2686 = vmul.f32 %v2682, 0.044715
        %v2687 = vmul.f32 %v2683, 0.044715
        %v2688 = vmul.f32 %v2684, 0.044715
        %v2689 = vadd.f32 %v2630, %v2685
        %v2690 = vadd.f32 %v2632, %v2686
        %v2691 = vadd.f32 %v2671, %v2687
        %v2692 = vadd.f32 %v2673, %v2688
        %v2693 = vmul.f32 %v2689, 0.7978846
        %v2694 = vmul.f32 %v2690, 0.7978846
        %v2695 = vmul.f32 %v2691, 0.7978846
        %v2696 = vmul.f32 %v2692, 0.7978846
        %v2697 = vtanh.pop %v2693
        %v2698 = vtanh.pop %v2694
        %v2699 = vtanh.pop %v2695
        %v2700 = vtanh.pop %v2696
        %v2701 = vadd.f32 %v2697, 1.0
        %v2702 = vadd.f32 %v2698, 1.0
        %v2703 = vadd.f32 %v2699, 1.0
        %v2704 = vadd.f32 %v2700, 1.0
        %v2705 = vmul.f32 %v2701, 0.5
        %v2706 = vmul.f32 %v2702, 0.5
        %v2707 = vmul.f32 %v2703, 0.5
        %v2708 = vmul.f32 %v2704, 0.5
        %v2709 = vmul.f32 %v2630, %v2705
        %v2710 = vmul.f32 %v2632, %v2706
        %v2711 = vmul.f32 %v2671, %v2707
        %v2712 = vmul.f32 %v2673, %v2708
        %v2713 = vpack.c.bf16 %v2709, %v2709
        %v2714 = vpack.c.bf16 %v2710, %v2710
        %v2715 = vpack.c.bf16 %v2711, %v2711
        %v2716 = vpack.c.bf16 %v2712, %v2712
        %v2717 = vld [vmem:[%s720] sm:$0xff]
        %v2718 = vld [vmem:[%s720 + $0x8] sm:$0xff]
        %v2719 = vld [vmem:[%s720 + $0x10] sm:$0xff]
        %v2720 = vld [vmem:[%s720 + $0x18] sm:$0xff]
        %v2721 = vld [vmem:[%s720 + $0x20] sm:$0xff]
        %v2722 = vld [vmem:[%s720 + $0x28] sm:$0xff]
        %v2723 = vld [vmem:[%s720 + $0x30] sm:$0xff]
        %v2724 = vld [vmem:[%s720 + $0x38] sm:$0xff]
        %v2725 = vld [vmem:[%s720 + $0x40] sm:$0xff]
        %v2726 = vld [vmem:[%s720 + $0x48] sm:$0xff]
        %v2727 = vld [vmem:[%s720 + $0x50] sm:$0xff]
        %v2728 = vld [vmem:[%s720 + $0x58] sm:$0xff]
        %v2729 = vld [vmem:[%s720 + $0x60] sm:$0xff]
        %v2730 = vld [vmem:[%s720 + $0x68] sm:$0xff]
        %v2731 = vld [vmem:[%s720 + $0x70] sm:$0xff]
        %v2732 = vld [vmem:[%s720 + $0x78] sm:$0xff]
        %v2733 = vld [vmem:[%s720 + $0x80] sm:$0xff]
        %v2734 = vld [vmem:[%s720 + $0x88] sm:$0xff]
        %v2735 = vld [vmem:[%s720 + $0x90] sm:$0xff]
        %v2736 = vld [vmem:[%s720 + $0x98] sm:$0xff]
        %v2737 = vld [vmem:[%s720 + $0xa0] sm:$0xff]
        %v2738 = vld [vmem:[%s720 + $0xa8] sm:$0xff]
        %v2739 = vld [vmem:[%s720 + $0xb0] sm:$0xff]
        %v2740 = vld [vmem:[%s720 + $0xb8] sm:$0xff]
        %v2741 = vld [vmem:[%s720 + $0xc0] sm:$0xff]
        %v2742 = vld [vmem:[%s720 + $0xc8] sm:$0xff]
        %v2743 = vld [vmem:[%s720 + $0xd0] sm:$0xff]
        %v2744 = vld [vmem:[%s720 + $0xd8] sm:$0xff]
        %v2745 = vld [vmem:[%s720 + $0xe0] sm:$0xff]
        %v2746 = vld [vmem:[%s720 + $0xe8] sm:$0xff]
        %v2747 = vld [vmem:[%s720 + $0xf0] sm:$0xff]
        %v2748 = vld [vmem:[%s720 + $0xf8] sm:$0xff]
        %v2749 = vld [vmem:[%s720 + $0x100] sm:$0xff]
        %v2750 = vld [vmem:[%s720 + $0x108] sm:$0xff]
        %v2751 = vld [vmem:[%s720 + $0x110] sm:$0xff]
        %v2752 = vld [vmem:[%s720 + $0x118] sm:$0xff]
        %v2753 = vld [vmem:[%s720 + $0x120] sm:$0xff]
        %v2754 = vld [vmem:[%s720 + $0x128] sm:$0xff]
        %v2755 = vld [vmem:[%s720 + $0x130] sm:$0xff]
        %v2756 = vld [vmem:[%s720 + $0x138] sm:$0xff]
        %v2757 = vld [vmem:[%s720 + $0x140] sm:$0xff]
        %v2758 = vld [vmem:[%s720 + $0x148] sm:$0xff]
        %v2759 = vld [vmem:[%s720 + $0x150] sm:$0xff]
        %v2760 = vld [vmem:[%s720 + $0x158] sm:$0xff]
        %v2761 = vld [vmem:[%s720 + $0x160] sm:$0xff]
        %v2762 = vld [vmem:[%s720 + $0x168] sm:$0xff]
        %v2763 = vld [vmem:[%s720 + $0x170] sm:$0xff]
        %v2764 = vld [vmem:[%s720 + $0x178] sm:$0xff]
        %v2765 = vld [vmem:[%s720 + $0x180] sm:$0xff]
        %v2766 = vld [vmem:[%s720 + $0x188] sm:$0xff]
        %v2767 = vld [vmem:[%s720 + $0x190] sm:$0xff]
        %v2768 = vld [vmem:[%s720 + $0x198] sm:$0xff]
        %v2769 = vld [vmem:[%s720 + $0x1a0] sm:$0xff]
        %v2770 = vld [vmem:[%s720 + $0x1a8] sm:$0xff]
        %v2771 = vld [vmem:[%s720 + $0x1b0] sm:$0xff]
        %v2772 = vld [vmem:[%s720 + $0x1b8] sm:$0xff]
        %v2773 = vld [vmem:[%s720 + $0x1c0] sm:$0xff]
        %v2774 = vld [vmem:[%s720 + $0x1c8] sm:$0xff]
        %v2775 = vld [vmem:[%s720 + $0x1d0] sm:$0xff]
        %v2776 = vld [vmem:[%s720 + $0x1d8] sm:$0xff]
        %v2777 = vld [vmem:[%s720 + $0x1e0] sm:$0xff]
        %v2778 = vld [vmem:[%s720 + $0x1e8] sm:$0xff]
        %v2779 = vld [vmem:[%s720 + $0x1f0] sm:$0xff]
        %v2780 = vld [vmem:[%s720 + $0x1f8] sm:$0xff]
        %v2781 = vld [vmem:[%s861] sm:$0x3]
        %v2783 = vlaneseq
        %v2784 = vshrl.u32 %v2783, 7
        %v2785 = vsub.s32 0, %v2784
        %v2786 = vrot.slane %v2781, %v2785
        %v2787 = vlaneseq
        %v2788 = vshrl.u32 %v2787, 7
        %v2789 = vsub.s32 1, %v2788
        %v2790 = vrot.slane %v2781, %v2789
        %v2857 = vunpack.c.l.b16 %v2717
        %v2858 = vunpack.c.h.b16 %v2717
        %v2859 = vunpack.c.l.b16 %v2718
        %v2860 = vunpack.c.h.b16 %v2718
        %v2861 = vunpack.c.l.b16 %v2719
        %v2862 = vunpack.c.h.b16 %v2719
        %v2863 = vunpack.c.l.b16 %v2720
        %v2864 = vunpack.c.h.b16 %v2720
        %v2865 = vunpack.c.l.b16 %v2721
        %v2866 = vunpack.c.h.b16 %v2721
        %v2867 = vunpack.c.l.b16 %v2722
        %v2868 = vunpack.c.h.b16 %v2722
        %v2869 = vunpack.c.l.b16 %v2723
        %v2870 = vunpack.c.h.b16 %v2723
        %v2871 = vunpack.c.l.b16 %v2724
        %v2872 = vunpack.c.h.b16 %v2724
        %v2873 = vunpack.c.l.b16 %v2725
        %v2874 = vunpack.c.h.b16 %v2725
        %v2875 = vunpack.c.l.b16 %v2726
        %v2876 = vunpack.c.h.b16 %v2726
        %v2877 = vunpack.c.l.b16 %v2727
        %v2878 = vunpack.c.h.b16 %v2727
        %v2879 = vunpack.c.l.b16 %v2728
        %v2880 = vunpack.c.h.b16 %v2728
        %v2881 = vunpack.c.l.b16 %v2729
        %v2882 = vunpack.c.h.b16 %v2729
        %v2883 = vunpack.c.l.b16 %v2730
        %v2884 = vunpack.c.h.b16 %v2730
        %v2885 = vunpack.c.l.b16 %v2731
        %v2886 = vunpack.c.h.b16 %v2731
        %v2887 = vunpack.c.l.b16 %v2732
        %v2888 = vunpack.c.h.b16 %v2732
        %v2889 = vunpack.c.l.b16 %v2733
        %v2890 = vunpack.c.h.b16 %v2733
        %v2891 = vunpack.c.l.b16 %v2734
        %v2892 = vunpack.c.h.b16 %v2734
        %v2893 = vunpack.c.l.b16 %v2735
        %v2894 = vunpack.c.h.b16 %v2735
        %v2895 = vunpack.c.l.b16 %v2736
        %v2896 = vunpack.c.h.b16 %v2736
        %v2897 = vunpack.c.l.b16 %v2737
        %v2898 = vunpack.c.h.b16 %v2737
        %v2899 = vunpack.c.l.b16 %v2738
        %v2900 = vunpack.c.h.b16 %v2738
        %v2901 = vunpack.c.l.b16 %v2739
        %v2902 = vunpack.c.h.b16 %v2739
        %v2903 = vunpack.c.l.b16 %v2740
        %v2904 = vunpack.c.h.b16 %v2740
        %v2905 = vunpack.c.l.b16 %v2741
        %v2906 = vunpack.c.h.b16 %v2741
        %v2907 = vunpack.c.l.b16 %v2742
        %v2908 = vunpack.c.h.b16 %v2742
        %v2909 = vunpack.c.l.b16 %v2743
        %v2910 = vunpack.c.h.b16 %v2743
        %v2911 = vunpack.c.l.b16 %v2744
        %v2912 = vunpack.c.h.b16 %v2744
        %v2913 = vunpack.c.l.b16 %v2745
        %v2914 = vunpack.c.h.b16 %v2745
        %v2915 = vunpack.c.l.b16 %v2746
        %v2916 = vunpack.c.h.b16 %v2746
        %v2917 = vunpack.c.l.b16 %v2747
        %v2918 = vunpack.c.h.b16 %v2747
        %v2919 = vunpack.c.l.b16 %v2748
        %v2920 = vunpack.c.h.b16 %v2748
        %v2921 = vunpack.c.l.b16 %v2749
        %v2922 = vunpack.c.h.b16 %v2749
        %v2923 = vunpack.c.l.b16 %v2750
        %v2924 = vunpack.c.h.b16 %v2750
        %v2925 = vunpack.c.l.b16 %v2751
        %v2926 = vunpack.c.h.b16 %v2751
        %v2927 = vunpack.c.l.b16 %v2752
        %v2928 = vunpack.c.h.b16 %v2752
        %v2929 = vunpack.c.l.b16 %v2753
        %v2930 = vunpack.c.h.b16 %v2753
        %v2931 = vunpack.c.l.b16 %v2754
        %v2932 = vunpack.c.h.b16 %v2754
        %v2933 = vunpack.c.l.b16 %v2755
        %v2934 = vunpack.c.h.b16 %v2755
        %v2935 = vunpack.c.l.b16 %v2756
        %v2936 = vunpack.c.h.b16 %v2756
        %v2937 = vunpack.c.l.b16 %v2757
        %v2938 = vunpack.c.h.b16 %v2757
        %v2939 = vunpack.c.l.b16 %v2758
        %v2940 = vunpack.c.h.b16 %v2758
        %v2941 = vunpack.c.l.b16 %v2759
        %v2942 = vunpack.c.h.b16 %v2759
        %v2943 = vunpack.c.l.b16 %v2760
        %v2944 = vunpack.c.h.b16 %v2760
        %v2945 = vunpack.c.l.b16 %v2761
        %v2946 = vunpack.c.h.b16 %v2761
        %v2947 = vunpack.c.l.b16 %v2762
        %v2948 = vunpack.c.h.b16 %v2762
        %v2949 = vunpack.c.l.b16 %v2763
        %v2950 = vunpack.c.h.b16 %v2763
        %v2951 = vunpack.c.l.b16 %v2764
        %v2952 = vunpack.c.h.b16 %v2764
        %v2953 = vunpack.c.l.b16 %v2765
        %v2954 = vunpack.c.h.b16 %v2765
        %v2955 = vunpack.c.l.b16 %v2766
        %v2956 = vunpack.c.h.b16 %v2766
        %v2957 = vunpack.c.l.b16 %v2767
        %v2958 = vunpack.c.h.b16 %v2767
        %v2959 = vunpack.c.l.b16 %v2768
        %v2960 = vunpack.c.h.b16 %v2768
        %v2961 = vunpack.c.l.b16 %v2769
        %v2962 = vunpack.c.h.b16 %v2769
        %v2963 = vunpack.c.l.b16 %v2770
        %v2964 = vunpack.c.h.b16 %v2770
        %v2965 = vunpack.c.l.b16 %v2771
        %v2966 = vunpack.c.h.b16 %v2771
        %v2967 = vunpack.c.l.b16 %v2772
        %v2968 = vunpack.c.h.b16 %v2772
        %v2969 = vunpack.c.l.b16 %v2773
        %v2970 = vunpack.c.h.b16 %v2773
        %v2971 = vunpack.c.l.b16 %v2774
        %v2972 = vunpack.c.h.b16 %v2774
        %v2973 = vunpack.c.l.b16 %v2775
        %v2974 = vunpack.c.h.b16 %v2775
        %v2975 = vunpack.c.l.b16 %v2776
        %v2976 = vunpack.c.h.b16 %v2776
        %v2977 = vunpack.c.l.b16 %v2777
        %v2978 = vunpack.c.h.b16 %v2777
        %v2979 = vunpack.c.l.b16 %v2778
        %v2980 = vunpack.c.h.b16 %v2778
        %v2981 = vunpack.c.l.b16 %v2779
        %v2982 = vunpack.c.h.b16 %v2779
        %v2983 = vunpack.c.l.b16 %v2780
        %v2984 = vunpack.c.h.b16 %v2780
        %v2985 = vpack.c.b16 %v2859, %v2857
        %v2986 = vpack.c.b16 %v2860, %v2858
        %v2987 = vpack.c.b16 %v2863, %v2861
        %v2988 = vpack.c.b16 %v2864, %v2862
        %v2989 = vpack.c.b16 %v2867, %v2865
        %v2990 = vpack.c.b16 %v2868, %v2866
        %v2991 = vpack.c.b16 %v2871, %v2869
        %v2992 = vpack.c.b16 %v2872, %v2870
        %v2993 = vpack.c.b16 %v2875, %v2873
        %v2994 = vpack.c.b16 %v2876, %v2874
        %v2995 = vpack.c.b16 %v2879, %v2877
        %v2996 = vpack.c.b16 %v2880, %v2878
        %v2997 = vpack.c.b16 %v2883, %v2881
        %v2998 = vpack.c.b16 %v2884, %v2882
        %v2999 = vpack.c.b16 %v2887, %v2885
        %v3000 = vpack.c.b16 %v2888, %v2886
        %v3001 = vpack.c.b16 %v2891, %v2889
        %v3002 = vpack.c.b16 %v2892, %v2890
        %v3003 = vpack.c.b16 %v2895, %v2893
        %v3004 = vpack.c.b16 %v2896, %v2894
        %v3005 = vpack.c.b16 %v2899, %v2897
        %v3006 = vpack.c.b16 %v2900, %v2898
        %v3007 = vpack.c.b16 %v2903, %v2901
        %v3008 = vpack.c.b16 %v2904, %v2902
        %v3009 = vpack.c.b16 %v2907, %v2905
        %v3010 = vpack.c.b16 %v2908, %v2906
        %v3011 = vpack.c.b16 %v2911, %v2909
        %v3012 = vpack.c.b16 %v2912, %v2910
        %v3013 = vpack.c.b16 %v2915, %v2913
        %v3014 = vpack.c.b16 %v2916, %v2914
        %v3015 = vpack.c.b16 %v2919, %v2917
        %v3016 = vpack.c.b16 %v2920, %v2918
        %v3017 = vpack.c.b16 %v2923, %v2921
        %v3018 = vpack.c.b16 %v2924, %v2922
        %v3019 = vpack.c.b16 %v2927, %v2925
        %v3020 = vpack.c.b16 %v2928, %v2926
        %v3021 = vpack.c.b16 %v2931, %v2929
        %v3022 = vpack.c.b16 %v2932, %v2930
        %v3023 = vpack.c.b16 %v2935, %v2933
        %v3024 = vpack.c.b16 %v2936, %v2934
        %v3025 = vpack.c.b16 %v2939, %v2937
        %v3026 = vpack.c.b16 %v2940, %v2938
        %v3027 = vpack.c.b16 %v2943, %v2941
        %v3028 = vpack.c.b16 %v2944, %v2942
        %v3029 = vpack.c.b16 %v2947, %v2945
        %v3030 = vpack.c.b16 %v2948, %v2946
        %v3031 = vpack.c.b16 %v2951, %v2949
        %v3032 = vpack.c.b16 %v2952, %v2950
        %v3033 = vpack.c.b16 %v2955, %v2953
        %v3034 = vpack.c.b16 %v2956, %v2954
        %v3035 = vpack.c.b16 %v2959, %v2957
        %v3036 = vpack.c.b16 %v2960, %v2958
        %v3037 = vpack.c.b16 %v2963, %v2961
        %v3038 = vpack.c.b16 %v2964, %v2962
        %v3039 = vpack.c.b16 %v2967, %v2965
        %v3040 = vpack.c.b16 %v2968, %v2966
        %v3041 = vpack.c.b16 %v2971, %v2969
        %v3042 = vpack.c.b16 %v2972, %v2970
        %v3043 = vpack.c.b16 %v2975, %v2973
        %v3044 = vpack.c.b16 %v2976, %v2974
        %v3045 = vpack.c.b16 %v2979, %v2977
        %v3046 = vpack.c.b16 %v2980, %v2978
        %v3047 = vpack.c.b16 %v2983, %v2981
        %v3048 = vpack.c.b16 %v2984, %v2982
        %3113 = vmatprep.subr.bf16.mxu0 %v2986
        %3114 = vmatpush1.bf16.msra.mxu0 %v2985
        %3115 = vmatprep.subr.bf16.mxu0 %v2988
        %3116 = vmatpush1.bf16.msra.mxu0 %v2987
        %3117 = vmatprep.subr.bf16.mxu0 %v2990
        %3118 = vmatpush1.bf16.msra.mxu0 %v2989
        %3119 = vmatprep.subr.bf16.mxu0 %v2992
        %3120 = vmatpush1.bf16.msra.mxu0 %v2991
        %3121 = vmatprep.subr.bf16.mxu0 %v2994
        %3122 = vmatpush1.bf16.msra.mxu0 %v2993
        %3123 = vmatprep.subr.bf16.mxu0 %v2996
        %3124 = vmatpush1.bf16.msra.mxu0 %v2995
        %3125 = vmatprep.subr.bf16.mxu0 %v2998
        %3126 = vmatpush1.bf16.msra.mxu0 %v2997
        %3127 = vmatprep.subr.bf16.mxu0 %v3000
        %3128 = vmatpush1.bf16.msra.mxu0 %v2999
        %3129 = vmatprep.subr.bf16.mxu0 %v3002
        %3130 = vmatpush1.bf16.msra.mxu0 %v3001
        %3131 = vmatprep.subr.bf16.mxu0 %v3004
        %3132 = vmatpush1.bf16.msra.mxu0 %v3003
        %3133 = vmatprep.subr.bf16.mxu0 %v3006
        %3134 = vmatpush1.bf16.msra.mxu0 %v3005
        %3135 = vmatprep.subr.bf16.mxu0 %v3008
        %3136 = vmatpush1.bf16.msra.mxu0 %v3007
        %3137 = vmatprep.subr.bf16.mxu0 %v3010
        %3138 = vmatpush1.bf16.msra.mxu0 %v3009
        %3139 = vmatprep.subr.bf16.mxu0 %v3012
        %3140 = vmatpush1.bf16.msra.mxu0 %v3011
        %3141 = vmatprep.subr.bf16.mxu0 %v3014
        %3142 = vmatpush1.bf16.msra.mxu0 %v3013
        %3143 = vmatprep.subr.bf16.mxu0 %v3016
        %3144 = vmatpush1.bf16.msra.mxu0 %v3015
        %3145 = vmatprep.mubr.bf16.mxu0 %v2714
        %3146 = vmatmul.mubr.bf16.gmra.mrb[0].mxu0 %v2713
        %v3147 = vpop.f32.mrb[0].mxu0
        %v3148 = vadd.f32 %v2786, %v3147
        %v3149 = vpop.f32.mrb[0].mxu0
        %v3150 = vadd.f32 %v2790, %v3149
        %v3151 = vpop.f32.mrb[0].mxu0
        %v3152 = vpop.f32.mrb[0].mxu0
        %3153 = vdwg.mxu0
        %3154 = vmatprep.subr.bf16.mxu0 %v3018
        %3155 = vmatpush1.bf16.msra.mxu0 %v3017
        %3156 = vmatprep.subr.bf16.mxu0 %v3020
        %3157 = vmatpush1.bf16.msra.mxu0 %v3019
        %3158 = vmatprep.subr.bf16.mxu0 %v3022
        %3159 = vmatpush1.bf16.msra.mxu0 %v3021
        %3160 = vmatprep.subr.bf16.mxu0 %v3024
        %3161 = vmatpush1.bf16.msra.mxu0 %v3023
        %3162 = vmatprep.subr.bf16.mxu0 %v3026
        %3163 = vmatpush1.bf16.msra.mxu0 %v3025
        %3164 = vmatprep.subr.bf16.mxu0 %v3028
        %3165 = vmatpush1.bf16.msra.mxu0 %v3027
        %3166 = vmatprep.subr.bf16.mxu0 %v3030
        %3167 = vmatpush1.bf16.msra.mxu0 %v3029
        %3168 = vmatprep.subr.bf16.mxu0 %v3032
        %3169 = vmatpush1.bf16.msra.mxu0 %v3031
        %3170 = vmatprep.subr.bf16.mxu0 %v3034
        %3171 = vmatpush1.bf16.msra.mxu0 %v3033
        %3172 = vmatprep.subr.bf16.mxu0 %v3036
        %3173 = vmatpush1.bf16.msra.mxu0 %v3035
        %3174 = vmatprep.subr.bf16.mxu0 %v3038
        %3175 = vmatpush1.bf16.msra.mxu0 %v3037
        %3176 = vmatprep.subr.bf16.mxu0 %v3040
        %3177 = vmatpush1.bf16.msra.mxu0 %v3039
        %3178 = vmatprep.subr.bf16.mxu0 %v3042
        %3179 = vmatpush1.bf16.msra.mxu0 %v3041
        %3180 = vmatprep.subr.bf16.mxu0 %v3044
        %3181 = vmatpush1.bf16.msra.mxu0 %v3043
        %3182 = vmatprep.subr.bf16.mxu0 %v3046
        %3183 = vmatpush1.bf16.msra.mxu0 %v3045
        %3184 = vmatprep.subr.bf16.mxu0 %v3048
        %3185 = vmatpush1.bf16.msra.mxu0 %v3047
        %3186 = vmatprep.mubr.bf16.mxu0 %v2716
        %3187 = vmatmul.mubr.bf16.gmra.mrb[0].mxu0 %v2715
        %v3188 = vpop.f32.mrb[0].mxu0
        %v3189 = vadd.f32 %v3148, %v3188
        %v3190 = vpop.f32.mrb[0].mxu0
        %v3191 = vadd.f32 %v3150, %v3190
        %v3192 = vpop.f32.mrb[0].mxu0
        %v3193 = vpop.f32.mrb[0].mxu0
        %3194 = vdwg.mxu0
        %v3195 = vadd.f32 %v2185, %v3189
        %v3196 = vadd.f32 %v2186, %v3191
        %v3197 = vld [vmem:[%s865] sm:$0x3]
        %v3198 = vld [vmem:[%s869] sm:$0x3]
        %v3199 = vadd.f32 %v3195, %v3196
        %3200 = vadd.xlane.f32.xlu0 %v3199
        %v3201 = vpop.xlane.xlu0 %3200
        %v3202 = vmul.f32 %v3201, %v2147
        %v3203 = vsub.f32 %v3195, %v3202
        %v3204 = vsub.f32 %v3196, %v3202
        %v3205 = vmul.f32 %v3203, %v3203
        %v3206 = vmul.f32 %v3204, %v3204
        %v3207 = vadd.f32 %v3205, %v3206
        %3208 = vadd.xlane.f32.xlu0 %v3207
        %v3209 = vpop.xlane.xlu0 %3208
        %v3210 = vmul.f32 %v3209, %v2147
        %v3211 = vadd.f32 %v3210, 1e-12
        %v3212 = vrsqrt.pop %v3211
        %v3213 = vmul.f32 %v3203, %v3212
        %v3214 = vmul.f32 %v3204, %v3212
        %v3216 = vlaneseq
        %v3217 = vshrl.u32 %v3216, 7
        %v3218 = vsub.s32 0, %v3217
        %v3219 = vrot.slane %v3197, %v3218
        %v3220 = vlaneseq
        %v3221 = vshrl.u32 %v3220, 7
        %v3222 = vsub.s32 1, %v3221
        %v3223 = vrot.slane %v3197, %v3222
        %v3226 = vmul.f32 %v3213, %v3219
        %v3227 = vmul.f32 %v3214, %v3223
        %v3229 = vlaneseq
        %v3230 = vshrl.u32 %v3229, 7
        %v3231 = vsub.s32 0, %v3230
        %v3232 = vrot.slane %v3198, %v3231
        %v3233 = vlaneseq
        %v3234 = vshrl.u32 %v3233, 7
        %v3235 = vsub.s32 1, %v3234
        %v3236 = vrot.slane %v3198, %v3235
        %v3239 = vadd.f32 %v3226, %v3232
        %v3240 = vadd.f32 %v3227, %v3236
        %3241 = vst [vmem:[#allocation2] sm:$0xff] %v3239
        %3242 = vst [vmem:[#allocation2 + $0x8] sm:$0xff] %v3240
        %p3243 = scmp.eq.s32.totalorder %s43, 1
        // Predicated region
        $region105: #{bert_encoder_seq_forward.1} parent=83 // pred_check
          %p3244 = pneg %p3243
        $region106: #{bert_encoder_seq_forward.1} parent=83 // pred_check_branch
          %3246 = sbr.rel (%p3244) target = $region108
        $region107: #{bert_encoder_seq_forward.1} parent=83 // pred_region
          %3247 = vst [vmem:[%s874] sm:$0xff] %v3239
          %3248 = vst [vmem:[%s874 + $0x8] sm:$0xff] %v3240
          %v3249 = vrot.slane %v3239, 4
          %v3250 = vadd.f32 %v3239, %v3249
          %v3251 = vrot.slane %v3250, 2
          %v3252 = vadd.f32 %v3250, %v3251
          %v3253 = vrot.slane %v3252, 1
          %v3254 = vadd.f32 %v3252, %v3253
          %v3255 = vrot.slane %v3240, 4
          %v3256 = vadd.f32 %v3240, %v3255
          %v3257 = vrot.slane %v3256, 2
          %v3258 = vadd.f32 %v3256, %v3257
          %v3259 = vrot.slane %v3258, 1
          %v3260 = vadd.f32 %v3258, %v3259
          %v3261 = vrcp.pop 8.0
          %v3262 = vmul.f32 %v3254, %v3261
          %v3263 = vmul.f32 %v3260, %v3261
          %v3266 = vcombine.low %v3262, %v3263
          %v3268 = vunpack.c.l.s4 1966171168
          %v3269 = vunpack.c.0.s8 %v3268
          %v3270 = vlaneseq
          %v3271 = vshrl.u32 %v3270, 7
          %v3272 = vsub.s32 %v3269, %v3271
          %v3273 = vrot.slane %v3266, %v3272
          %v3275 = vunpack.c.l.s4 1966171168
          %v3276 = vunpack.c.0.s8 %v3275
          %v3277 = vlaneseq
          %v3278 = vshrl.u32 %v3277, 7
          %v3279 = vsub.s32 %v3276, %v3278
          %v3280 = vrot.slane %v3273, %v3279
          %v3282 = vlaneseq
          %vm3283 = vcmp.ge.s32.totalorder %v3282, 0
          %vm3284 = vcmp.lt.s32.totalorder %v3282, 256
          %vm3285 = vmand %vm3283, %vm3284
          %3286 = vst.msk [vmem:[%s878] sm:$0x3] %vm3285, %v3280
        $region108: #{bert_encoder_seq_forward.1} parent=83 // pred_fallthru
          _
        %p3287 = scmp.lt.s32.totalorder %s42, 1
        %s3288 = scalar_select %p3287, %s42, 1
        %s3289 = smul.addr %s3288, 2
        %s3290 = smul.addr %s3289, 8
        %s3291 = scalar_lea.vmem %s16, %s3290
        %p3292 = scmp.lt.s32.totalorder %s42, 1
        %s3293 = scalar_select %p3292, %s42, 1
        %s3294 = smul.addr %s3293, 2
        %s3295 = scalar_lea.vmem %s17, %s3294
        // Predicated region
        $region109: #{bert_encoder_seq_forward.1} parent=83 // pred_check
          %p3296 = pneg %p474
        $region110: #{bert_encoder_seq_forward.1} parent=83 // pred_check_branch
          %3298 = sbr.rel (%p3296) target = $region112
        $region111: #{bert_encoder_seq_forward.1} parent=83 // pred_region
          _
        $region112: #{bert_encoder_seq_forward.1} parent=83 // pred_fallthru
          _
        // Predicated region
        $region113: #{bert_encoder_seq_forward.1} parent=83 // pred_check
          %p3299 = pneg %p500
        $region114: #{bert_encoder_seq_forward.1} parent=83 // pred_check_branch
          %3301 = sbr.rel (%p3299) target = $region116
        $region115: #{bert_encoder_seq_forward.1} parent=83 // pred_region
          _
        $region116: #{bert_encoder_seq_forward.1} parent=83 // pred_fallthru
          _
      $region84: #{bert_encoder_seq_forward.1} parent=5 // pred_fallthru
        _
      %p3302 = scmp.le.s32.totalorder 2, %s33
      // Predicated region
      $region117: #{bert_encoder_seq_forward.1} parent=5 // pred_check
        %p3303 = pneg %p3302
      $region118: #{bert_encoder_seq_forward.1} parent=5 // pred_check_branch
        %3305 = sbr.rel (%p3303) target = $region120
      $region119: #{bert_encoder_seq_forward.1} parent=5 // pred_region
        %s3306 = ssub.s32 %s33, 2
        // Predicated region
        $region121: #{bert_encoder_seq_forward.1} parent=119 // pred_check
          %p3307 = pneg %p480
        $region122: #{bert_encoder_seq_forward.1} parent=119 // pred_check_branch
          %3309 = sbr.rel (%p3307) target = $region124
        $region123: #{bert_encoder_seq_forward.1} parent=119 // pred_region
          %p3310 = scmp.lt.s32.totalorder %s44, 1
          %s3311 = scalar_select %p3310, %s44, 1
          %s3312 = smul.addr %s3311, 2
          %s3313 = smul.addr %s3312, 8
          %s3314 = scalar_lea.vmem %s16, %s3313
        $region124: #{bert_encoder_seq_forward.1} parent=119 // pred_fallthru
          _
        // Predicated region
        $region125: #{bert_encoder_seq_forward.1} parent=119 // pred_check
          %p3315 = pneg %p506
        $region126: #{bert_encoder_seq_forward.1} parent=119 // pred_check_branch
          %3317 = sbr.rel (%p3315) target = $region128
        $region127: #{bert_encoder_seq_forward.1} parent=119 // pred_region
          %p3318 = scmp.lt.s32.totalorder %s44, 1
          %s3319 = scalar_select %p3318, %s44, 1
          %s3320 = smul.addr %s3319, 2
          %s3321 = scalar_lea.vmem %s17, %s3320
        $region128: #{bert_encoder_seq_forward.1} parent=119 // pred_fallthru
          _
      $region120: #{bert_encoder_seq_forward.1} parent=5 // pred_fallthru
        _
    $region6: #{bert_encoder_seq_forward.1} parent=1 // loop_footer
      %s37 = sadd.s32 1, %s33
    $region7: #{bert_encoder_seq_forward.1} parent=1 // loop_footer_branch
      %32 = sbr.rel target = $region3
    $region8: #{bert_encoder_seq_forward.1} parent=1 // loop_exit
      _
    %3322 = vsyncpa [#allocation5], 1
    %s3323 = scalar_lea.sflag [#allocation5], 1
    %3324 = vsyncpa %s3323, 1
    %3325 = vsyncpa [#allocation7], 1
    %s3326 = scalar_lea.sflag [#allocation7], 1
    %3327 = vsyncpa %s3326, 1
    %3328 = vsyncpa [#allocation10], 1
    %s3329 = scalar_lea.sflag [#allocation10], 1
    %3330 = vsyncpa %s3329, 1

</llo_original>
